<compile_context>
chip_gen: v6e
topology: v6e:2x2x1
jax: 0.10.0
libtpu: 0.0.40
codegen_flags: <defaults>
</compile_context>

<pallas_src>
import jax
import jax.numpy as jnp
from jax import lax
from jax.experimental import pallas as pl
from jax.experimental.pallas import tpu as pltpu

BN_EPS = 1e-3


# --------------------------------------------------------------------------
# Fused InceptionA kernel
# --------------------------------------------------------------------------
def _make_inception_a_kernel(H, W):
    HW = H * W

    def _pad_hw(t3):
        """(H, W, C) -> zero-padded (H+2, W+2, C), value-level (concat only)."""
        C = t3.shape[-1]
        zrow = jnp.zeros((1, W, C), t3.dtype)
        zcol = jnp.zeros((H + 2, 1, C), t3.dtype)
        t3 = jnp.concatenate([zrow, t3, zrow], axis=0)
        return jnp.concatenate([zcol, t3, zcol], axis=1)

    def _im2col(tpad):
        """(H+2, W+2, C) -> (HW, 9*C) tap-major patch tensor."""
        C = tpad.shape[-1]
        taps = [tpad[dy:dy + H, dx:dx + W, :].reshape(HW, C)
                for dy in range(3) for dx in range(3)]
        return jnp.concatenate(taps, axis=-1)

    def kernel(x2d_ref,
               w1_ref, s1_ref,        # packed 1x1: [b0|b1_0|b2_0|pad|b3|pad] (Cin,192)
               wA_ref, sA_ref,        # merged (block-diagonal) 3x3: b1 + b2-first
               w22_ref, s22_ref,      # branch2 second 3x3
               sp_ref,                # branch3 BN shift (applied after pooling)
               inv_ref,               # (H, W, 1) reciprocal pool counts
               out_ref):
        x2d = x2d_ref[0]                                       # (HW, Cin) bf16

        # ---- stage 1: all four 1x1 convs as one packed matmul ---------------
        yf = jnp.dot(x2d, w1_ref[...],
                     preferred_element_type=jnp.float32)       # (HW, 192) f32
        # cols [0:112) get BN shift + ReLU (b0 / b1_0 / b2_0); [112:128) is pad.
        act = jnp.maximum(yf[:, 0:128] + s1_ref[...], 0.0)
        y0 = act[:, 0:48]                                      # branch 0 output
        t12 = act[:, 48:112].astype(jnp.bfloat16)              # [t1(32) | t2(32)]

        # ---- merged 3x3: branch1 + branch2-first (block-diagonal weight) ----
        pA = _im2col(_pad_hw(t12.reshape(H, W, 64)))           # (HW, 576) bf16
        yA = jnp.dot(pA, wA_ref[...],
                     preferred_element_type=jnp.float32)       # (HW, 96) f32
        yA = jnp.maximum(yA + sA_ref[...], 0.0)
        y1 = yA[:, 0:48]                                       # branch 1 output
        u2 = yA[:, 48:96].astype(jnp.bfloat16)                 # branch 2 interm.

        # ---- branch 2 second 3x3 --------------------------------------------
        pB = _im2col(_pad_hw(u2.reshape(H, W, 48)))            # (HW, 432) bf16
        y2 = jnp.dot(pB, w22_ref[...],
                     preferred_element_type=jnp.float32)
        y2 = jnp.maximum(y2 + s22_ref[...], 0.0)               # (HW, 48) f32

        # ---- branch 3: avgpool(conv1x1(x)) == conv1x1(avgpool(x)) -----------
        # p3 = raw (scale-folded) 1x1 conv output; shift/ReLU only after pooling.
        p3 = yf[:, 128:176].reshape(H, W, 48)                  # f32
        zrow = jnp.zeros((1, W, 48), jnp.float32)
        prow = jnp.concatenate([zrow, p3, zrow], axis=0)       # (H+2, W, 48)
        rsum = prow[0:H] + prow[1:H + 1] + prow[2:H + 2]       # row sums
        zcol = jnp.zeros((H, 1, 48), jnp.float32)
        pcol = jnp.concatenate([zcol, rsum, zcol], axis=1)     # (H, W+2, 48)
        csum = pcol[:, 0:W] + pcol[:, 1:W + 1] + pcol[:, 2:W + 2]
        pooled = (csum * inv_ref[...]).reshape(HW, 48)         # count_include_pad=False
        y3 = jnp.maximum(pooled + sp_ref[...], 0.0)            # (HW, 48) f32

        # ---- channel concat + single lane-dense (192-wide) store ------------
        out_ref[0] = jnp.concatenate([y0, y1, y2, y3], axis=-1).astype(out_ref.dtype)

    return kernel


# --------------------------------------------------------------------------
# Wrapper (NCHW/f32 default to match the PyTorch module; NHWC/bf16 optional)
# --------------------------------------------------------------------------
def inception_a_forward(x_nchw, packed, *, out_dtype=jnp.float32, out_layout="NCHW"):
    N, Cin, H, W = x_nchw.shape
    HW = H * W
    x = jnp.transpose(x_nchw, (0, 2, 3, 1)).astype(jnp.bfloat16)   # NHWC bf16
    x2d = x.reshape(N, HW, Cin)

    # Trace-time constant reciprocal pool counts (count_include_pad=False).
    hi = jnp.arange(H, dtype=jnp.float32)
    wi = jnp.arange(W, dtype=jnp.float32)
    rows = 3.0 - (hi == 0).astype(jnp.float32) - (hi == H - 1).astype(jnp.float32)
    cols = 3.0 - (wi == 0).astype(jnp.float32) - (wi == W - 1).astype(jnp.float32)
    inv_cnt = (1.0 / (rows[:, None] * cols[None, :])).reshape(H, W, 1)

    weight_args = tuple(packed) + (inv_cnt,)

    out_itemsize = jnp.dtype(out_dtype).itemsize
    weight_bytes = sum(int(a.size) * a.dtype.itemsize for a in weight_args)
    macs = Cin * 192 + 576 * 96 + 432 * 48
    flops = 2 * N * HW * macs
    bytes_accessed = int(x2d.size) * 2 + weight_bytes + N * HW * 192 * out_itemsize

    # Per-grid-step VMEM footprint estimate (blocks double-buffered + live temps).
    per_step = (2 * HW * Cin * 2
                + 2 * HW * 192 * out_itemsize
                + 2 * weight_bytes
                + HW * (192 * 4 + 128 * 4 + 64 * 2 + 576 * 2 + 96 * 4
                        + 48 * 2 + 432 * 2 + 4 * 48 * 4)
                + (H + 2) * (W + 2) * (64 + 48) * 2)
    vmem_limit = int(min(max(2 * per_step, 32 << 20), 64 << 20))

    def _const_spec(a):
        zeros = (0,) * a.ndim
        return pl.BlockSpec(a.shape, lambda n, _z=zeros: _z)

    in_specs = [pl.BlockSpec((1, HW, Cin), lambda n: (n, 0, 0))]
    in_specs += [_const_spec(a) for a in weight_args]

    out = pl.pallas_call(
        _make_inception_a_kernel(H, W),
        out_shape=jax.ShapeDtypeStruct((N, HW, 192), out_dtype),
        grid_spec=pltpu.PrefetchScalarGridSpec(
            num_scalar_prefetch=0,
            grid=(N,),
            in_specs=in_specs,
            out_specs=pl.BlockSpec((1, HW, 192), lambda n: (n, 0, 0)),
        ),
        compiler_params=pltpu.CompilerParams(
            dimension_semantics=("parallel",),
            vmem_limit_bytes=vmem_limit),
        cost_estimate=pl.CostEstimate(
            flops=flops, transcendentals=0, bytes_accessed=bytes_accessed),
    )(x2d, *weight_args)

    out = out.reshape(N, H, W, 192)
    if out_layout == "NHWC":
        return out                                   # keep NHWC / out_dtype (fast path)
    return jnp.transpose(out, (0, 3, 1, 2))          # -> NCHW (module spec)


# --------------------------------------------------------------------------
# Parameters (deterministic, synthetic) + host-side packing
# --------------------------------------------------------------------------
def init_raw_params(key, in_channels):
    """Per-layer (w_hwio, gamma, beta, running_mean, running_var)."""
    def conv_w(k, cout, cin, ksz):
        w = 0.1 * jax.random.normal(k, (cout, cin, ksz, ksz), jnp.float32)
        return jnp.transpose(w, (2, 3, 1, 0))                  # OIHW -> HWIO

    def bn(k, c):
        k1, k2, k3, k4 = jax.random.split(k, 4)
        gamma = 1.0 + 0.1 * jax.random.normal(k1, (c,), jnp.float32)
        beta = 0.1 * jax.random.normal(k2, (c,), jnp.float32)
        mean = 0.1 * jax.random.normal(k3, (c,), jnp.float32)
        var = 0.5 + jax.random.uniform(k4, (c,), jnp.float32)
        return gamma, beta, mean, var

    ks = jax.random.split(key, 14)
    return {
        "b0":   (conv_w(ks[0], 48, in_channels, 1), *bn(ks[1], 48)),
        "b1_0": (conv_w(ks[2], 32, in_channels, 1), *bn(ks[3], 32)),
        "b1_1": (conv_w(ks[4], 48, 32, 3),          *bn(ks[5], 48)),
        "b2_0": (conv_w(ks[6], 32, in_channels, 1), *bn(ks[7], 32)),
        "b2_1": (conv_w(ks[8], 48, 32, 3),          *bn(ks[9], 48)),
        "b2_2": (conv_w(ks[10], 48, 48, 3),         *bn(ks[11], 48)),
        "b3":   (conv_w(ks[12], 48, in_channels, 1), *bn(ks[13], 48)),
    }


def pack_params(raw):
    """Fold BN scale into weights, pack/pad the 1x1s, build the block-diagonal
    merged 3x3 weight, im2col-reshape the remaining 3x3, cast matmul operands bf16."""
    def fold(w_hwio, gamma, beta, mean, var):
        scale = gamma / jnp.sqrt(var + BN_EPS)
        return w_hwio * scale, beta - mean * scale

    w0, s0 = fold(*raw["b0"])        # (1,1,Cin,48)
    w10, s10 = fold(*raw["b1_0"])    # (1,1,Cin,32)
    w20, s20 = fold(*raw["b2_0"])    # (1,1,Cin,32)
    w11, s11 = fold(*raw["b1_1"])    # (3,3,32,48)
    w21, s21 = fold(*raw["b2_1"])    # (3,3,32,48)
    w22, s22 = fold(*raw["b2_2"])    # (3,3,48,48)
    wp, sp = fold(*raw["b3"])        # (1,1,Cin,48)

    cin = w0.shape[2]
    zpad16 = jnp.zeros((cin, 16), jnp.float32)
    # Stage-1 columns: [b0(48) | b1_0(32) | b2_0(32) | pad(16) | b3(48) | pad(16)]
    w1 = jnp.concatenate(
        [w0.reshape(cin, 48), w10.reshape(cin, 32), w20.reshape(cin, 32),
         zpad16, wp.reshape(cin, 48), zpad16], axis=1).astype(jnp.bfloat16)
    # BN shift for the ReLU'd slab [0:128); branch-3's shift is applied post-pool.
    s1 = jnp.concatenate([s0, s10, s20, jnp.zeros((16,), jnp.float32)]
                         ).reshape(1, 128).astype(jnp.float32)

    def blockdiag_im2col(wa, wb):   # (3,3,Ca,Oa),(3,3,Cb,Ob) -> (9*(Ca+Cb), Oa+Ob)
        ca, oa = wa.shape[2], wa.shape[3]
        cb, ob = wb.shape[2], wb.shape[3]
        blocks = []
        for dy in range(3):
            for dx in range(3):
                top = jnp.concatenate([wa[dy, dx], jnp.zeros((ca, ob), wa.dtype)], 1)
                bot = jnp.concatenate([jnp.zeros((cb, oa), wb.dtype), wb[dy, dx]], 1)
                blocks.append(jnp.concatenate([top, bot], 0))
        return jnp.concatenate(blocks, 0)

    wA = blockdiag_im2col(w11, w21).astype(jnp.bfloat16)            # (576, 96)
    sA = jnp.concatenate([s11, s21]).reshape(1, 96).astype(jnp.float32)

    w22i = w22.reshape(9 * 48, 48).astype(jnp.bfloat16)             # (432, 48)
    s22r = s22.reshape(1, 48).astype(jnp.float32)
    spr = sp.reshape(1, 48).astype(jnp.float32)

    return (w1, s1, wA, sA, w22i, s22r, spr)


# --------------------------------------------------------------------------
# Pure-JAX f32 reference (built from the RAW per-layer params)
# --------------------------------------------------------------------------
def _ref_forward(x_nchw, raw):
    x = jnp.transpose(x_nchw, (0, 2, 3, 1))

    def cbr(x, w, gamma, beta, mean, var, pad):
        y = lax.conv_general_dilated(
            x, w, (1, 1), [(pad, pad), (pad, pad)],
            dimension_numbers=("NHWC", "HWIO", "NHWC"))
        scale = gamma / jnp.sqrt(var + BN_EPS)
        return jnp.maximum(y * scale + (beta - mean * scale), 0.0)

    def avgpool(x):  # 3x3/s1/p1, count_include_pad=False (as in the spec)
        pad = [(0, 0), (1, 1), (1, 1), (0, 0)]
        sm = lax.reduce_window(x, 0.0, lax.add, (1, 3, 3, 1), (1, 1, 1, 1), pad)
        ct = lax.reduce_window(jnp.ones_like(x), 0.0, lax.add,
                               (1, 3, 3, 1), (1, 1, 1, 1), pad)
        return sm / ct

    b0 = cbr(x, *raw["b0"], 0)
    b1 = cbr(cbr(x, *raw["b1_0"], 0), *raw["b1_1"], 1)
    b2 = cbr(cbr(cbr(x, *raw["b2_0"], 0), *raw["b2_1"], 1), *raw["b2_2"], 1)
    b3 = cbr(avgpool(x), *raw["b3"], 0)
    out = jnp.concatenate([b0, b1, b2, b3], axis=-1)
    return jnp.transpose(out, (0, 3, 1, 2))


if __name__ == "__main__":
    key = jax.random.PRNGKey(0)
    kx, kp = jax.random.split(key)
    in_channels = 4
    x = jax.random.normal(kx, (2, in_channels, 16, 16), jnp.float32)

    raw = init_raw_params(kp, in_channels)
    packed = pack_params(raw)

    fwd = jax.jit(inception_a_forward, static_argnames=("out_dtype", "out_layout"))

    # Spec-compliant path: NCHW / f32, compared against the pure-JAX reference.
    out = jax.block_until_ready(fwd(x, packed))
    assert out.shape == (2, 192, 16, 16), out.shape

    ref = jax.block_until_ready(_ref_forward(x, raw))
    err = float(jnp.max(jnp.abs(out - ref)))
    # bf16 MXU operands (f32 accumulate) -> loosened tolerance vs the f32
    # reference; typical max-abs error ~1e-2, a broken kernel gives O(1).
    assert err < 8e-2, f"max abs err {err}"

    # Fast path (bf16 store, NHWC, no exit transpose) — exercised for shape/dtype.
    out_fast = jax.block_until_ready(
        fwd(x, packed, out_dtype=jnp.bfloat16, out_layout="NHWC"))
    assert out_fast.shape == (2, 16, 16, 192) and out_fast.dtype == jnp.bfloat16

    print("KERNEL_OK")
</pallas_src>

<mosaic_0001>
module attributes {stable_mosaic.version = 11 : i64} {
  func.func @kernel(%arg0: i32, %arg1: memref<1x256x4xbf16, #tpu.memory_space<vmem>>, %arg2: memref<4x192xbf16, #tpu.memory_space<vmem>>, %arg3: memref<1x128xf32, #tpu.memory_space<vmem>>, %arg4: memref<576x96xbf16, #tpu.memory_space<vmem>>, %arg5: memref<1x96xf32, #tpu.memory_space<vmem>>, %arg6: memref<432x48xbf16, #tpu.memory_space<vmem>>, %arg7: memref<1x48xf32, #tpu.memory_space<vmem>>, %arg8: memref<1x48xf32, #tpu.memory_space<vmem>>, %arg9: memref<16x16x1xf32, #tpu.memory_space<vmem>>, %arg10: memref<1x256x192xf32, #tpu.memory_space<vmem>>) attributes {dimension_semantics = [#tpu.dimension_semantics<parallel>], iteration_bounds = array<i64: 2>, scalar_prefetch = 0 : i64, scratch_operands = 0 : i64, tpu.core_type = #tpu.core_type<tc>, window_params = [{transform_indices = @transform_0, window_bounds = array<i64: 1, 256, 4>}, {pipeline_mode = #tpu.pipeline_mode<synchronous>, transform_indices = @transform_1, window_bounds = array<i64: 4, 192>}, {pipeline_mode = #tpu.pipeline_mode<synchronous>, transform_indices = @transform_2, window_bounds = array<i64: 1, 128>}, {pipeline_mode = #tpu.pipeline_mode<synchronous>, transform_indices = @transform_3, window_bounds = array<i64: 576, 96>}, {pipeline_mode = #tpu.pipeline_mode<synchronous>, transform_indices = @transform_4, window_bounds = array<i64: 1, 96>}, {pipeline_mode = #tpu.pipeline_mode<synchronous>, transform_indices = @transform_5, window_bounds = array<i64: 432, 48>}, {pipeline_mode = #tpu.pipeline_mode<synchronous>, transform_indices = @transform_6, window_bounds = array<i64: 1, 48>}, {pipeline_mode = #tpu.pipeline_mode<synchronous>, transform_indices = @transform_7, window_bounds = array<i64: 1, 48>}, {pipeline_mode = #tpu.pipeline_mode<synchronous>, transform_indices = @transform_8, window_bounds = array<i64: 16, 16, 1>}, {transform_indices = @transform_9, window_bounds = array<i64: 1, 256, 192>}]} {
    %c0 = arith.constant 0 : index
    %c0_0 = arith.constant 0 : index
    %c0_1 = arith.constant 0 : index
    %0 = vector.load %arg1[%c0, %c0_0, %c0_1] : memref<1x256x4xbf16, #tpu.memory_space<vmem>>, vector<1x256x4xbf16>
    %1 = vector.shape_cast %0 : vector<1x256x4xbf16> to vector<256x4xbf16>
    %c0_2 = arith.constant 0 : index
    %c0_3 = arith.constant 0 : index
    %2 = vector.load %arg2[%c0_2, %c0_3] : memref<4x192xbf16, #tpu.memory_space<vmem>>, vector<4x192xbf16>
    %cst = arith.constant dense<0.000000e+00> : vector<256x192xf32>
    %3 = tpu.matmul %1, %2, %cst {dimension_numbers = #tpu.dot_dimension_numbers<[1], [0], [0], [1], [0, 0, 1, 1], [], []>} : vector<256x4xbf16>, vector<4x192xbf16>, vector<256x192xf32> -> vector<256x192xf32>
    %4 = vector.extract_strided_slice %3 {offsets = [0, 0], sizes = [256, 128], strides = [1, 1]} : vector<256x192xf32> to vector<256x128xf32>
    %c0_4 = arith.constant 0 : index
    %c0_5 = arith.constant 0 : index
    %5 = vector.load %arg3[%c0_4, %c0_5] : memref<1x128xf32, #tpu.memory_space<vmem>>, vector<1x128xf32>
    %6 = vector.broadcast %5 : vector<1x128xf32> to vector<256x128xf32>
    %7 = arith.addf %4, %6 : vector<256x128xf32>
    %cst_6 = arith.constant 0.000000e+00 : f32
    %8 = vector.broadcast %cst_6 : f32 to vector<256x128xf32>
    %9 = arith.maximumf %7, %8 : vector<256x128xf32>
    %10 = vector.extract_strided_slice %9 {offsets = [0, 0], sizes = [256, 48], strides = [1, 1]} : vector<256x128xf32> to vector<256x48xf32>
    %11 = vector.extract_strided_slice %9 {offsets = [0, 48], sizes = [256, 64], strides = [1, 1]} : vector<256x128xf32> to vector<256x64xf32>
    %12 = arith.truncf %11 : vector<256x64xf32> to vector<256x64xbf16>
    %13 = vector.shape_cast %12 : vector<256x64xbf16> to vector<16x16x64xbf16>
    %cst_7 = arith.constant 0.000000e+00 : bf16
    %14 = vector.broadcast %cst_7 : bf16 to vector<1x16x64xbf16>
    %cst_8 = arith.constant 0.000000e+00 : bf16
    %15 = vector.broadcast %cst_8 : bf16 to vector<18x1x64xbf16>
    %16 = tpu.concatenate %14, %13, %14 in 0 : vector<1x16x64xbf16>, vector<16x16x64xbf16>, vector<1x16x64xbf16> -> vector<18x16x64xbf16>
    %17 = tpu.concatenate %15, %16, %15 in 1 : vector<18x1x64xbf16>, vector<18x16x64xbf16>, vector<18x1x64xbf16> -> vector<18x18x64xbf16>
    %18 = vector.extract_strided_slice %17 {offsets = [0, 0, 0], sizes = [16, 16, 64], strides = [1, 1, 1]} : vector<18x18x64xbf16> to vector<16x16x64xbf16>
    %19 = vector.shape_cast %18 : vector<16x16x64xbf16> to vector<256x64xbf16>
    %20 = vector.extract_strided_slice %17 {offsets = [0, 1, 0], sizes = [16, 16, 64], strides = [1, 1, 1]} : vector<18x18x64xbf16> to vector<16x16x64xbf16>
    %21 = vector.shape_cast %20 : vector<16x16x64xbf16> to vector<256x64xbf16>
    %22 = vector.extract_strided_slice %17 {offsets = [0, 2, 0], sizes = [16, 16, 64], strides = [1, 1, 1]} : vector<18x18x64xbf16> to vector<16x16x64xbf16>
    %23 = vector.shape_cast %22 : vector<16x16x64xbf16> to vector<256x64xbf16>
    %24 = vector.extract_strided_slice %17 {offsets = [1, 0, 0], sizes = [16, 16, 64], strides = [1, 1, 1]} : vector<18x18x64xbf16> to vector<16x16x64xbf16>
    %25 = vector.shape_cast %24 : vector<16x16x64xbf16> to vector<256x64xbf16>
    %26 = vector.extract_strided_slice %17 {offsets = [1, 1, 0], sizes = [16, 16, 64], strides = [1, 1, 1]} : vector<18x18x64xbf16> to vector<16x16x64xbf16>
    %27 = vector.shape_cast %26 : vector<16x16x64xbf16> to vector<256x64xbf16>
    %28 = vector.extract_strided_slice %17 {offsets = [1, 2, 0], sizes = [16, 16, 64], strides = [1, 1, 1]} : vector<18x18x64xbf16> to vector<16x16x64xbf16>
    %29 = vector.shape_cast %28 : vector<16x16x64xbf16> to vector<256x64xbf16>
    %30 = vector.extract_strided_slice %17 {offsets = [2, 0, 0], sizes = [16, 16, 64], strides = [1, 1, 1]} : vector<18x18x64xbf16> to vector<16x16x64xbf16>
    %31 = vector.shape_cast %30 : vector<16x16x64xbf16> to vector<256x64xbf16>
    %32 = vector.extract_strided_slice %17 {offsets = [2, 1, 0], sizes = [16, 16, 64], strides = [1, 1, 1]} : vector<18x18x64xbf16> to vector<16x16x64xbf16>
    %33 = vector.shape_cast %32 : vector<16x16x64xbf16> to vector<256x64xbf16>
    %34 = vector.extract_strided_slice %17 {offsets = [2, 2, 0], sizes = [16, 16, 64], strides = [1, 1, 1]} : vector<18x18x64xbf16> to vector<16x16x64xbf16>
    %35 = vector.shape_cast %34 : vector<16x16x64xbf16> to vector<256x64xbf16>
    %36 = tpu.concatenate %19, %21, %23, %25, %27, %29, %31, %33, %35 in 1 : vector<256x64xbf16>, vector<256x64xbf16>, vector<256x64xbf16>, vector<256x64xbf16>, vector<256x64xbf16>, vector<256x64xbf16>, vector<256x64xbf16>, vector<256x64xbf16>, vector<256x64xbf16> -> vector<256x576xbf16>
    %c0_9 = arith.constant 0 : index
    %c0_10 = arith.constant 0 : index
    %37 = vector.load %arg4[%c0_9, %c0_10] : memref<576x96xbf16, #tpu.memory_space<vmem>>, vector<576x96xbf16>
    %cst_11 = arith.constant dense<0.000000e+00> : vector<256x96xf32>
    %38 = tpu.matmul %36, %37, %cst_11 {dimension_numbers = #tpu.dot_dimension_numbers<[1], [0], [0], [1], [0, 0, 1, 1], [], []>} : vector<256x576xbf16>, vector<576x96xbf16>, vector<256x96xf32> -> vector<256x96xf32>
    %c0_12 = arith.constant 0 : index
    %c0_13 = arith.constant 0 : index
    %39 = vector.load %arg5[%c0_12, %c0_13] : memref<1x96xf32, #tpu.memory_space<vmem>>, vector<1x96xf32>
    %40 = vector.broadcast %39 : vector<1x96xf32> to vector<256x96xf32>
    %41 = arith.addf %38, %40 : vector<256x96xf32>
    %cst_14 = arith.constant 0.000000e+00 : f32
    %42 = vector.broadcast %cst_14 : f32 to vector<256x96xf32>
    %43 = arith.maximumf %41, %42 : vector<256x96xf32>
    %44 = vector.extract_strided_slice %43 {offsets = [0, 0], sizes = [256, 48], strides = [1, 1]} : vector<256x96xf32> to vector<256x48xf32>
    %45 = vector.extract_strided_slice %43 {offsets = [0, 48], sizes = [256, 48], strides = [1, 1]} : vector<256x96xf32> to vector<256x48xf32>
    %46 = arith.truncf %45 : vector<256x48xf32> to vector<256x48xbf16>
    %47 = vector.shape_cast %46 : vector<256x48xbf16> to vector<16x16x48xbf16>
    %cst_15 = arith.constant 0.000000e+00 : bf16
    %48 = vector.broadcast %cst_15 : bf16 to vector<1x16x48xbf16>
    %cst_16 = arith.constant 0.000000e+00 : bf16
    %49 = vector.broadcast %cst_16 : bf16 to vector<18x1x48xbf16>
    %50 = tpu.concatenate %48, %47, %48 in 0 : vector<1x16x48xbf16>, vector<16x16x48xbf16>, vector<1x16x48xbf16> -> vector<18x16x48xbf16>
    %51 = tpu.concatenate %49, %50, %49 in 1 : vector<18x1x48xbf16>, vector<18x16x48xbf16>, vector<18x1x48xbf16> -> vector<18x18x48xbf16>
    %52 = vector.extract_strided_slice %51 {offsets = [0, 0, 0], sizes = [16, 16, 48], strides = [1, 1, 1]} : vector<18x18x48xbf16> to vector<16x16x48xbf16>
    %53 = vector.shape_cast %52 : vector<16x16x48xbf16> to vector<256x48xbf16>
    %54 = vector.extract_strided_slice %51 {offsets = [0, 1, 0], sizes = [16, 16, 48], strides = [1, 1, 1]} : vector<18x18x48xbf16> to vector<16x16x48xbf16>
    %55 = vector.shape_cast %54 : vector<16x16x48xbf16> to vector<256x48xbf16>
    %56 = vector.extract_strided_slice %51 {offsets = [0, 2, 0], sizes = [16, 16, 48], strides = [1, 1, 1]} : vector<18x18x48xbf16> to vector<16x16x48xbf16>
    %57 = vector.shape_cast %56 : vector<16x16x48xbf16> to vector<256x48xbf16>
    %58 = vector.extract_strided_slice %51 {offsets = [1, 0, 0], sizes = [16, 16, 48], strides = [1, 1, 1]} : vector<18x18x48xbf16> to vector<16x16x48xbf16>
    %59 = vector.shape_cast %58 : vector<16x16x48xbf16> to vector<256x48xbf16>
    %60 = vector.extract_strided_slice %51 {offsets = [1, 1, 0], sizes = [16, 16, 48], strides = [1, 1, 1]} : vector<18x18x48xbf16> to vector<16x16x48xbf16>
    %61 = vector.shape_cast %60 : vector<16x16x48xbf16> to vector<256x48xbf16>
    %62 = vector.extract_strided_slice %51 {offsets = [1, 2, 0], sizes = [16, 16, 48], strides = [1, 1, 1]} : vector<18x18x48xbf16> to vector<16x16x48xbf16>
    %63 = vector.shape_cast %62 : vector<16x16x48xbf16> to vector<256x48xbf16>
    %64 = vector.extract_strided_slice %51 {offsets = [2, 0, 0], sizes = [16, 16, 48], strides = [1, 1, 1]} : vector<18x18x48xbf16> to vector<16x16x48xbf16>
    %65 = vector.shape_cast %64 : vector<16x16x48xbf16> to vector<256x48xbf16>
    %66 = vector.extract_strided_slice %51 {offsets = [2, 1, 0], sizes = [16, 16, 48], strides = [1, 1, 1]} : vector<18x18x48xbf16> to vector<16x16x48xbf16>
    %67 = vector.shape_cast %66 : vector<16x16x48xbf16> to vector<256x48xbf16>
    %68 = vector.extract_strided_slice %51 {offsets = [2, 2, 0], sizes = [16, 16, 48], strides = [1, 1, 1]} : vector<18x18x48xbf16> to vector<16x16x48xbf16>
    %69 = vector.shape_cast %68 : vector<16x16x48xbf16> to vector<256x48xbf16>
    %70 = tpu.concatenate %53, %55, %57, %59, %61, %63, %65, %67, %69 in 1 : vector<256x48xbf16>, vector<256x48xbf16>, vector<256x48xbf16>, vector<256x48xbf16>, vector<256x48xbf16>, vector<256x48xbf16>, vector<256x48xbf16>, vector<256x48xbf16>, vector<256x48xbf16> -> vector<256x432xbf16>
    %c0_17 = arith.constant 0 : index
    %c0_18 = arith.constant 0 : index
    %71 = vector.load %arg6[%c0_17, %c0_18] : memref<432x48xbf16, #tpu.memory_space<vmem>>, vector<432x48xbf16>
    %cst_19 = arith.constant dense<0.000000e+00> : vector<256x48xf32>
    %72 = tpu.matmul %70, %71, %cst_19 {dimension_numbers = #tpu.dot_dimension_numbers<[1], [0], [0], [1], [0, 0, 1, 1], [], []>} : vector<256x432xbf16>, vector<432x48xbf16>, vector<256x48xf32> -> vector<256x48xf32>
    %c0_20 = arith.constant 0 : index
    %c0_21 = arith.constant 0 : index
    %73 = vector.load %arg7[%c0_20, %c0_21] : memref<1x48xf32, #tpu.memory_space<vmem>>, vector<1x48xf32>
    %74 = vector.broadcast %73 : vector<1x48xf32> to vector<256x48xf32>
    %75 = arith.addf %72, %74 : vector<256x48xf32>
    %cst_22 = arith.constant 0.000000e+00 : f32
    %76 = vector.broadcast %cst_22 : f32 to vector<256x48xf32>
    %77 = arith.maximumf %75, %76 : vector<256x48xf32>
    %78 = vector.extract_strided_slice %3 {offsets = [0, 128], sizes = [256, 48], strides = [1, 1]} : vector<256x192xf32> to vector<256x48xf32>
    %79 = vector.shape_cast %78 : vector<256x48xf32> to vector<16x16x48xf32>
    %cst_23 = arith.constant 0.000000e+00 : f32
    %80 = vector.broadcast %cst_23 : f32 to vector<1x16x48xf32>
    %81 = tpu.concatenate %80, %79, %80 in 0 : vector<1x16x48xf32>, vector<16x16x48xf32>, vector<1x16x48xf32> -> vector<18x16x48xf32>
    %82 = vector.extract_strided_slice %81 {offsets = [0, 0, 0], sizes = [16, 16, 48], strides = [1, 1, 1]} : vector<18x16x48xf32> to vector<16x16x48xf32>
    %83 = vector.extract_strided_slice %81 {offsets = [1, 0, 0], sizes = [16, 16, 48], strides = [1, 1, 1]} : vector<18x16x48xf32> to vector<16x16x48xf32>
    %84 = arith.addf %82, %83 : vector<16x16x48xf32>
    %85 = vector.extract_strided_slice %81 {offsets = [2, 0, 0], sizes = [16, 16, 48], strides = [1, 1, 1]} : vector<18x16x48xf32> to vector<16x16x48xf32>
    %86 = arith.addf %84, %85 : vector<16x16x48xf32>
    %cst_24 = arith.constant 0.000000e+00 : f32
    %87 = vector.broadcast %cst_24 : f32 to vector<16x1x48xf32>
    %88 = tpu.concatenate %87, %86, %87 in 1 : vector<16x1x48xf32>, vector<16x16x48xf32>, vector<16x1x48xf32> -> vector<16x18x48xf32>
    %89 = vector.extract_strided_slice %88 {offsets = [0, 0, 0], sizes = [16, 16, 48], strides = [1, 1, 1]} : vector<16x18x48xf32> to vector<16x16x48xf32>
    %90 = vector.extract_strided_slice %88 {offsets = [0, 1, 0], sizes = [16, 16, 48], strides = [1, 1, 1]} : vector<16x18x48xf32> to vector<16x16x48xf32>
    %91 = arith.addf %89, %90 : vector<16x16x48xf32>
    %92 = vector.extract_strided_slice %88 {offsets = [0, 2, 0], sizes = [16, 16, 48], strides = [1, 1, 1]} : vector<16x18x48xf32> to vector<16x16x48xf32>
    %93 = arith.addf %91, %92 : vector<16x16x48xf32>
    %c0_25 = arith.constant 0 : index
    %c0_26 = arith.constant 0 : index
    %c0_27 = arith.constant 0 : index
    %94 = vector.load %arg9[%c0_25, %c0_26, %c0_27] : memref<16x16x1xf32, #tpu.memory_space<vmem>>, vector<16x16x1xf32>
    %95 = vector.broadcast %94 : vector<16x16x1xf32> to vector<16x16x48xf32>
    %96 = arith.mulf %93, %95 : vector<16x16x48xf32>
    %97 = vector.shape_cast %96 : vector<16x16x48xf32> to vector<256x48xf32>
    %c0_28 = arith.constant 0 : index
    %c0_29 = arith.constant 0 : index
    %98 = vector.load %arg8[%c0_28, %c0_29] : memref<1x48xf32, #tpu.memory_space<vmem>>, vector<1x48xf32>
    %99 = vector.broadcast %98 : vector<1x48xf32> to vector<256x48xf32>
    %100 = arith.addf %97, %99 : vector<256x48xf32>
    %cst_30 = arith.constant 0.000000e+00 : f32
    %101 = vector.broadcast %cst_30 : f32 to vector<256x48xf32>
    %102 = arith.maximumf %100, %101 : vector<256x48xf32>
    %103 = tpu.concatenate %10, %44, %77, %102 in 1 : vector<256x48xf32>, vector<256x48xf32>, vector<256x48xf32>, vector<256x48xf32> -> vector<256x192xf32>
    %c0_31 = arith.constant 0 : index
    %c0_32 = arith.constant 0 : index
    %c0_33 = arith.constant 0 : index
    %104 = vector.load %arg10[%c0_31, %c0_32, %c0_33] : memref<1x256x192xf32, #tpu.memory_space<vmem>>, vector<1x256x192xf32>
    %105 = vector.shape_cast %104 : vector<1x256x192xf32> to vector<256x192xf32>
    %106 = vector.shape_cast %103 : vector<256x192xf32> to vector<1x256x192xf32>
    tpu.vector_store %arg10[%c0_31, %c0_32, %c0_33], %106 {strides = array<i32>} : memref<1x256x192xf32, #tpu.memory_space<vmem>>, vector<1x256x192xf32>,
    return
  }
  func.func @transform_0(%arg0: i32) -> (i32, i32, i32) {
    %c0_i32 = arith.constant 0 : i32
    %c0_i32_0 = arith.constant 0 : i32
    %c0_i32_1 = arith.constant 0 : i32
    return %arg0, %c0_i32, %c0_i32_0 : i32, i32, i32
  }
  func.func @transform_1(%arg0: i32) -> (i32, i32) {
    %c0_i32 = arith.constant 0 : i32
    %c0_i32_0 = arith.constant 0 : i32
    %c0_i32_1 = arith.constant 0 : i32
    return %c0_i32, %c0_i32_0 : i32, i32
  }
  func.func @transform_2(%arg0: i32) -> (i32, i32) {
    %c0_i32 = arith.constant 0 : i32
    %c0_i32_0 = arith.constant 0 : i32
    %c0_i32_1 = arith.constant 0 : i32
    return %c0_i32, %c0_i32_0 : i32, i32
  }
  func.func @transform_3(%arg0: i32) -> (i32, i32) {
    %c0_i32 = arith.constant 0 : i32
    %c0_i32_0 = arith.constant 0 : i32
    %c0_i32_1 = arith.constant 0 : i32
    return %c0_i32, %c0_i32_0 : i32, i32
  }
  func.func @transform_4(%arg0: i32) -> (i32, i32) {
    %c0_i32 = arith.constant 0 : i32
    %c0_i32_0 = arith.constant 0 : i32
    %c0_i32_1 = arith.constant 0 : i32
    return %c0_i32, %c0_i32_0 : i32, i32
  }
  func.func @transform_5(%arg0: i32) -> (i32, i32) {
    %c0_i32 = arith.constant 0 : i32
    %c0_i32_0 = arith.constant 0 : i32
    %c0_i32_1 = arith.constant 0 : i32
    return %c0_i32, %c0_i32_0 : i32, i32
  }
  func.func @transform_6(%arg0: i32) -> (i32, i32) {
    %c0_i32 = arith.constant 0 : i32
    %c0_i32_0 = arith.constant 0 : i32
    %c0_i32_1 = arith.constant 0 : i32
    return %c0_i32, %c0_i32_0 : i32, i32
  }
  func.func @transform_7(%arg0: i32) -> (i32, i32) {
    %c0_i32 = arith.constant 0 : i32
    %c0_i32_0 = arith.constant 0 : i32
    %c0_i32_1 = arith.constant 0 : i32
    return %c0_i32, %c0_i32_0 : i32, i32
  }
  func.func @transform_8(%arg0: i32) -> (i32, i32, i32) {
    %c0_i32 = arith.constant 0 : i32
    %c0_i32_0 = arith.constant 0 : i32
    %c0_i32_1 = arith.constant 0 : i32
    %c0_i32_2 = arith.constant 0 : i32
    return %c0_i32, %c0_i32_0, %c0_i32_1 : i32, i32, i32
  }
  func.func @transform_9(%arg0: i32) -> (i32, i32, i32) {
    %c0_i32 = arith.constant 0 : i32
    %c0_i32_0 = arith.constant 0 : i32
    %c0_i32_1 = arith.constant 0 : i32
    return %arg0, %c0_i32, %c0_i32_0 : i32, i32, i32
  }
}

</mosaic_0001>

<llo_original>
// kernel: inception_a_forward.1
$region0: #{inception_a_forward.1}
  #allocation0 [shape = 'u32[]', space=smem, size = 0x4, offset = 0x4, fixed_abs, tag = 'smem constant byte address 0x4 - core index']
  #allocation1 [shape = 'u32[144,128]{1,0:T(1,128)}', space=vmem, size = 0x12000, scoped, tag = 'internal scratch']
  %s0 = inlined_call_operand.vmem [shape: bf16[2,256,4], index: 0, kind: input, shape index: {}]
  %s1 = inlined_call_operand.vmem [shape: bf16[4,192], index: 1, kind: input, shape index: {}]
  %s2 = inlined_call_operand.vmem [shape: f32[1,128], index: 2, kind: input, shape index: {}]
  %s3 = inlined_call_operand.vmem [shape: bf16[576,96], index: 3, kind: input, shape index: {}]
  %s4 = inlined_call_operand.vmem [shape: f32[1,96], index: 4, kind: input, shape index: {}]
  %s5 = inlined_call_operand.vmem [shape: bf16[432,48], index: 5, kind: input, shape index: {}]
  %s6 = inlined_call_operand.vmem [shape: f32[1,48], index: 6, kind: input, shape index: {}]
  %s7 = inlined_call_operand.vmem [shape: f32[1,48], index: 7, kind: input, shape index: {}]
  %s8 = inlined_call_operand.vmem [shape: f32[16,16,1], index: 8, kind: input, shape index: {}]
  %s9 = inlined_call_operand.hbm [shape: f32[2,256,192], index: 9, kind: output, shape index: {}]
  %s10 = sld [smem:[#allocation0]]
  $region69: #{inception_a_forward.1} parent=0
    _
  %s12 = ssub.s32 1, %s10
  %s13 = scalar_select 0, %s12, %s10
  $region1: #{inception_a_forward.1} parent=0
    #allocation2 [shape = 'u8[524288]{0}', space=vmem, size = 0x80000, scoped, tag = 'output window, operand 0']
    #allocation3 [shape = 's32[2]{0}', space=sflag, size = 0x8, scoped, tag = 'scoped memory for inception_a_forward.1']
    %14 = vsyncpa [#allocation3], 0
    %s15 = scalar_lea.sflag [#allocation3], 1
    %16 = vsyncpa %s15, 0
    loop: start=0, step=1, limit=4
    $region2: #{inception_a_forward.1} parent=1 // loop_pre_header
      _
    $region3: #{inception_a_forward.1} parent=1 // loop_header
      %s18 = sphi 0, %s22
      %p19 = scmp.ge.s32.totalorder %s18, 4
      %s28 = sphi 0, %s30
      %s31 = sphi 0, %s28
      %s32 = sphi 0, %s31
      %s48 = sphi 0, %s32
      %s52 = sphi 0, %s52
      %s54 = sphi 0, %s52
      %s55 = sphi 0, %s54
      %s69 = sphi 0, %s55
      %s73 = sphi 0, %s73
      %s75 = sphi 0, %s73
      %s76 = sphi 0, %s75
      %s90 = sphi 0, %s76
      %s94 = sphi 0, %s94
      %s96 = sphi 0, %s94
      %s97 = sphi 0, %s96
      %s111 = sphi 0, %s97
      %s115 = sphi 0, %s115
      %s117 = sphi 0, %s115
      %s118 = sphi 0, %s117
      %s132 = sphi 0, %s118
      %s136 = sphi 0, %s136
      %s138 = sphi 0, %s136
      %s139 = sphi 0, %s138
      %s153 = sphi 0, %s139
      %s157 = sphi 0, %s157
      %s159 = sphi 0, %s157
      %s160 = sphi 0, %s159
      %s174 = sphi 0, %s160
      %s178 = sphi 0, %s178
      %s180 = sphi 0, %s178
      %s181 = sphi 0, %s180
      %s195 = sphi 0, %s181
      %s199 = sphi 0, %s199
      %s201 = sphi 0, %s199
      %s202 = sphi 0, %s201
      %s216 = sphi 0, %s202
      %s222 = sphi 0, %s224
      %s225 = sphi 0, %s222
      %s226 = sphi 0, %s225
      %s242 = sphi 0, %s226
    $region4: #{inception_a_forward.1} parent=1 // loop_header_branch
      %21 = sbr.rel (%p19) target = $region8
    $region5: #{inception_a_forward.1} parent=1 // loop_body
      %s23 = ssub.s32 %s18, 1
      %s24 = ssub.s32 %s18, 2
      %s25 = sadd.s32 %s18, 1
      %s26 = ssub.s32 %s18, %s25
      %p27 = scmp.eq.s32.totalorder %s26, 0
      %s29 = sadd.s32 %s28, 1
      %s30 = scalar_select %p27, %s28, %s29
      %p33 = pneg %p27
      %p34 = scmp.eq.s32.totalorder %s18, 1
      %p35 = por %p33, %p34
      %p36 = scmp.ne.s32.totalorder %s28, %s31
      %p37 = scmp.eq.s32.totalorder %s18, 0
      %p38 = por %p36, %p37
      %p39 = scmp.ne.s32.totalorder %s28, %s31
      %p40 = scmp.eq.s32.totalorder %s23, 1
      %p41 = por %p39, %p40
      %p42 = scmp.ne.s32.totalorder %s31, %s32
      %p43 = scmp.eq.s32.totalorder %s23, 0
      %p44 = por %p42, %p43
      %p45 = scmp.ne.s32.totalorder %s31, %s32
      %p46 = scmp.eq.s32.totalorder %s24, 1
      %p47 = por %p45, %p46
      %p49 = scmp.ne.s32.totalorder %s32, %s48
      %p50 = scmp.eq.s32.totalorder %s24, 0
      %p51 = por %p49, %p50
      %s53 = sadd.s32 %s52, 1
      %p56 = scmp.eq.s32.totalorder %s18, 1
      %p57 = scmp.ne.s32.totalorder %s52, %s54
      %p58 = scmp.eq.s32.totalorder %s18, 0
      %p59 = por %p57, %p58
      %p60 = scmp.ne.s32.totalorder %s52, %s54
      %p61 = scmp.eq.s32.totalorder %s23, 1
      %p62 = por %p60, %p61
      %p63 = scmp.ne.s32.totalorder %s54, %s55
      %p64 = scmp.eq.s32.totalorder %s23, 0
      %p65 = por %p63, %p64
      %p66 = scmp.ne.s32.totalorder %s54, %s55
      %p67 = scmp.eq.s32.totalorder %s24, 1
      %p68 = por %p66, %p67
      %p70 = scmp.ne.s32.totalorder %s55, %s69
      %p71 = scmp.eq.s32.totalorder %s24, 0
      %p72 = por %p70, %p71
      %s74 = sadd.s32 %s73, 1
      %p77 = scmp.eq.s32.totalorder %s18, 1
      %p78 = scmp.ne.s32.totalorder %s73, %s75
      %p79 = scmp.eq.s32.totalorder %s18, 0
      %p80 = por %p78, %p79
      %p81 = scmp.ne.s32.totalorder %s73, %s75
      %p82 = scmp.eq.s32.totalorder %s23, 1
      %p83 = por %p81, %p82
      %p84 = scmp.ne.s32.totalorder %s75, %s76
      %p85 = scmp.eq.s32.totalorder %s23, 0
      %p86 = por %p84, %p85
      %p87 = scmp.ne.s32.totalorder %s75, %s76
      %p88 = scmp.eq.s32.totalorder %s24, 1
      %p89 = por %p87, %p88
      %p91 = scmp.ne.s32.totalorder %s76, %s90
      %p92 = scmp.eq.s32.totalorder %s24, 0
      %p93 = por %p91, %p92
      %s95 = sadd.s32 %s94, 1
      %p98 = scmp.eq.s32.totalorder %s18, 1
      %p99 = scmp.ne.s32.totalorder %s94, %s96
      %p100 = scmp.eq.s32.totalorder %s18, 0
      %p101 = por %p99, %p100
      %p102 = scmp.ne.s32.totalorder %s94, %s96
      %p103 = scmp.eq.s32.totalorder %s23, 1
      %p104 = por %p102, %p103
      %p105 = scmp.ne.s32.totalorder %s96, %s97
      %p106 = scmp.eq.s32.totalorder %s23, 0
      %p107 = por %p105, %p106
      %p108 = scmp.ne.s32.totalorder %s96, %s97
      %p109 = scmp.eq.s32.totalorder %s24, 1
      %p110 = por %p108, %p109
      %p112 = scmp.ne.s32.totalorder %s97, %s111
      %p113 = scmp.eq.s32.totalorder %s24, 0
      %p114 = por %p112, %p113
      %s116 = sadd.s32 %s115, 1
      %p119 = scmp.eq.s32.totalorder %s18, 1
      %p120 = scmp.ne.s32.totalorder %s115, %s117
      %p121 = scmp.eq.s32.totalorder %s18, 0
      %p122 = por %p120, %p121
      %p123 = scmp.ne.s32.totalorder %s115, %s117
      %p124 = scmp.eq.s32.totalorder %s23, 1
      %p125 = por %p123, %p124
      %p126 = scmp.ne.s32.totalorder %s117, %s118
      %p127 = scmp.eq.s32.totalorder %s23, 0
      %p128 = por %p126, %p127
      %p129 = scmp.ne.s32.totalorder %s117, %s118
      %p130 = scmp.eq.s32.totalorder %s24, 1
      %p131 = por %p129, %p130
      %p133 = scmp.ne.s32.totalorder %s118, %s132
      %p134 = scmp.eq.s32.totalorder %s24, 0
      %p135 = por %p133, %p134
      %s137 = sadd.s32 %s136, 1
      %p140 = scmp.eq.s32.totalorder %s18, 1
      %p141 = scmp.ne.s32.totalorder %s136, %s138
      %p142 = scmp.eq.s32.totalorder %s18, 0
      %p143 = por %p141, %p142
      %p144 = scmp.ne.s32.totalorder %s136, %s138
      %p145 = scmp.eq.s32.totalorder %s23, 1
      %p146 = por %p144, %p145
      %p147 = scmp.ne.s32.totalorder %s138, %s139
      %p148 = scmp.eq.s32.totalorder %s23, 0
      %p149 = por %p147, %p148
      %p150 = scmp.ne.s32.totalorder %s138, %s139
      %p151 = scmp.eq.s32.totalorder %s24, 1
      %p152 = por %p150, %p151
      %p154 = scmp.ne.s32.totalorder %s139, %s153
      %p155 = scmp.eq.s32.totalorder %s24, 0
      %p156 = por %p154, %p155
      %s158 = sadd.s32 %s157, 1
      %p161 = scmp.eq.s32.totalorder %s18, 1
      %p162 = scmp.ne.s32.totalorder %s157, %s159
      %p163 = scmp.eq.s32.totalorder %s18, 0
      %p164 = por %p162, %p163
      %p165 = scmp.ne.s32.totalorder %s157, %s159
      %p166 = scmp.eq.s32.totalorder %s23, 1
      %p167 = por %p165, %p166
      %p168 = scmp.ne.s32.totalorder %s159, %s160
      %p169 = scmp.eq.s32.totalorder %s23, 0
      %p170 = por %p168, %p169
      %p171 = scmp.ne.s32.totalorder %s159, %s160
      %p172 = scmp.eq.s32.totalorder %s24, 1
      %p173 = por %p171, %p172
      %p175 = scmp.ne.s32.totalorder %s160, %s174
      %p176 = scmp.eq.s32.totalorder %s24, 0
      %p177 = por %p175, %p176
      %s179 = sadd.s32 %s178, 1
      %p182 = scmp.eq.s32.totalorder %s18, 1
      %p183 = scmp.ne.s32.totalorder %s178, %s180
      %p184 = scmp.eq.s32.totalorder %s18, 0
      %p185 = por %p183, %p184
      %p186 = scmp.ne.s32.totalorder %s178, %s180
      %p187 = scmp.eq.s32.totalorder %s23, 1
      %p188 = por %p186, %p187
      %p189 = scmp.ne.s32.totalorder %s180, %s181
      %p190 = scmp.eq.s32.totalorder %s23, 0
      %p191 = por %p189, %p190
      %p192 = scmp.ne.s32.totalorder %s180, %s181
      %p193 = scmp.eq.s32.totalorder %s24, 1
      %p194 = por %p192, %p193
      %p196 = scmp.ne.s32.totalorder %s181, %s195
      %p197 = scmp.eq.s32.totalorder %s24, 0
      %p198 = por %p196, %p197
      %s200 = sadd.s32 %s199, 1
      %p203 = scmp.eq.s32.totalorder %s18, 1
      %p204 = scmp.ne.s32.totalorder %s199, %s201
      %p205 = scmp.eq.s32.totalorder %s18, 0
      %p206 = por %p204, %p205
      %p207 = scmp.ne.s32.totalorder %s199, %s201
      %p208 = scmp.eq.s32.totalorder %s23, 1
      %p209 = por %p207, %p208
      %p210 = scmp.ne.s32.totalorder %s201, %s202
      %p211 = scmp.eq.s32.totalorder %s23, 0
      %p212 = por %p210, %p211
      %p213 = scmp.ne.s32.totalorder %s201, %s202
      %p214 = scmp.eq.s32.totalorder %s24, 1
      %p215 = por %p213, %p214
      %p217 = scmp.ne.s32.totalorder %s202, %s216
      %p218 = scmp.eq.s32.totalorder %s24, 0
      %p219 = por %p217, %p218
      %s220 = ssub.s32 %s18, %s25
      %p221 = scmp.eq.s32.totalorder %s220, 0
      %s223 = sadd.s32 %s222, 1
      %s224 = scalar_select %p221, %s222, %s223
      %p227 = pneg %p221
      %p228 = scmp.eq.s32.totalorder %s18, 1
      %p229 = por %p227, %p228
      %p230 = scmp.ne.s32.totalorder %s222, %s225
      %p231 = scmp.eq.s32.totalorder %s18, 0
      %p232 = por %p230, %p231
      %p233 = scmp.ne.s32.totalorder %s222, %s225
      %p234 = scmp.eq.s32.totalorder %s23, 1
      %p235 = por %p233, %p234
      %p236 = scmp.ne.s32.totalorder %s225, %s226
      %p237 = scmp.eq.s32.totalorder %s23, 0
      %p238 = por %p236, %p237
      %p239 = scmp.ne.s32.totalorder %s225, %s226
      %p240 = scmp.eq.s32.totalorder %s24, 1
      %p241 = por %p239, %p240
      %p243 = scmp.ne.s32.totalorder %s226, %s242
      %p244 = scmp.eq.s32.totalorder %s24, 0
      %p245 = por %p243, %p244
      %p246 = scmp.le.s32.totalorder 1, %s18
      %p247 = scmp.lt.s32.totalorder %s18, 3
      %p248 = pnand %p246, %p247
      %p249 = pneg %p248
      // Predicated region
      $region9: #{inception_a_forward.1} parent=5 // pred_check
        _
      $region10: #{inception_a_forward.1} parent=5 // pred_check_branch
        %251 = sbr.rel (%p248) target = $region12
      $region11: #{inception_a_forward.1} parent=5 // pred_region
        %s252 = ssub.s32 %s18, 1
        // Predicated region
        $region13: #{inception_a_forward.1} parent=11 // pred_check
          %p253 = pneg %p65
        $region14: #{inception_a_forward.1} parent=11 // pred_check_branch
          %255 = sbr.rel (%p253) target = $region16
        $region15: #{inception_a_forward.1} parent=11 // pred_region
          _
        $region16: #{inception_a_forward.1} parent=11 // pred_fallthru
          _
        // Predicated region
        $region17: #{inception_a_forward.1} parent=11 // pred_check
          %p256 = pneg %p86
        $region18: #{inception_a_forward.1} parent=11 // pred_check_branch
          %258 = sbr.rel (%p256) target = $region20
        $region19: #{inception_a_forward.1} parent=11 // pred_region
          _
        $region20: #{inception_a_forward.1} parent=11 // pred_fallthru
          _
        // Predicated region
        $region21: #{inception_a_forward.1} parent=11 // pred_check
          %p259 = pneg %p107
        $region22: #{inception_a_forward.1} parent=11 // pred_check_branch
          %261 = sbr.rel (%p259) target = $region24
        $region23: #{inception_a_forward.1} parent=11 // pred_region
          _
        $region24: #{inception_a_forward.1} parent=11 // pred_fallthru
          _
        // Predicated region
        $region25: #{inception_a_forward.1} parent=11 // pred_check
          %p262 = pneg %p128
        $region26: #{inception_a_forward.1} parent=11 // pred_check_branch
          %264 = sbr.rel (%p262) target = $region28
        $region27: #{inception_a_forward.1} parent=11 // pred_region
          _
        $region28: #{inception_a_forward.1} parent=11 // pred_fallthru
          _
        // Predicated region
        $region29: #{inception_a_forward.1} parent=11 // pred_check
          %p265 = pneg %p149
        $region30: #{inception_a_forward.1} parent=11 // pred_check_branch
          %267 = sbr.rel (%p265) target = $region32
        $region31: #{inception_a_forward.1} parent=11 // pred_region
          _
        $region32: #{inception_a_forward.1} parent=11 // pred_fallthru
          _
        // Predicated region
        $region33: #{inception_a_forward.1} parent=11 // pred_check
          %p268 = pneg %p170
        $region34: #{inception_a_forward.1} parent=11 // pred_check_branch
          %270 = sbr.rel (%p268) target = $region36
        $region35: #{inception_a_forward.1} parent=11 // pred_region
          _
        $region36: #{inception_a_forward.1} parent=11 // pred_fallthru
          _
        // Predicated region
        $region37: #{inception_a_forward.1} parent=11 // pred_check
          %p271 = pneg %p191
        $region38: #{inception_a_forward.1} parent=11 // pred_check_branch
          %273 = sbr.rel (%p271) target = $region40
        $region39: #{inception_a_forward.1} parent=11 // pred_region
          _
        $region40: #{inception_a_forward.1} parent=11 // pred_fallthru
          _
        // Predicated region
        $region41: #{inception_a_forward.1} parent=11 // pred_check
          %p274 = pneg %p212
        $region42: #{inception_a_forward.1} parent=11 // pred_check_branch
          %276 = sbr.rel (%p274) target = $region44
        $region43: #{inception_a_forward.1} parent=11 // pred_region
          _
        $region44: #{inception_a_forward.1} parent=11 // pred_fallthru
          _
      $region12: #{inception_a_forward.1} parent=5 // pred_fallthru
        _
      %p277 = scmp.lt.s32.totalorder %s18, 2
      // Predicated region
      $region45: #{inception_a_forward.1} parent=5 // pred_check
        %p278 = pneg %p277
      $region46: #{inception_a_forward.1} parent=5 // pred_check_branch
        %280 = sbr.rel (%p278) target = $region48
      $region47: #{inception_a_forward.1} parent=5 // pred_region
        // Predicated region
        $region49: #{inception_a_forward.1} parent=47 // pred_check
          %p281 = pneg %p38
        $region50: #{inception_a_forward.1} parent=47 // pred_check_branch
          %283 = sbr.rel (%p281) target = $region52
        $region51: #{inception_a_forward.1} parent=47 // pred_region
          %p284 = scmp.lt.s32.totalorder %s18, 1
          %s285 = scalar_select %p284, %s18, 1
          %s286 = smul.addr %s285, 32
          %s287 = smul.addr %s286, 4
          %s288 = scalar_lea.vmem %s0, %s287
        $region52: #{inception_a_forward.1} parent=47 // pred_fallthru
          _
      $region48: #{inception_a_forward.1} parent=5 // pred_fallthru
        _
      %p289 = scmp.le.s32.totalorder 1, %s18
      %p290 = scmp.lt.s32.totalorder %s18, 3
      %p291 = pnand %p289, %p290
      %p292 = pneg %p291
      // Predicated region
      $region53: #{inception_a_forward.1} parent=5 // pred_check
        _
      $region54: #{inception_a_forward.1} parent=5 // pred_check_branch
        %294 = sbr.rel (%p291) target = $region56
      $region55: #{inception_a_forward.1} parent=5 // pred_region
        %s295 = ssub.s32 %s18, 1
        %p296 = scmp.lt.s32.totalorder %s23, 1
        %s297 = scalar_select %p296, %s23, 1
        %s298 = smul.addr %s297, 32
        %s299 = smul.addr %s298, 4
        %s300 = scalar_lea.vmem %s0, %s299
        %p301 = pneg %p44
        %p302 = pneg %p41
        %p303 = pneg %p65
        %p304 = pneg %p62
        %p305 = pneg %p86
        %p306 = pneg %p83
        %p307 = pneg %p107
        %p308 = pneg %p104
        %p309 = pneg %p128
        %p310 = pneg %p125
        %p311 = pneg %p149
        %p312 = pneg %p146
        %p313 = pneg %p170
        %p314 = pneg %p167
        %p315 = pneg %p191
        %p316 = pneg %p188
        %p317 = pneg %p212
        %p318 = pneg %p209
        %p319 = pneg %p238
        %p320 = pneg %p235
        %s321 = sand.u32 %s225, 1
        %s322 = scalar_lea.sflag [#allocation3], %s321
        %s323 = sand.u32 %s225, 1
        %s324 = smul.addr %s323, 512
        %s325 = scalar_lea.vmem [#allocation2], %s324
        %p326 = scmp.lt.s32.totalorder %s23, 1
        %s327 = scalar_select %p326, %s23, 1
        %s328 = smul.addr %s327, 32
        %s329 = smul.addr %s328, 4
        %s330 = scalar_lea.vmem %s0, %s329
        %v332 = vld [vmem:[%s330] sm:$0xf]
        %v333 = vld [vmem:[%s330 + $0x4] sm:$0xf]
        %v334 = vld [vmem:[%s330 + $0x8] sm:$0xf]
        %v335 = vld [vmem:[%s330 + $0xc] sm:$0xf]
        %v336 = vld [vmem:[%s330 + $0x10] sm:$0xf]
        %v337 = vld [vmem:[%s330 + $0x14] sm:$0xf]
        %v338 = vld [vmem:[%s330 + $0x18] sm:$0xf]
        %v339 = vld [vmem:[%s330 + $0x1c] sm:$0xf]
        %v340 = vld [vmem:[%s330 + $0x20] sm:$0xf]
        %v341 = vld [vmem:[%s330 + $0x24] sm:$0xf]
        %v342 = vld [vmem:[%s330 + $0x28] sm:$0xf]
        %v343 = vld [vmem:[%s330 + $0x2c] sm:$0xf]
        %v344 = vld [vmem:[%s330 + $0x30] sm:$0xf]
        %v345 = vld [vmem:[%s330 + $0x34] sm:$0xf]
        %v346 = vld [vmem:[%s330 + $0x38] sm:$0xf]
        %v347 = vld [vmem:[%s330 + $0x3c] sm:$0xf]
        %v348 = vld [vmem:[%s330 + $0x40] sm:$0xf]
        %v349 = vld [vmem:[%s330 + $0x44] sm:$0xf]
        %v350 = vld [vmem:[%s330 + $0x48] sm:$0xf]
        %v351 = vld [vmem:[%s330 + $0x4c] sm:$0xf]
        %v352 = vld [vmem:[%s330 + $0x50] sm:$0xf]
        %v353 = vld [vmem:[%s330 + $0x54] sm:$0xf]
        %v354 = vld [vmem:[%s330 + $0x58] sm:$0xf]
        %v355 = vld [vmem:[%s330 + $0x5c] sm:$0xf]
        %v356 = vld [vmem:[%s330 + $0x60] sm:$0xf]
        %v357 = vld [vmem:[%s330 + $0x64] sm:$0xf]
        %v358 = vld [vmem:[%s330 + $0x68] sm:$0xf]
        %v359 = vld [vmem:[%s330 + $0x6c] sm:$0xf]
        %v360 = vld [vmem:[%s330 + $0x70] sm:$0xf]
        %v361 = vld [vmem:[%s330 + $0x74] sm:$0xf]
        %v362 = vld [vmem:[%s330 + $0x78] sm:$0xf]
        %v363 = vld [vmem:[%s330 + $0x7c] sm:$0xf]
        %v364 = vld [vmem:[%s1] sm:$0xf]
        %v397 = vunpack.c.l.b16 %v332
        %v398 = vunpack.c.l.b16 %v333
        %v399 = vunpack.c.l.b16 %v334
        %v400 = vunpack.c.l.b16 %v335
        %v401 = vunpack.c.l.b16 %v336
        %v402 = vunpack.c.l.b16 %v337
        %v403 = vunpack.c.l.b16 %v338
        %v404 = vunpack.c.l.b16 %v339
        %v405 = vunpack.c.l.b16 %v340
        %v406 = vunpack.c.l.b16 %v341
        %v407 = vunpack.c.l.b16 %v342
        %v408 = vunpack.c.l.b16 %v343
        %v409 = vunpack.c.l.b16 %v344
        %v410 = vunpack.c.l.b16 %v345
        %v411 = vunpack.c.l.b16 %v346
        %v412 = vunpack.c.l.b16 %v347
        %v413 = vunpack.c.l.b16 %v348
        %v414 = vunpack.c.l.b16 %v349
        %v415 = vunpack.c.l.b16 %v350
        %v416 = vunpack.c.l.b16 %v351
        %v417 = vunpack.c.l.b16 %v352
        %v418 = vunpack.c.l.b16 %v353
        %v419 = vunpack.c.l.b16 %v354
        %v420 = vunpack.c.l.b16 %v355
        %v421 = vunpack.c.l.b16 %v356
        %v422 = vunpack.c.l.b16 %v357
        %v423 = vunpack.c.l.b16 %v358
        %v424 = vunpack.c.l.b16 %v359
        %v425 = vunpack.c.l.b16 %v360
        %v426 = vunpack.c.l.b16 %v361
        %v427 = vunpack.c.l.b16 %v362
        %v428 = vunpack.c.l.b16 %v363
        %v429 = vpack.c.b16 %v398, %v397
        %v430 = vpack.c.b16 %v400, %v399
        %v431 = vpack.c.b16 %v402, %v401
        %v432 = vpack.c.b16 %v404, %v403
        %v433 = vpack.c.b16 %v406, %v405
        %v434 = vpack.c.b16 %v408, %v407
        %v435 = vpack.c.b16 %v410, %v409
        %v436 = vpack.c.b16 %v412, %v411
        %v437 = vpack.c.b16 %v414, %v413
        %v438 = vpack.c.b16 %v416, %v415
        %v439 = vpack.c.b16 %v418, %v417
        %v440 = vpack.c.b16 %v420, %v419
        %v441 = vpack.c.b16 %v422, %v421
        %v442 = vpack.c.b16 %v424, %v423
        %v443 = vpack.c.b16 %v426, %v425
        %v444 = vpack.c.b16 %v428, %v427
        %v447 = vunpack.c.l.s4 1983009808
        %v448 = vunpack.c.0.s8 %v447
        %v449 = vlaneseq
        %v450 = vshrl.u32 %v449, 7
        %v451 = vsub.s32 %v448, %v450
        %v452 = vrot.slane %v364, %v451
        %v453 = vcombine.high %v452, %v452
        %vm454 = vcmask 31744
        %v456 = vsel %vm454, %v429, 0
        %v459 = vsel %vm454, %v430, 0
        %v462 = vsel %vm454, %v431, 0
        %v465 = vsel %vm454, %v432, 0
        %v468 = vsel %vm454, %v433, 0
        %v471 = vsel %vm454, %v434, 0
        %v474 = vsel %vm454, %v435, 0
        %v477 = vsel %vm454, %v436, 0
        %v480 = vsel %vm454, %v437, 0
        %v483 = vsel %vm454, %v438, 0
        %v486 = vsel %vm454, %v439, 0
        %v489 = vsel %vm454, %v440, 0
        %v492 = vsel %vm454, %v441, 0
        %v495 = vsel %vm454, %v442, 0
        %v498 = vsel %vm454, %v443, 0
        %v501 = vsel %vm454, %v444, 0
        %vm503 = vcmask 1041408
        %v505 = vsel %vm503, %v452, 0
        %v508 = vsel %vm503, %v453, 0
        %510 = vmatprep.subr.bf16.mxu0 0
        %511 = vmatpush1.bf16.msra.mxu0 0
        %512 = vmatprep.subr.bf16.mxu0 0
        %513 = vmatpush1.bf16.msra.mxu0 0
        %514 = vmatprep.subr.bf16.mxu0 0
        %515 = vmatpush1.bf16.msra.mxu0 0
        %516 = vmatprep.subr.bf16.mxu0 0
        %517 = vmatpush1.bf16.msra.mxu0 0
        %518 = vmatprep.subr.bf16.mxu0 0
        %519 = vmatpush1.bf16.msra.mxu0 0
        %520 = vmatprep.subr.bf16.mxu0 0
        %521 = vmatpush1.bf16.msra.mxu0 0
        %522 = vmatprep.subr.bf16.mxu0 0
        %523 = vmatpush1.bf16.msra.mxu0 0
        %524 = vmatprep.subr.bf16.mxu0 %v508
        %525 = vmatpush1.bf16.msra.mxu0 %v505
        %526 = vmatprep.subr.bf16.mxu0 0
        %527 = vmatpush2.bf16.msra.mxu0 0
        %528 = vmatprep.subr.bf16.mxu0 0
        %529 = vmatpush2.bf16.msra.mxu0 0
        %530 = vmatprep.subr.bf16.mxu0 0
        %531 = vmatpush2.bf16.msra.mxu0 0
        %532 = vmatprep.subr.bf16.mxu0 0
        %533 = vmatpush2.bf16.msra.mxu0 0
        %534 = vmatprep.subr.bf16.mxu0 0
        %535 = vmatpush2.bf16.msra.mxu0 0
        %536 = vmatprep.subr.bf16.mxu0 0
        %537 = vmatpush2.bf16.msra.mxu0 0
        %538 = vmatprep.subr.bf16.mxu0 0
        %539 = vmatpush2.bf16.msra.mxu0 0
        %540 = vmatprep.subr.bf16.mxu0 0
        %541 = vmatpush2.bf16.msra.mxu0 0
        %542 = vmatprep.mubr.bf16.mxu0 0
        %543 = vmatmul.mubr.bf16.gmra.mxu0 %v456
        %v544 = vpop.f32.mrf.mxu0
        %v545 = vadd.f32 0.0, %v544
        %v546 = vpop.f32.mrf.mxu0
        %v547 = vadd.f32 0.0, %v546
        %v548 = vpop.f32.mrf.mxu0
        %v549 = vadd.f32 0.0, %v548
        %v550 = vpop.f32.mrf.mxu0
        %v551 = vadd.f32 0.0, %v550
        %552 = vmatprep.mubr.bf16.mxu0 0
        %553 = vmatmul.mubr.bf16.gmra.mxu0 %v459
        %v554 = vpop.f32.mrf.mxu0
        %v555 = vadd.f32 0.0, %v554
        %v556 = vpop.f32.mrf.mxu0
        %v557 = vadd.f32 0.0, %v556
        %v558 = vpop.f32.mrf.mxu0
        %v559 = vadd.f32 0.0, %v558
        %v560 = vpop.f32.mrf.mxu0
        %v561 = vadd.f32 0.0, %v560
        %562 = vmatprep.mubr.bf16.mxu0 0
        %563 = vmatmul.mubr.bf16.gmra.mxu0 %v462
        %v564 = vpop.f32.mrf.mxu0
        %v565 = vadd.f32 0.0, %v564
        %v566 = vpop.f32.mrf.mxu0
        %v567 = vadd.f32 0.0, %v566
        %v568 = vpop.f32.mrf.mxu0
        %v569 = vadd.f32 0.0, %v568
        %v570 = vpop.f32.mrf.mxu0
        %v571 = vadd.f32 0.0, %v570
        %572 = vmatprep.mubr.bf16.mxu0 0
        %573 = vmatmul.mubr.bf16.gmra.mxu0 %v465
        %v574 = vpop.f32.mrf.mxu0
        %v575 = vadd.f32 0.0, %v574
        %v576 = vpop.f32.mrf.mxu0
        %v577 = vadd.f32 0.0, %v576
        %v578 = vpop.f32.mrf.mxu0
        %v579 = vadd.f32 0.0, %v578
        %v580 = vpop.f32.mrf.mxu0
        %v581 = vadd.f32 0.0, %v580
        %582 = vmatprep.mubr.bf16.mxu0 0
        %583 = vmatmul.mubr.bf16.gmra.mxu0 %v468
        %v584 = vpop.f32.mrf.mxu0
        %v585 = vadd.f32 0.0, %v584
        %v586 = vpop.f32.mrf.mxu0
        %v587 = vadd.f32 0.0, %v586
        %v588 = vpop.f32.mrf.mxu0
        %v589 = vadd.f32 0.0, %v588
        %v590 = vpop.f32.mrf.mxu0
        %v591 = vadd.f32 0.0, %v590
        %592 = vmatprep.mubr.bf16.mxu0 0
        %593 = vmatmul.mubr.bf16.gmra.mxu0 %v471
        %v594 = vpop.f32.mrf.mxu0
        %v595 = vadd.f32 0.0, %v594
        %v596 = vpop.f32.mrf.mxu0
        %v597 = vadd.f32 0.0, %v596
        %v598 = vpop.f32.mrf.mxu0
        %v599 = vadd.f32 0.0, %v598
        %v600 = vpop.f32.mrf.mxu0
        %v601 = vadd.f32 0.0, %v600
        %602 = vmatprep.mubr.bf16.mxu0 0
        %603 = vmatmul.mubr.bf16.gmra.mxu0 %v474
        %v604 = vpop.f32.mrf.mxu0
        %v605 = vadd.f32 0.0, %v604
        %v606 = vpop.f32.mrf.mxu0
        %v607 = vadd.f32 0.0, %v606
        %v608 = vpop.f32.mrf.mxu0
        %v609 = vadd.f32 0.0, %v608
        %v610 = vpop.f32.mrf.mxu0
        %v611 = vadd.f32 0.0, %v610
        %612 = vmatprep.mubr.bf16.mxu0 0
        %613 = vmatmul.mubr.bf16.gmra.mxu0 %v477
        %v614 = vpop.f32.mrf.mxu0
        %v615 = vadd.f32 0.0, %v614
        %v616 = vpop.f32.mrf.mxu0
        %v617 = vadd.f32 0.0, %v616
        %v618 = vpop.f32.mrf.mxu0
        %v619 = vadd.f32 0.0, %v618
        %v620 = vpop.f32.mrf.mxu0
        %v621 = vadd.f32 0.0, %v620
        %622 = vmatprep.mubr.bf16.mxu0 0
        %623 = vmatmul.mubr.bf16.gmra.mxu0 %v480
        %v624 = vpop.f32.mrf.mxu0
        %v625 = vadd.f32 0.0, %v624
        %v626 = vpop.f32.mrf.mxu0
        %v627 = vadd.f32 0.0, %v626
        %v628 = vpop.f32.mrf.mxu0
        %v629 = vadd.f32 0.0, %v628
        %v630 = vpop.f32.mrf.mxu0
        %v631 = vadd.f32 0.0, %v630
        %632 = vmatprep.mubr.bf16.mxu0 0
        %633 = vmatmul.mubr.bf16.gmra.mxu0 %v483
        %v634 = vpop.f32.mrf.mxu0
        %v635 = vadd.f32 0.0, %v634
        %v636 = vpop.f32.mrf.mxu0
        %v637 = vadd.f32 0.0, %v636
        %v638 = vpop.f32.mrf.mxu0
        %v639 = vadd.f32 0.0, %v638
        %v640 = vpop.f32.mrf.mxu0
        %v641 = vadd.f32 0.0, %v640
        %642 = vmatprep.mubr.bf16.mxu0 0
        %643 = vmatmul.mubr.bf16.gmra.mxu0 %v486
        %v644 = vpop.f32.mrf.mxu0
        %v645 = vadd.f32 0.0, %v644
        %v646 = vpop.f32.mrf.mxu0
        %v647 = vadd.f32 0.0, %v646
        %v648 = vpop.f32.mrf.mxu0
        %v649 = vadd.f32 0.0, %v648
        %v650 = vpop.f32.mrf.mxu0
        %v651 = vadd.f32 0.0, %v650
        %652 = vmatprep.mubr.bf16.mxu0 0
        %653 = vmatmul.mubr.bf16.gmra.mxu0 %v489
        %v654 = vpop.f32.mrf.mxu0
        %v655 = vadd.f32 0.0, %v654
        %v656 = vpop.f32.mrf.mxu0
        %v657 = vadd.f32 0.0, %v656
        %v658 = vpop.f32.mrf.mxu0
        %v659 = vadd.f32 0.0, %v658
        %v660 = vpop.f32.mrf.mxu0
        %v661 = vadd.f32 0.0, %v660
        %662 = vmatprep.mubr.bf16.mxu0 0
        %663 = vmatmul.mubr.bf16.gmra.mxu0 %v492
        %v664 = vpop.f32.mrf.mxu0
        %v665 = vadd.f32 0.0, %v664
        %v666 = vpop.f32.mrf.mxu0
        %v667 = vadd.f32 0.0, %v666
        %v668 = vpop.f32.mrf.mxu0
        %v669 = vadd.f32 0.0, %v668
        %v670 = vpop.f32.mrf.mxu0
        %v671 = vadd.f32 0.0, %v670
        %672 = vmatprep.mubr.bf16.mxu0 0
        %673 = vmatmul.mubr.bf16.gmra.mxu0 %v495
        %v674 = vpop.f32.mrf.mxu0
        %v675 = vadd.f32 0.0, %v674
        %v676 = vpop.f32.mrf.mxu0
        %v677 = vadd.f32 0.0, %v676
        %v678 = vpop.f32.mrf.mxu0
        %v679 = vadd.f32 0.0, %v678
        %v680 = vpop.f32.mrf.mxu0
        %v681 = vadd.f32 0.0, %v680
        %682 = vmatprep.mubr.bf16.mxu0 0
        %683 = vmatmul.mubr.bf16.gmra.mxu0 %v498
        %v684 = vpop.f32.mrf.mxu0
        %v685 = vadd.f32 0.0, %v684
        %v686 = vpop.f32.mrf.mxu0
        %v687 = vadd.f32 0.0, %v686
        %v688 = vpop.f32.mrf.mxu0
        %v689 = vadd.f32 0.0, %v688
        %v690 = vpop.f32.mrf.mxu0
        %v691 = vadd.f32 0.0, %v690
        %692 = vmatprep.mubr.bf16.mxu0 0
        %693 = vmatmul.mubr.bf16.gmra.mxu0 %v501
        %v694 = vpop.f32.mrf.mxu0
        %v695 = vadd.f32 0.0, %v694
        %v696 = vpop.f32.mrf.mxu0
        %v697 = vadd.f32 0.0, %v696
        %v698 = vpop.f32.mrf.mxu0
        %v699 = vadd.f32 0.0, %v698
        %v700 = vpop.f32.mrf.mxu0
        %v701 = vadd.f32 0.0, %v700
        %702 = vdwg.mxu0
        %v703 = vld [vmem:[%s2] sm:$0x1]
        %v705 = vlaneseq
        %v706 = vshrl.u32 %v705, 7
        %v707 = vsub.s32 0, %v706
        %v708 = vrot.slane %v703, %v707
        %v710 = vadd.f32 %v545, %v708
        %v711 = vadd.f32 %v549, %v708
        %v712 = vadd.f32 %v555, %v708
        %v713 = vadd.f32 %v559, %v708
        %v714 = vadd.f32 %v565, %v708
        %v715 = vadd.f32 %v569, %v708
        %v716 = vadd.f32 %v575, %v708
        %v717 = vadd.f32 %v579, %v708
        %v718 = vadd.f32 %v585, %v708
        %v719 = vadd.f32 %v589, %v708
        %v720 = vadd.f32 %v595, %v708
        %v721 = vadd.f32 %v599, %v708
        %v722 = vadd.f32 %v605, %v708
        %v723 = vadd.f32 %v609, %v708
        %v724 = vadd.f32 %v615, %v708
        %v725 = vadd.f32 %v619, %v708
        %v726 = vadd.f32 %v625, %v708
        %v727 = vadd.f32 %v629, %v708
        %v728 = vadd.f32 %v635, %v708
        %v729 = vadd.f32 %v639, %v708
        %v730 = vadd.f32 %v645, %v708
        %v731 = vadd.f32 %v649, %v708
        %v732 = vadd.f32 %v655, %v708
        %v733 = vadd.f32 %v659, %v708
        %v734 = vadd.f32 %v665, %v708
        %v735 = vadd.f32 %v669, %v708
        %v736 = vadd.f32 %v675, %v708
        %v737 = vadd.f32 %v679, %v708
        %v738 = vadd.f32 %v685, %v708
        %v739 = vadd.f32 %v689, %v708
        %v740 = vadd.f32 %v695, %v708
        %v741 = vadd.f32 %v699, %v708
        %v742 = vmax.f32 %v710, 0.0
        %v743 = vmax.f32 %v711, 0.0
        %v744 = vmax.f32 %v712, 0.0
        %v745 = vmax.f32 %v713, 0.0
        %v746 = vmax.f32 %v714, 0.0
        %v747 = vmax.f32 %v715, 0.0
        %v748 = vmax.f32 %v716, 0.0
        %v749 = vmax.f32 %v717, 0.0
        %v750 = vmax.f32 %v718, 0.0
        %v751 = vmax.f32 %v719, 0.0
        %v752 = vmax.f32 %v720, 0.0
        %v753 = vmax.f32 %v721, 0.0
        %v754 = vmax.f32 %v722, 0.0
        %v755 = vmax.f32 %v723, 0.0
        %v756 = vmax.f32 %v724, 0.0
        %v757 = vmax.f32 %v725, 0.0
        %v758 = vmax.f32 %v726, 0.0
        %v759 = vmax.f32 %v727, 0.0
        %v760 = vmax.f32 %v728, 0.0
        %v761 = vmax.f32 %v729, 0.0
        %v762 = vmax.f32 %v730, 0.0
        %v763 = vmax.f32 %v731, 0.0
        %v764 = vmax.f32 %v732, 0.0
        %v765 = vmax.f32 %v733, 0.0
        %v766 = vmax.f32 %v734, 0.0
        %v767 = vmax.f32 %v735, 0.0
        %v768 = vmax.f32 %v736, 0.0
        %v769 = vmax.f32 %v737, 0.0
        %v770 = vmax.f32 %v738, 0.0
        %v771 = vmax.f32 %v739, 0.0
        %v772 = vmax.f32 %v740, 0.0
        %v773 = vmax.f32 %v741, 0.0
        %v774 = vpack.c.bf16 %v743, %v742
        %v775 = vpack.c.bf16 %v745, %v744
        %v776 = vpack.c.bf16 %v747, %v746
        %v777 = vpack.c.bf16 %v749, %v748
        %v778 = vpack.c.bf16 %v751, %v750
        %v779 = vpack.c.bf16 %v753, %v752
        %v780 = vpack.c.bf16 %v755, %v754
        %v781 = vpack.c.bf16 %v757, %v756
        %v782 = vpack.c.bf16 %v759, %v758
        %v783 = vpack.c.bf16 %v761, %v760
        %v784 = vpack.c.bf16 %v763, %v762
        %v785 = vpack.c.bf16 %v765, %v764
        %v786 = vpack.c.bf16 %v767, %v766
        %v787 = vpack.c.bf16 %v769, %v768
        %v788 = vpack.c.bf16 %v771, %v770
        %v789 = vpack.c.bf16 %v773, %v772
        %806 = vrot.lane.b32.xlu0 %v774, 80
        %v807 = vpop.permute.xlu0 %806
        %808 = vrot.lane.b32.xlu0 %v775, 80
        %v809 = vpop.permute.xlu0 %808
        %810 = vrot.lane.b32.xlu0 %v776, 80
        %v811 = vpop.permute.xlu0 %810
        %812 = vrot.lane.b32.xlu0 %v777, 80
        %v813 = vpop.permute.xlu0 %812
        %814 = vrot.lane.b32.xlu0 %v778, 80
        %v815 = vpop.permute.xlu0 %814
        %816 = vrot.lane.b32.xlu0 %v779, 80
        %v817 = vpop.permute.xlu0 %816
        %818 = vrot.lane.b32.xlu0 %v780, 80
        %v819 = vpop.permute.xlu0 %818
        %820 = vrot.lane.b32.xlu0 %v781, 80
        %v821 = vpop.permute.xlu0 %820
        %822 = vrot.lane.b32.xlu0 %v782, 80
        %v823 = vpop.permute.xlu0 %822
        %824 = vrot.lane.b32.xlu0 %v783, 80
        %v825 = vpop.permute.xlu0 %824
        %826 = vrot.lane.b32.xlu0 %v784, 80
        %v827 = vpop.permute.xlu0 %826
        %828 = vrot.lane.b32.xlu0 %v785, 80
        %v829 = vpop.permute.xlu0 %828
        %830 = vrot.lane.b32.xlu0 %v786, 80
        %v831 = vpop.permute.xlu0 %830
        %832 = vrot.lane.b32.xlu0 %v787, 80
        %v833 = vpop.permute.xlu0 %832
        %834 = vrot.lane.b32.xlu0 %v788, 80
        %v835 = vpop.permute.xlu0 %834
        %836 = vrot.lane.b32.xlu0 %v789, 80
        %v837 = vpop.permute.xlu0 %836
        %v839 = vshrl.u32 0, 16
        %v841 = vrot.slane %v839, 7
        %v842 = vshll.u32 0, 16
        %v844 = vor.u32 %v841, %v842
        %v846 = vshrl.u32 %v807, 16
        %v848 = vrot.slane %v846, 7
        %v849 = vshll.u32 %v807, 16
        %v851 = vor.u32 %v848, %v849
        %v853 = vshrl.u32 %v809, 16
        %v855 = vrot.slane %v853, 7
        %v856 = vshll.u32 %v809, 16
        %v858 = vor.u32 %v855, %v856
        %v860 = vshrl.u32 %v811, 16
        %v862 = vrot.slane %v860, 7
        %v863 = vshll.u32 %v811, 16
        %v865 = vor.u32 %v862, %v863
        %v867 = vshrl.u32 %v813, 16
        %v869 = vrot.slane %v867, 7
        %v870 = vshll.u32 %v813, 16
        %v872 = vor.u32 %v869, %v870
        %v874 = vshrl.u32 %v815, 16
        %v876 = vrot.slane %v874, 7
        %v877 = vshll.u32 %v815, 16
        %v879 = vor.u32 %v876, %v877
        %v881 = vshrl.u32 %v817, 16
        %v883 = vrot.slane %v881, 7
        %v884 = vshll.u32 %v817, 16
        %v886 = vor.u32 %v883, %v884
        %v888 = vshrl.u32 %v819, 16
        %v890 = vrot.slane %v888, 7
        %v891 = vshll.u32 %v819, 16
        %v893 = vor.u32 %v890, %v891
        %v895 = vshrl.u32 %v821, 16
        %v897 = vrot.slane %v895, 7
        %v898 = vshll.u32 %v821, 16
        %v900 = vor.u32 %v897, %v898
        %v902 = vshrl.u32 %v823, 16
        %v904 = vrot.slane %v902, 7
        %v905 = vshll.u32 %v823, 16
        %v907 = vor.u32 %v904, %v905
        %v909 = vshrl.u32 %v825, 16
        %v911 = vrot.slane %v909, 7
        %v912 = vshll.u32 %v825, 16
        %v914 = vor.u32 %v911, %v912
        %v916 = vshrl.u32 %v827, 16
        %v918 = vrot.slane %v916, 7
        %v919 = vshll.u32 %v827, 16
        %v921 = vor.u32 %v918, %v919
        %v923 = vshrl.u32 %v829, 16
        %v925 = vrot.slane %v923, 7
        %v926 = vshll.u32 %v829, 16
        %v928 = vor.u32 %v925, %v926
        %v930 = vshrl.u32 %v831, 16
        %v932 = vrot.slane %v930, 7
        %v933 = vshll.u32 %v831, 16
        %v935 = vor.u32 %v932, %v933
        %v937 = vshrl.u32 %v833, 16
        %v939 = vrot.slane %v937, 7
        %v940 = vshll.u32 %v833, 16
        %v942 = vor.u32 %v939, %v940
        %v944 = vshrl.u32 %v835, 16
        %v946 = vrot.slane %v944, 7
        %v947 = vshll.u32 %v835, 16
        %v949 = vor.u32 %v946, %v947
        %v951 = vshrl.u32 %v837, 16
        %v953 = vrot.slane %v951, 7
        %v954 = vshll.u32 %v837, 16
        %v956 = vor.u32 %v953, %v954
        %vm991 = vcmask 1040384
        %vm992 = vsmask.f32 256
        %vm993 = vmand %vm991, %vm992
        %v994 = vsel %vm993, 0, %v844
        %v995 = vsel %vm993, 0, %v851
        %v996 = vsel %vm993, 0, %v858
        %v997 = vsel %vm993, 0, %v865
        %v998 = vsel %vm993, 0, %v872
        %v999 = vsel %vm993, 0, %v879
        %v1000 = vsel %vm993, 0, %v886
        %v1001 = vsel %vm993, 0, %v893
        %v1002 = vsel %vm993, 0, %v900
        %v1003 = vsel %vm993, 0, %v907
        %v1004 = vsel %vm993, 0, %v914
        %v1005 = vsel %vm993, 0, %v921
        %v1006 = vsel %vm993, 0, %v928
        %v1007 = vsel %vm993, 0, %v935
        %v1008 = vsel %vm993, 0, %v942
        %v1009 = vsel %vm993, 0, %v949
        %v1010 = vsel %vm993, 0, %v956
        %v1011 = vsel %vm993, %v841, 0
        %v1012 = vsel %vm993, %v848, 0
        %v1013 = vsel %vm993, %v855, 0
        %v1014 = vsel %vm993, %v862, 0
        %v1015 = vsel %vm993, %v869, 0
        %v1016 = vsel %vm993, %v876, 0
        %v1017 = vsel %vm993, %v883, 0
        %v1018 = vsel %vm993, %v890, 0
        %v1019 = vsel %vm993, %v897, 0
        %v1020 = vsel %vm993, %v904, 0
        %v1021 = vsel %vm993, %v911, 0
        %v1022 = vsel %vm993, %v918, 0
        %v1023 = vsel %vm993, %v925, 0
        %v1024 = vsel %vm993, %v932, 0
        %v1025 = vsel %vm993, %v939, 0
        %v1026 = vsel %vm993, %v946, 0
        %v1027 = vsel %vm993, %v953, 0
        %vm1028 = vsmask.f32 7424
        %v1030 = vshrl.u32 %v994, 16
        %v1032 = vshll.u32 %v994, 16
        %v1034 = vrot.slane %v1032, 1
        %v1035 = vor.u32 %v1030, %v1034
        %v1037 = vshll.u32 %v1011, 16
        %v1039 = vrot.slane %v1037, 1
        %v1040 = vsel %vm1028, %v1035, %v1039
        %v1042 = vshrl.u32 %v995, 16
        %v1044 = vshll.u32 %v995, 16
        %v1046 = vrot.slane %v1044, 1
        %v1047 = vor.u32 %v1042, %v1046
        %v1049 = vshll.u32 %v1012, 16
        %v1051 = vrot.slane %v1049, 1
        %v1052 = vsel %vm1028, %v1047, %v1051
        %v1054 = vshrl.u32 %v996, 16
        %v1056 = vshll.u32 %v996, 16
        %v1058 = vrot.slane %v1056, 1
        %v1059 = vor.u32 %v1054, %v1058
        %v1061 = vshll.u32 %v1013, 16
        %v1063 = vrot.slane %v1061, 1
        %v1064 = vsel %vm1028, %v1059, %v1063
        %v1066 = vshrl.u32 %v997, 16
        %v1068 = vshll.u32 %v997, 16
        %v1070 = vrot.slane %v1068, 1
        %v1071 = vor.u32 %v1066, %v1070
        %v1073 = vshll.u32 %v1014, 16
        %v1075 = vrot.slane %v1073, 1
        %v1076 = vsel %vm1028, %v1071, %v1075
        %v1078 = vshrl.u32 %v998, 16
        %v1080 = vshll.u32 %v998, 16
        %v1082 = vrot.slane %v1080, 1
        %v1083 = vor.u32 %v1078, %v1082
        %v1085 = vshll.u32 %v1015, 16
        %v1087 = vrot.slane %v1085, 1
        %v1088 = vsel %vm1028, %v1083, %v1087
        %v1090 = vshrl.u32 %v999, 16
        %v1092 = vshll.u32 %v999, 16
        %v1094 = vrot.slane %v1092, 1
        %v1095 = vor.u32 %v1090, %v1094
        %v1097 = vshll.u32 %v1016, 16
        %v1099 = vrot.slane %v1097, 1
        %v1100 = vsel %vm1028, %v1095, %v1099
        %v1102 = vshrl.u32 %v1000, 16
        %v1104 = vshll.u32 %v1000, 16
        %v1106 = vrot.slane %v1104, 1
        %v1107 = vor.u32 %v1102, %v1106
        %v1109 = vshll.u32 %v1017, 16
        %v1111 = vrot.slane %v1109, 1
        %v1112 = vsel %vm1028, %v1107, %v1111
        %v1114 = vshrl.u32 %v1001, 16
        %v1116 = vshll.u32 %v1001, 16
        %v1118 = vrot.slane %v1116, 1
        %v1119 = vor.u32 %v1114, %v1118
        %v1121 = vshll.u32 %v1018, 16
        %v1123 = vrot.slane %v1121, 1
        %v1124 = vsel %vm1028, %v1119, %v1123
        %v1126 = vshrl.u32 %v1002, 16
        %v1128 = vshll.u32 %v1002, 16
        %v1130 = vrot.slane %v1128, 1
        %v1131 = vor.u32 %v1126, %v1130
        %v1133 = vshll.u32 %v1019, 16
        %v1135 = vrot.slane %v1133, 1
        %v1136 = vsel %vm1028, %v1131, %v1135
        %v1138 = vshrl.u32 %v1003, 16
        %v1140 = vshll.u32 %v1003, 16
        %v1142 = vrot.slane %v1140, 1
        %v1143 = vor.u32 %v1138, %v1142
        %v1145 = vshll.u32 %v1020, 16
        %v1147 = vrot.slane %v1145, 1
        %v1148 = vsel %vm1028, %v1143, %v1147
        %v1150 = vshrl.u32 %v1004, 16
        %v1152 = vshll.u32 %v1004, 16
        %v1154 = vrot.slane %v1152, 1
        %v1155 = vor.u32 %v1150, %v1154
        %v1157 = vshll.u32 %v1021, 16
        %v1159 = vrot.slane %v1157, 1
        %v1160 = vsel %vm1028, %v1155, %v1159
        %v1162 = vshrl.u32 %v1005, 16
        %v1164 = vshll.u32 %v1005, 16
        %v1166 = vrot.slane %v1164, 1
        %v1167 = vor.u32 %v1162, %v1166
        %v1169 = vshll.u32 %v1022, 16
        %v1171 = vrot.slane %v1169, 1
        %v1172 = vsel %vm1028, %v1167, %v1171
        %v1174 = vshrl.u32 %v1006, 16
        %v1176 = vshll.u32 %v1006, 16
        %v1178 = vrot.slane %v1176, 1
        %v1179 = vor.u32 %v1174, %v1178
        %v1181 = vshll.u32 %v1023, 16
        %v1183 = vrot.slane %v1181, 1
        %v1184 = vsel %vm1028, %v1179, %v1183
        %v1186 = vshrl.u32 %v1007, 16
        %v1188 = vshll.u32 %v1007, 16
        %v1190 = vrot.slane %v1188, 1
        %v1191 = vor.u32 %v1186, %v1190
        %v1193 = vshll.u32 %v1024, 16
        %v1195 = vrot.slane %v1193, 1
        %v1196 = vsel %vm1028, %v1191, %v1195
        %v1198 = vshrl.u32 %v1008, 16
        %v1200 = vshll.u32 %v1008, 16
        %v1202 = vrot.slane %v1200, 1
        %v1203 = vor.u32 %v1198, %v1202
        %v1205 = vshll.u32 %v1025, 16
        %v1207 = vrot.slane %v1205, 1
        %v1208 = vsel %vm1028, %v1203, %v1207
        %v1210 = vshrl.u32 %v1009, 16
        %v1212 = vshll.u32 %v1009, 16
        %v1214 = vrot.slane %v1212, 1
        %v1215 = vor.u32 %v1210, %v1214
        %v1217 = vshll.u32 %v1026, 16
        %v1219 = vrot.slane %v1217, 1
        %v1220 = vsel %vm1028, %v1215, %v1219
        %vm1253 = vcmask 1046528
        %v1254 = vrot.slane %v994, 1
        %v1255 = vrot.slane %v1011, 1
        %v1256 = vsel %vm1253, %v1254, %v1255
        %v1257 = vrot.slane %v995, 1
        %v1258 = vrot.slane %v1012, 1
        %v1259 = vsel %vm1253, %v1257, %v1258
        %v1260 = vrot.slane %v996, 1
        %v1261 = vrot.slane %v1013, 1
        %v1262 = vsel %vm1253, %v1260, %v1261
        %v1263 = vrot.slane %v997, 1
        %v1264 = vrot.slane %v1014, 1
        %v1265 = vsel %vm1253, %v1263, %v1264
        %v1266 = vrot.slane %v998, 1
        %v1267 = vrot.slane %v1015, 1
        %v1268 = vsel %vm1253, %v1266, %v1267
        %v1269 = vrot.slane %v999, 1
        %v1270 = vrot.slane %v1016, 1
        %v1271 = vsel %vm1253, %v1269, %v1270
        %v1272 = vrot.slane %v1000, 1
        %v1273 = vrot.slane %v1017, 1
        %v1274 = vsel %vm1253, %v1272, %v1273
        %v1275 = vrot.slane %v1001, 1
        %v1276 = vrot.slane %v1018, 1
        %v1277 = vsel %vm1253, %v1275, %v1276
        %v1278 = vrot.slane %v1002, 1
        %v1279 = vrot.slane %v1019, 1
        %v1280 = vsel %vm1253, %v1278, %v1279
        %v1281 = vrot.slane %v1003, 1
        %v1282 = vrot.slane %v1020, 1
        %v1283 = vsel %vm1253, %v1281, %v1282
        %v1284 = vrot.slane %v1004, 1
        %v1285 = vrot.slane %v1021, 1
        %v1286 = vsel %vm1253, %v1284, %v1285
        %v1287 = vrot.slane %v1005, 1
        %v1288 = vrot.slane %v1022, 1
        %v1289 = vsel %vm1253, %v1287, %v1288
        %v1290 = vrot.slane %v1006, 1
        %v1291 = vrot.slane %v1023, 1
        %v1292 = vsel %vm1253, %v1290, %v1291
        %v1293 = vrot.slane %v1007, 1
        %v1294 = vrot.slane %v1024, 1
        %v1295 = vsel %vm1253, %v1293, %v1294
        %v1296 = vrot.slane %v1008, 1
        %v1297 = vrot.slane %v1025, 1
        %v1298 = vsel %vm1253, %v1296, %v1297
        %v1299 = vrot.slane %v1009, 1
        %v1300 = vrot.slane %v1026, 1
        %v1301 = vsel %vm1253, %v1299, %v1300
        %v1303 = vshrl.u32 %v1010, 16
        %v1305 = vshll.u32 %v1010, 16
        %v1307 = vrot.slane %v1305, 1
        %v1308 = vor.u32 %v1303, %v1307
        %v1310 = vshll.u32 %v1027, 16
        %v1312 = vrot.slane %v1310, 1
        %v1313 = vsel %vm1028, %v1308, %v1312
        %v1316 = vrot.slane %v1010, 1
        %v1317 = vrot.slane %v1027, 1
        %v1318 = vsel %vm1253, %v1316, %v1317
        %1319 = vrot.lane.b32.xlu0 %v1040, 64
        %v1320 = vpop.permute.xlu0 %1319
        %1321 = vrot.lane.b32.xlu0 %v1052, 64
        %v1322 = vpop.permute.xlu0 %1321
        %1323 = vrot.lane.b32.xlu0 %v1064, 64
        %v1324 = vpop.permute.xlu0 %1323
        %1325 = vrot.lane.b32.xlu0 %v1076, 64
        %v1326 = vpop.permute.xlu0 %1325
        %1327 = vrot.lane.b32.xlu0 %v1088, 64
        %v1328 = vpop.permute.xlu0 %1327
        %1329 = vrot.lane.b32.xlu0 %v1100, 64
        %v1330 = vpop.permute.xlu0 %1329
        %1331 = vrot.lane.b32.xlu0 %v1112, 64
        %v1332 = vpop.permute.xlu0 %1331
        %1333 = vrot.lane.b32.xlu0 %v1124, 64
        %v1334 = vpop.permute.xlu0 %1333
        %1335 = vrot.lane.b32.xlu0 %v1136, 64
        %v1336 = vpop.permute.xlu0 %1335
        %1337 = vrot.lane.b32.xlu0 %v1148, 64
        %v1338 = vpop.permute.xlu0 %1337
        %1339 = vrot.lane.b32.xlu0 %v1160, 64
        %v1340 = vpop.permute.xlu0 %1339
        %1341 = vrot.lane.b32.xlu0 %v1172, 64
        %v1342 = vpop.permute.xlu0 %1341
        %1343 = vrot.lane.b32.xlu0 %v1184, 64
        %v1344 = vpop.permute.xlu0 %1343
        %1345 = vrot.lane.b32.xlu0 %v1196, 64
        %v1346 = vpop.permute.xlu0 %1345
        %1347 = vrot.lane.b32.xlu0 %v1208, 64
        %v1348 = vpop.permute.xlu0 %1347
        %1349 = vrot.lane.b32.xlu0 %v1220, 64
        %v1350 = vpop.permute.xlu0 %1349
        %1351 = vrot.lane.b32.xlu0 %v995, 64
        %v1352 = vpop.permute.xlu0 %1351
        %1353 = vrot.lane.b32.xlu0 %v996, 64
        %v1354 = vpop.permute.xlu0 %1353
        %1355 = vrot.lane.b32.xlu0 %v997, 64
        %v1356 = vpop.permute.xlu0 %1355
        %1357 = vrot.lane.b32.xlu0 %v998, 64
        %v1358 = vpop.permute.xlu0 %1357
        %1359 = vrot.lane.b32.xlu0 %v999, 64
        %v1360 = vpop.permute.xlu0 %1359
        %1361 = vrot.lane.b32.xlu0 %v1000, 64
        %v1362 = vpop.permute.xlu0 %1361
        %1363 = vrot.lane.b32.xlu0 %v1001, 64
        %v1364 = vpop.permute.xlu0 %1363
        %1365 = vrot.lane.b32.xlu0 %v1002, 64
        %v1366 = vpop.permute.xlu0 %1365
        %1367 = vrot.lane.b32.xlu0 %v1003, 64
        %v1368 = vpop.permute.xlu0 %1367
        %1369 = vrot.lane.b32.xlu0 %v1004, 64
        %v1370 = vpop.permute.xlu0 %1369
        %1371 = vrot.lane.b32.xlu0 %v1005, 64
        %v1372 = vpop.permute.xlu0 %1371
        %1373 = vrot.lane.b32.xlu0 %v1006, 64
        %v1374 = vpop.permute.xlu0 %1373
        %1375 = vrot.lane.b32.xlu0 %v1007, 64
        %v1376 = vpop.permute.xlu0 %1375
        %1377 = vrot.lane.b32.xlu0 %v1008, 64
        %v1378 = vpop.permute.xlu0 %1377
        %1379 = vrot.lane.b32.xlu0 %v1009, 64
        %v1380 = vpop.permute.xlu0 %1379
        %1381 = vrot.lane.b32.xlu0 %v1010, 64
        %v1382 = vpop.permute.xlu0 %1381
        %1383 = vrot.lane.b32.xlu0 %v1259, 64
        %v1384 = vpop.permute.xlu0 %1383
        %1385 = vrot.lane.b32.xlu0 %v1262, 64
        %v1386 = vpop.permute.xlu0 %1385
        %1387 = vrot.lane.b32.xlu0 %v1265, 64
        %v1388 = vpop.permute.xlu0 %1387
        %1389 = vrot.lane.b32.xlu0 %v1268, 64
        %v1390 = vpop.permute.xlu0 %1389
        %1391 = vrot.lane.b32.xlu0 %v1271, 64
        %v1392 = vpop.permute.xlu0 %1391
        %1393 = vrot.lane.b32.xlu0 %v1274, 64
        %v1394 = vpop.permute.xlu0 %1393
        %1395 = vrot.lane.b32.xlu0 %v1277, 64
        %v1396 = vpop.permute.xlu0 %1395
        %1397 = vrot.lane.b32.xlu0 %v1280, 64
        %v1398 = vpop.permute.xlu0 %1397
        %1399 = vrot.lane.b32.xlu0 %v1283, 64
        %v1400 = vpop.permute.xlu0 %1399
        %1401 = vrot.lane.b32.xlu0 %v1286, 64
        %v1402 = vpop.permute.xlu0 %1401
        %1403 = vrot.lane.b32.xlu0 %v1289, 64
        %v1404 = vpop.permute.xlu0 %1403
        %1405 = vrot.lane.b32.xlu0 %v1292, 64
        %v1406 = vpop.permute.xlu0 %1405
        %1407 = vrot.lane.b32.xlu0 %v1295, 64
        %v1408 = vpop.permute.xlu0 %1407
        %1409 = vrot.lane.b32.xlu0 %v1298, 64
        %v1410 = vpop.permute.xlu0 %1409
        %1411 = vrot.lane.b32.xlu0 %v1301, 64
        %v1412 = vpop.permute.xlu0 %1411
        %1413 = vrot.lane.b32.xlu0 %v1318, 64
        %v1414 = vpop.permute.xlu0 %1413
        %1415 = vrot.lane.b32.xlu0 %v1313, 64
        %v1416 = vpop.permute.xlu0 %1415
        %vm1417 = vcmask 523264
        %v1419 = vsel %vm1417, %v994, %v1320
        %v1422 = vsel %vm1417, %v995, %v1322
        %v1425 = vsel %vm1417, %v996, %v1324
        %v1428 = vsel %vm1417, %v997, %v1326
        %v1431 = vsel %vm1417, %v998, %v1328
        %v1434 = vsel %vm1417, %v999, %v1330
        %v1437 = vsel %vm1417, %v1000, %v1332
        %v1440 = vsel %vm1417, %v1001, %v1334
        %v1443 = vsel %vm1417, %v1002, %v1336
        %v1446 = vsel %vm1417, %v1003, %v1338
        %v1449 = vsel %vm1417, %v1004, %v1340
        %v1452 = vsel %vm1417, %v1005, %v1342
        %v1455 = vsel %vm1417, %v1006, %v1344
        %v1458 = vsel %vm1417, %v1007, %v1346
        %v1461 = vsel %vm1417, %v1008, %v1348
        %v1464 = vsel %vm1417, %v1009, %v1350
        %v1468 = vsel %vm1417, %v1256, %v1352
        %v1472 = vsel %vm1417, %v1259, %v1354
        %v1476 = vsel %vm1417, %v1262, %v1356
        %v1480 = vsel %vm1417, %v1265, %v1358
        %v1484 = vsel %vm1417, %v1268, %v1360
        %v1488 = vsel %vm1417, %v1271, %v1362
        %v1492 = vsel %vm1417, %v1274, %v1364
        %v1496 = vsel %vm1417, %v1277, %v1366
        %v1500 = vsel %vm1417, %v1280, %v1368
        %v1504 = vsel %vm1417, %v1283, %v1370
        %v1508 = vsel %vm1417, %v1286, %v1372
        %v1512 = vsel %vm1417, %v1289, %v1374
        %v1516 = vsel %vm1417, %v1292, %v1376
        %v1520 = vsel %vm1417, %v1295, %v1378
        %v1524 = vsel %vm1417, %v1298, %v1380
        %v1528 = vsel %vm1417, %v1301, %v1382
        %v1532 = vsel %vm1417, %v1052, %v1384
        %v1536 = vsel %vm1417, %v1064, %v1386
        %v1540 = vsel %vm1417, %v1076, %v1388
        %v1544 = vsel %vm1417, %v1088, %v1390
        %v1548 = vsel %vm1417, %v1100, %v1392
        %v1552 = vsel %vm1417, %v1112, %v1394
        %v1556 = vsel %vm1417, %v1124, %v1396
        %v1560 = vsel %vm1417, %v1136, %v1398
        %v1564 = vsel %vm1417, %v1148, %v1400
        %v1568 = vsel %vm1417, %v1160, %v1402
        %v1572 = vsel %vm1417, %v1172, %v1404
        %v1576 = vsel %vm1417, %v1184, %v1406
        %v1580 = vsel %vm1417, %v1196, %v1408
        %v1584 = vsel %vm1417, %v1208, %v1410
        %v1588 = vsel %vm1417, %v1220, %v1412
        %v1592 = vsel %vm1417, %v1313, %v1414
        %v1595 = vsel %vm1417, %v1010, %v1416
        %v1597 = vld [vmem:[%s3] sm:$0xf]
        %v1598 = vld [vmem:[%s3 + $0x4] sm:$0xf]
        %v1599 = vld [vmem:[%s3 + $0x8] sm:$0xf]
        %v1600 = vld [vmem:[%s3 + $0xc] sm:$0xf]
        %v1601 = vld [vmem:[%s3 + $0x10] sm:$0xf]
        %v1602 = vld [vmem:[%s3 + $0x14] sm:$0xf]
        %v1603 = vld [vmem:[%s3 + $0x18] sm:$0xf]
        %v1604 = vld [vmem:[%s3 + $0x1c] sm:$0xf]
        %v1605 = vld [vmem:[%s3 + $0x20] sm:$0xf]
        %v1606 = vld [vmem:[%s3 + $0x24] sm:$0xf]
        %v1607 = vld [vmem:[%s3 + $0x28] sm:$0xf]
        %v1608 = vld [vmem:[%s3 + $0x2c] sm:$0xf]
        %v1609 = vld [vmem:[%s3 + $0x30] sm:$0xf]
        %v1610 = vld [vmem:[%s3 + $0x34] sm:$0xf]
        %v1611 = vld [vmem:[%s3 + $0x38] sm:$0xf]
        %v1612 = vld [vmem:[%s3 + $0x3c] sm:$0xf]
        %v1613 = vld [vmem:[%s3 + $0x40] sm:$0xf]
        %v1614 = vld [vmem:[%s3 + $0x44] sm:$0xf]
        %v1615 = vld [vmem:[%s3 + $0x48] sm:$0xf]
        %v1616 = vld [vmem:[%s3 + $0x4c] sm:$0xf]
        %v1617 = vld [vmem:[%s3 + $0x50] sm:$0xf]
        %v1618 = vld [vmem:[%s3 + $0x54] sm:$0xf]
        %v1619 = vld [vmem:[%s3 + $0x58] sm:$0xf]
        %v1620 = vld [vmem:[%s3 + $0x5c] sm:$0xf]
        %v1621 = vld [vmem:[%s3 + $0x60] sm:$0xf]
        %v1622 = vld [vmem:[%s3 + $0x64] sm:$0xf]
        %v1623 = vld [vmem:[%s3 + $0x68] sm:$0xf]
        %v1624 = vld [vmem:[%s3 + $0x6c] sm:$0xf]
        %v1625 = vld [vmem:[%s3 + $0x70] sm:$0xf]
        %v1626 = vld [vmem:[%s3 + $0x74] sm:$0xf]
        %v1627 = vld [vmem:[%s3 + $0x78] sm:$0xf]
        %v1628 = vld [vmem:[%s3 + $0x7c] sm:$0xf]
        %v1629 = vld [vmem:[%s3 + $0x80] sm:$0xf]
        %v1630 = vld [vmem:[%s3 + $0x84] sm:$0xf]
        %v1631 = vld [vmem:[%s3 + $0x88] sm:$0xf]
        %v1632 = vld [vmem:[%s3 + $0x8c] sm:$0xf]
        %v1633 = vld [vmem:[%s3 + $0x90] sm:$0xf]
        %v1634 = vld [vmem:[%s3 + $0x94] sm:$0xf]
        %v1635 = vld [vmem:[%s3 + $0x98] sm:$0xf]
        %v1636 = vld [vmem:[%s3 + $0x9c] sm:$0xf]
        %v1637 = vld [vmem:[%s3 + $0xa0] sm:$0xf]
        %v1638 = vld [vmem:[%s3 + $0xa4] sm:$0xf]
        %v1639 = vld [vmem:[%s3 + $0xa8] sm:$0xf]
        %v1640 = vld [vmem:[%s3 + $0xac] sm:$0xf]
        %v1641 = vld [vmem:[%s3 + $0xb0] sm:$0xf]
        %v1642 = vld [vmem:[%s3 + $0xb4] sm:$0xf]
        %v1643 = vld [vmem:[%s3 + $0xb8] sm:$0xf]
        %v1644 = vld [vmem:[%s3 + $0xbc] sm:$0xf]
        %v1645 = vld [vmem:[%s3 + $0xc0] sm:$0xf]
        %v1646 = vld [vmem:[%s3 + $0xc4] sm:$0xf]
        %v1647 = vld [vmem:[%s3 + $0xc8] sm:$0xf]
        %v1648 = vld [vmem:[%s3 + $0xcc] sm:$0xf]
        %v1649 = vld [vmem:[%s3 + $0xd0] sm:$0xf]
        %v1650 = vld [vmem:[%s3 + $0xd4] sm:$0xf]
        %v1651 = vld [vmem:[%s3 + $0xd8] sm:$0xf]
        %v1652 = vld [vmem:[%s3 + $0xdc] sm:$0xf]
        %v1653 = vld [vmem:[%s3 + $0xe0] sm:$0xf]
        %v1654 = vld [vmem:[%s3 + $0xe4] sm:$0xf]
        %v1655 = vld [vmem:[%s3 + $0xe8] sm:$0xf]
        %v1656 = vld [vmem:[%s3 + $0xec] sm:$0xf]
        %v1657 = vld [vmem:[%s3 + $0xf0] sm:$0xf]
        %v1658 = vld [vmem:[%s3 + $0xf4] sm:$0xf]
        %v1659 = vld [vmem:[%s3 + $0xf8] sm:$0xf]
        %v1660 = vld [vmem:[%s3 + $0xfc] sm:$0xf]
        %v1661 = vld [vmem:[%s3 + $0x100] sm:$0xf]
        %v1662 = vld [vmem:[%s3 + $0x104] sm:$0xf]
        %v1663 = vld [vmem:[%s3 + $0x108] sm:$0xf]
        %v1664 = vld [vmem:[%s3 + $0x10c] sm:$0xf]
        %v1665 = vld [vmem:[%s3 + $0x110] sm:$0xf]
        %v1666 = vld [vmem:[%s3 + $0x114] sm:$0xf]
        %v1667 = vld [vmem:[%s3 + $0x118] sm:$0xf]
        %v1668 = vld [vmem:[%s3 + $0x11c] sm:$0xf]
        %v1669 = vld [vmem:[%s4] sm:$0x1]
        %v1671 = vlaneseq
        %v1672 = vshrl.u32 %v1671, 7
        %v1673 = vsub.s32 0, %v1672
        %v1674 = vrot.slane %v1669, %v1673
        %v1748 = vunpack.c.l.b16 %v1597
        %v1749 = vunpack.c.l.b16 %v1598
        %v1750 = vunpack.c.l.b16 %v1599
        %v1751 = vunpack.c.l.b16 %v1600
        %v1752 = vunpack.c.l.b16 %v1601
        %v1753 = vunpack.c.l.b16 %v1602
        %v1754 = vunpack.c.l.b16 %v1603
        %v1755 = vunpack.c.l.b16 %v1604
        %v1756 = vunpack.c.l.b16 %v1605
        %v1757 = vunpack.c.l.b16 %v1606
        %v1758 = vunpack.c.l.b16 %v1607
        %v1759 = vunpack.c.l.b16 %v1608
        %v1760 = vunpack.c.l.b16 %v1609
        %v1761 = vunpack.c.l.b16 %v1610
        %v1762 = vunpack.c.l.b16 %v1611
        %v1763 = vunpack.c.l.b16 %v1612
        %v1764 = vunpack.c.l.b16 %v1613
        %v1765 = vunpack.c.l.b16 %v1614
        %v1766 = vunpack.c.l.b16 %v1615
        %v1767 = vunpack.c.l.b16 %v1616
        %v1768 = vunpack.c.l.b16 %v1617
        %v1769 = vunpack.c.l.b16 %v1618
        %v1770 = vunpack.c.l.b16 %v1619
        %v1771 = vunpack.c.l.b16 %v1620
        %v1772 = vunpack.c.l.b16 %v1621
        %v1773 = vunpack.c.l.b16 %v1622
        %v1774 = vunpack.c.l.b16 %v1623
        %v1775 = vunpack.c.l.b16 %v1624
        %v1776 = vunpack.c.l.b16 %v1625
        %v1777 = vunpack.c.l.b16 %v1626
        %v1778 = vunpack.c.l.b16 %v1627
        %v1779 = vunpack.c.l.b16 %v1628
        %v1780 = vunpack.c.l.b16 %v1629
        %v1781 = vunpack.c.l.b16 %v1630
        %v1782 = vunpack.c.l.b16 %v1631
        %v1783 = vunpack.c.l.b16 %v1632
        %v1784 = vunpack.c.l.b16 %v1633
        %v1785 = vunpack.c.l.b16 %v1634
        %v1786 = vunpack.c.l.b16 %v1635
        %v1787 = vunpack.c.l.b16 %v1636
        %v1788 = vunpack.c.l.b16 %v1637
        %v1789 = vunpack.c.l.b16 %v1638
        %v1790 = vunpack.c.l.b16 %v1639
        %v1791 = vunpack.c.l.b16 %v1640
        %v1792 = vunpack.c.l.b16 %v1641
        %v1793 = vunpack.c.l.b16 %v1642
        %v1794 = vunpack.c.l.b16 %v1643
        %v1795 = vunpack.c.l.b16 %v1644
        %v1796 = vunpack.c.l.b16 %v1645
        %v1797 = vunpack.c.l.b16 %v1646
        %v1798 = vunpack.c.l.b16 %v1647
        %v1799 = vunpack.c.l.b16 %v1648
        %v1800 = vunpack.c.l.b16 %v1649
        %v1801 = vunpack.c.l.b16 %v1650
        %v1802 = vunpack.c.l.b16 %v1651
        %v1803 = vunpack.c.l.b16 %v1652
        %v1804 = vunpack.c.l.b16 %v1653
        %v1805 = vunpack.c.l.b16 %v1654
        %v1806 = vunpack.c.l.b16 %v1655
        %v1807 = vunpack.c.l.b16 %v1656
        %v1808 = vunpack.c.l.b16 %v1657
        %v1809 = vunpack.c.l.b16 %v1658
        %v1810 = vunpack.c.l.b16 %v1659
        %v1811 = vunpack.c.l.b16 %v1660
        %v1812 = vunpack.c.l.b16 %v1661
        %v1813 = vunpack.c.l.b16 %v1662
        %v1814 = vunpack.c.l.b16 %v1663
        %v1815 = vunpack.c.l.b16 %v1664
        %v1816 = vunpack.c.l.b16 %v1665
        %v1817 = vunpack.c.l.b16 %v1666
        %v1818 = vunpack.c.l.b16 %v1667
        %v1819 = vunpack.c.l.b16 %v1668
        %v1820 = vpack.c.b16 %v1749, %v1748
        %v1821 = vpack.c.b16 %v1751, %v1750
        %v1822 = vpack.c.b16 %v1753, %v1752
        %v1823 = vpack.c.b16 %v1755, %v1754
        %v1824 = vpack.c.b16 %v1757, %v1756
        %v1825 = vpack.c.b16 %v1759, %v1758
        %v1826 = vpack.c.b16 %v1761, %v1760
        %v1827 = vpack.c.b16 %v1763, %v1762
        %v1828 = vpack.c.b16 %v1765, %v1764
        %v1829 = vpack.c.b16 %v1767, %v1766
        %v1830 = vpack.c.b16 %v1769, %v1768
        %v1831 = vpack.c.b16 %v1771, %v1770
        %v1832 = vpack.c.b16 %v1773, %v1772
        %v1833 = vpack.c.b16 %v1775, %v1774
        %v1834 = vpack.c.b16 %v1777, %v1776
        %v1835 = vpack.c.b16 %v1779, %v1778
        %v1836 = vpack.c.b16 %v1781, %v1780
        %v1837 = vpack.c.b16 %v1783, %v1782
        %v1838 = vpack.c.b16 %v1785, %v1784
        %v1839 = vpack.c.b16 %v1787, %v1786
        %v1840 = vpack.c.b16 %v1789, %v1788
        %v1841 = vpack.c.b16 %v1791, %v1790
        %v1842 = vpack.c.b16 %v1793, %v1792
        %v1843 = vpack.c.b16 %v1795, %v1794
        %v1844 = vpack.c.b16 %v1797, %v1796
        %v1845 = vpack.c.b16 %v1799, %v1798
        %v1846 = vpack.c.b16 %v1801, %v1800
        %v1847 = vpack.c.b16 %v1803, %v1802
        %v1848 = vpack.c.b16 %v1805, %v1804
        %v1849 = vpack.c.b16 %v1807, %v1806
        %v1850 = vpack.c.b16 %v1809, %v1808
        %v1851 = vpack.c.b16 %v1811, %v1810
        %v1852 = vpack.c.b16 %v1813, %v1812
        %v1853 = vpack.c.b16 %v1815, %v1814
        %v1854 = vpack.c.b16 %v1817, %v1816
        %v1855 = vpack.c.b16 %v1819, %v1818
        %v1892 = vsel %vm1417, %v1262, 0
        %v1894 = vsel %vm1417, %v1265, 0
        %v1896 = vsel %vm1417, %v1268, 0
        %v1898 = vsel %vm1417, %v1271, 0
        %v1900 = vsel %vm1417, %v1274, 0
        %v1902 = vsel %vm1417, %v1277, 0
        %v1904 = vsel %vm1417, %v1280, 0
        %v1906 = vsel %vm1417, %v1283, 0
        %v1908 = vsel %vm1417, %v1286, 0
        %v1910 = vsel %vm1417, %v1289, 0
        %v1912 = vsel %vm1417, %v1292, 0
        %v1914 = vsel %vm1417, %v1295, 0
        %v1916 = vsel %vm1417, %v1298, 0
        %v1918 = vsel %vm1417, %v1301, 0
        %v1921 = vsel %vm1417, %v1318, 0
        %v1923 = vsel %vm1417, %v1256, 0
        %1925 = vmatprep.subr.bf16.mxu0 0
        %1926 = vmatpush1.bf16.msra.mxu0 %v1827
        %1927 = vmatprep.subr.bf16.mxu0 0
        %1928 = vmatpush1.bf16.msra.mxu0 %v1826
        %1929 = vmatprep.subr.bf16.mxu0 0
        %1930 = vmatpush1.bf16.msra.mxu0 %v1825
        %1931 = vmatprep.subr.bf16.mxu0 0
        %1932 = vmatpush1.bf16.msra.mxu0 %v1824
        %1933 = vmatprep.subr.bf16.mxu0 0
        %1934 = vmatpush1.bf16.msra.mxu0 %v1823
        %1935 = vmatprep.subr.bf16.mxu0 0
        %1936 = vmatpush1.bf16.msra.mxu0 %v1822
        %1937 = vmatprep.subr.bf16.mxu0 0
        %1938 = vmatpush1.bf16.msra.mxu0 %v1821
        %1939 = vmatprep.subr.bf16.mxu0 0
        %1940 = vmatpush1.bf16.msra.mxu0 %v1820
        %1941 = vmatprep.subr.bf16.mxu0 0
        %1942 = vmatpush2.bf16.msra.mxu0 %v1835
        %1943 = vmatprep.subr.bf16.mxu0 0
        %1944 = vmatpush2.bf16.msra.mxu0 %v1834
        %1945 = vmatprep.subr.bf16.mxu0 0
        %1946 = vmatpush2.bf16.msra.mxu0 %v1833
        %1947 = vmatprep.subr.bf16.mxu0 0
        %1948 = vmatpush2.bf16.msra.mxu0 %v1832
        %1949 = vmatprep.subr.bf16.mxu0 0
        %1950 = vmatpush2.bf16.msra.mxu0 %v1831
        %1951 = vmatprep.subr.bf16.mxu0 0
        %1952 = vmatpush2.bf16.msra.mxu0 %v1830
        %1953 = vmatprep.subr.bf16.mxu0 0
        %1954 = vmatpush2.bf16.msra.mxu0 %v1829
        %1955 = vmatprep.subr.bf16.mxu0 0
        %1956 = vmatpush2.bf16.msra.mxu0 %v1828
        %1957 = vmatprep.mubr.bf16.mxu0 %v1468
        %1958 = vmatmul.mubr.bf16.gmra.mxu0 %v1419
        %v1959 = vpop.f32.mrf.mxu0
        %v1960 = vadd.f32 %v1674, %v1959
        %v1961 = vpop.f32.mrf.mxu0
        %v1962 = vpop.f32.mrf.mxu0
        %v1963 = vadd.f32 %v1674, %v1962
        %v1964 = vpop.f32.mrf.mxu0
        %1965 = vmatprep.mubr.bf16.mxu0 %v1472
        %1966 = vmatmul.mubr.bf16.gmra.mxu0 %v1422
        %v1967 = vpop.f32.mrf.mxu0
        %v1968 = vadd.f32 %v1674, %v1967
        %v1969 = vpop.f32.mrf.mxu0
        %v1970 = vpop.f32.mrf.mxu0
        %v1971 = vadd.f32 %v1674, %v1970
        %v1972 = vpop.f32.mrf.mxu0
        %1973 = vmatprep.mubr.bf16.mxu0 %v1476
        %1974 = vmatmul.mubr.bf16.gmra.mxu0 %v1425
        %v1975 = vpop.f32.mrf.mxu0
        %v1976 = vadd.f32 %v1674, %v1975
        %v1977 = vpop.f32.mrf.mxu0
        %v1978 = vpop.f32.mrf.mxu0
        %v1979 = vadd.f32 %v1674, %v1978
        %v1980 = vpop.f32.mrf.mxu0
        %1981 = vmatprep.mubr.bf16.mxu0 %v1480
        %1982 = vmatmul.mubr.bf16.gmra.mxu0 %v1428
        %v1983 = vpop.f32.mrf.mxu0
        %v1984 = vadd.f32 %v1674, %v1983
        %v1985 = vpop.f32.mrf.mxu0
        %v1986 = vpop.f32.mrf.mxu0
        %v1987 = vadd.f32 %v1674, %v1986
        %v1988 = vpop.f32.mrf.mxu0
        %1989 = vmatprep.mubr.bf16.mxu0 %v1484
        %1990 = vmatmul.mubr.bf16.gmra.mxu0 %v1431
        %v1991 = vpop.f32.mrf.mxu0
        %v1992 = vadd.f32 %v1674, %v1991
        %v1993 = vpop.f32.mrf.mxu0
        %v1994 = vpop.f32.mrf.mxu0
        %v1995 = vadd.f32 %v1674, %v1994
        %v1996 = vpop.f32.mrf.mxu0
        %1997 = vmatprep.mubr.bf16.mxu0 %v1488
        %1998 = vmatmul.mubr.bf16.gmra.mxu0 %v1434
        %v1999 = vpop.f32.mrf.mxu0
        %v2000 = vadd.f32 %v1674, %v1999
        %v2001 = vpop.f32.mrf.mxu0
        %v2002 = vpop.f32.mrf.mxu0
        %v2003 = vadd.f32 %v1674, %v2002
        %v2004 = vpop.f32.mrf.mxu0
        %2005 = vmatprep.mubr.bf16.mxu0 %v1492
        %2006 = vmatmul.mubr.bf16.gmra.mxu0 %v1437
        %v2007 = vpop.f32.mrf.mxu0
        %v2008 = vadd.f32 %v1674, %v2007
        %v2009 = vpop.f32.mrf.mxu0
        %v2010 = vpop.f32.mrf.mxu0
        %v2011 = vadd.f32 %v1674, %v2010
        %v2012 = vpop.f32.mrf.mxu0
        %2013 = vmatprep.mubr.bf16.mxu0 %v1496
        %2014 = vmatmul.mubr.bf16.gmra.mxu0 %v1440
        %v2015 = vpop.f32.mrf.mxu0
        %v2016 = vadd.f32 %v1674, %v2015
        %v2017 = vpop.f32.mrf.mxu0
        %v2018 = vpop.f32.mrf.mxu0
        %v2019 = vadd.f32 %v1674, %v2018
        %v2020 = vpop.f32.mrf.mxu0
        %2021 = vmatprep.mubr.bf16.mxu0 %v1500
        %2022 = vmatmul.mubr.bf16.gmra.mxu0 %v1443
        %v2023 = vpop.f32.mrf.mxu0
        %v2024 = vadd.f32 %v1674, %v2023
        %v2025 = vpop.f32.mrf.mxu0
        %v2026 = vpop.f32.mrf.mxu0
        %v2027 = vadd.f32 %v1674, %v2026
        %v2028 = vpop.f32.mrf.mxu0
        %2029 = vmatprep.mubr.bf16.mxu0 %v1504
        %2030 = vmatmul.mubr.bf16.gmra.mxu0 %v1446
        %v2031 = vpop.f32.mrf.mxu0
        %v2032 = vadd.f32 %v1674, %v2031
        %v2033 = vpop.f32.mrf.mxu0
        %v2034 = vpop.f32.mrf.mxu0
        %v2035 = vadd.f32 %v1674, %v2034
        %v2036 = vpop.f32.mrf.mxu0
        %2037 = vmatprep.mubr.bf16.mxu0 %v1508
        %2038 = vmatmul.mubr.bf16.gmra.mxu0 %v1449
        %v2039 = vpop.f32.mrf.mxu0
        %v2040 = vadd.f32 %v1674, %v2039
        %v2041 = vpop.f32.mrf.mxu0
        %v2042 = vpop.f32.mrf.mxu0
        %v2043 = vadd.f32 %v1674, %v2042
        %v2044 = vpop.f32.mrf.mxu0
        %2045 = vmatprep.mubr.bf16.mxu0 %v1512
        %2046 = vmatmul.mubr.bf16.gmra.mxu0 %v1452
        %v2047 = vpop.f32.mrf.mxu0
        %v2048 = vadd.f32 %v1674, %v2047
        %v2049 = vpop.f32.mrf.mxu0
        %v2050 = vpop.f32.mrf.mxu0
        %v2051 = vadd.f32 %v1674, %v2050
        %v2052 = vpop.f32.mrf.mxu0
        %2053 = vmatprep.mubr.bf16.mxu0 %v1516
        %2054 = vmatmul.mubr.bf16.gmra.mxu0 %v1455
        %v2055 = vpop.f32.mrf.mxu0
        %v2056 = vadd.f32 %v1674, %v2055
        %v2057 = vpop.f32.mrf.mxu0
        %v2058 = vpop.f32.mrf.mxu0
        %v2059 = vadd.f32 %v1674, %v2058
        %v2060 = vpop.f32.mrf.mxu0
        %2061 = vmatprep.mubr.bf16.mxu0 %v1520
        %2062 = vmatmul.mubr.bf16.gmra.mxu0 %v1458
        %v2063 = vpop.f32.mrf.mxu0
        %v2064 = vadd.f32 %v1674, %v2063
        %v2065 = vpop.f32.mrf.mxu0
        %v2066 = vpop.f32.mrf.mxu0
        %v2067 = vadd.f32 %v1674, %v2066
        %v2068 = vpop.f32.mrf.mxu0
        %2069 = vmatprep.mubr.bf16.mxu0 %v1524
        %2070 = vmatmul.mubr.bf16.gmra.mxu0 %v1461
        %v2071 = vpop.f32.mrf.mxu0
        %v2072 = vadd.f32 %v1674, %v2071
        %v2073 = vpop.f32.mrf.mxu0
        %v2074 = vpop.f32.mrf.mxu0
        %v2075 = vadd.f32 %v1674, %v2074
        %v2076 = vpop.f32.mrf.mxu0
        %2077 = vmatprep.mubr.bf16.mxu0 %v1528
        %2078 = vmatmul.mubr.bf16.gmra.mxu0 %v1464
        %v2079 = vpop.f32.mrf.mxu0
        %v2080 = vadd.f32 %v1674, %v2079
        %v2081 = vpop.f32.mrf.mxu0
        %v2082 = vpop.f32.mrf.mxu0
        %v2083 = vadd.f32 %v1674, %v2082
        %v2084 = vpop.f32.mrf.mxu0
        %2085 = vdwg.mxu0
        %2086 = vmatprep.subr.bf16.mxu0 0
        %2087 = vmatpush1.bf16.msra.mxu0 %v1843
        %2088 = vmatprep.subr.bf16.mxu0 0
        %2089 = vmatpush1.bf16.msra.mxu0 %v1842
        %2090 = vmatprep.subr.bf16.mxu0 0
        %2091 = vmatpush1.bf16.msra.mxu0 %v1841
        %2092 = vmatprep.subr.bf16.mxu0 0
        %2093 = vmatpush1.bf16.msra.mxu0 %v1840
        %2094 = vmatprep.subr.bf16.mxu0 0
        %2095 = vmatpush1.bf16.msra.mxu0 %v1839
        %2096 = vmatprep.subr.bf16.mxu0 0
        %2097 = vmatpush1.bf16.msra.mxu0 %v1838
        %2098 = vmatprep.subr.bf16.mxu0 0
        %2099 = vmatpush1.bf16.msra.mxu0 %v1837
        %2100 = vmatprep.subr.bf16.mxu0 0
        %2101 = vmatpush1.bf16.msra.mxu0 %v1836
        %2102 = vmatprep.subr.bf16.mxu0 0
        %2103 = vmatpush2.bf16.msra.mxu0 %v1851
        %2104 = vmatprep.subr.bf16.mxu0 0
        %2105 = vmatpush2.bf16.msra.mxu0 %v1850
        %2106 = vmatprep.subr.bf16.mxu0 0
        %2107 = vmatpush2.bf16.msra.mxu0 %v1849
        %2108 = vmatprep.subr.bf16.mxu0 0
        %2109 = vmatpush2.bf16.msra.mxu0 %v1848
        %2110 = vmatprep.subr.bf16.mxu0 0
        %2111 = vmatpush2.bf16.msra.mxu0 %v1847
        %2112 = vmatprep.subr.bf16.mxu0 0
        %2113 = vmatpush2.bf16.msra.mxu0 %v1846
        %2114 = vmatprep.subr.bf16.mxu0 0
        %2115 = vmatpush2.bf16.msra.mxu0 %v1845
        %2116 = vmatprep.subr.bf16.mxu0 0
        %2117 = vmatpush2.bf16.msra.mxu0 %v1844
        %2118 = vmatprep.mubr.bf16.mxu0 %v1425
        %2119 = vmatmul.mubr.bf16.gmra.mxu0 %v1532
        %v2120 = vpop.f32.mrf.mxu0
        %v2121 = vadd.f32 %v1960, %v2120
        %v2122 = vpop.f32.mrf.mxu0
        %v2123 = vpop.f32.mrf.mxu0
        %v2124 = vadd.f32 %v1963, %v2123
        %v2125 = vpop.f32.mrf.mxu0
        %2126 = vmatprep.mubr.bf16.mxu0 %v1428
        %2127 = vmatmul.mubr.bf16.gmra.mxu0 %v1536
        %v2128 = vpop.f32.mrf.mxu0
        %v2129 = vadd.f32 %v1968, %v2128
        %v2130 = vpop.f32.mrf.mxu0
        %v2131 = vpop.f32.mrf.mxu0
        %v2132 = vadd.f32 %v1971, %v2131
        %v2133 = vpop.f32.mrf.mxu0
        %2134 = vmatprep.mubr.bf16.mxu0 %v1431
        %2135 = vmatmul.mubr.bf16.gmra.mxu0 %v1540
        %v2136 = vpop.f32.mrf.mxu0
        %v2137 = vadd.f32 %v1976, %v2136
        %v2138 = vpop.f32.mrf.mxu0
        %v2139 = vpop.f32.mrf.mxu0
        %v2140 = vadd.f32 %v1979, %v2139
        %v2141 = vpop.f32.mrf.mxu0
        %2142 = vmatprep.mubr.bf16.mxu0 %v1434
        %2143 = vmatmul.mubr.bf16.gmra.mxu0 %v1544
        %v2144 = vpop.f32.mrf.mxu0
        %v2145 = vadd.f32 %v1984, %v2144
        %v2146 = vpop.f32.mrf.mxu0
        %v2147 = vpop.f32.mrf.mxu0
        %v2148 = vadd.f32 %v1987, %v2147
        %v2149 = vpop.f32.mrf.mxu0
        %2150 = vmatprep.mubr.bf16.mxu0 %v1437
        %2151 = vmatmul.mubr.bf16.gmra.mxu0 %v1548
        %v2152 = vpop.f32.mrf.mxu0
        %v2153 = vadd.f32 %v1992, %v2152
        %v2154 = vpop.f32.mrf.mxu0
        %v2155 = vpop.f32.mrf.mxu0
        %v2156 = vadd.f32 %v1995, %v2155
        %v2157 = vpop.f32.mrf.mxu0
        %2158 = vmatprep.mubr.bf16.mxu0 %v1440
        %2159 = vmatmul.mubr.bf16.gmra.mxu0 %v1552
        %v2160 = vpop.f32.mrf.mxu0
        %v2161 = vadd.f32 %v2000, %v2160
        %v2162 = vpop.f32.mrf.mxu0
        %v2163 = vpop.f32.mrf.mxu0
        %v2164 = vadd.f32 %v2003, %v2163
        %v2165 = vpop.f32.mrf.mxu0
        %2166 = vmatprep.mubr.bf16.mxu0 %v1443
        %2167 = vmatmul.mubr.bf16.gmra.mxu0 %v1556
        %v2168 = vpop.f32.mrf.mxu0
        %v2169 = vadd.f32 %v2008, %v2168
        %v2170 = vpop.f32.mrf.mxu0
        %v2171 = vpop.f32.mrf.mxu0
        %v2172 = vadd.f32 %v2011, %v2171
        %v2173 = vpop.f32.mrf.mxu0
        %2174 = vmatprep.mubr.bf16.mxu0 %v1446
        %2175 = vmatmul.mubr.bf16.gmra.mxu0 %v1560
        %v2176 = vpop.f32.mrf.mxu0
        %v2177 = vadd.f32 %v2016, %v2176
        %v2178 = vpop.f32.mrf.mxu0
        %v2179 = vpop.f32.mrf.mxu0
        %v2180 = vadd.f32 %v2019, %v2179
        %v2181 = vpop.f32.mrf.mxu0
        %2182 = vmatprep.mubr.bf16.mxu0 %v1449
        %2183 = vmatmul.mubr.bf16.gmra.mxu0 %v1564
        %v2184 = vpop.f32.mrf.mxu0
        %v2185 = vadd.f32 %v2024, %v2184
        %v2186 = vpop.f32.mrf.mxu0
        %v2187 = vpop.f32.mrf.mxu0
        %v2188 = vadd.f32 %v2027, %v2187
        %v2189 = vpop.f32.mrf.mxu0
        %2190 = vmatprep.mubr.bf16.mxu0 %v1452
        %2191 = vmatmul.mubr.bf16.gmra.mxu0 %v1568
        %v2192 = vpop.f32.mrf.mxu0
        %v2193 = vadd.f32 %v2032, %v2192
        %v2194 = vpop.f32.mrf.mxu0
        %v2195 = vpop.f32.mrf.mxu0
        %v2196 = vadd.f32 %v2035, %v2195
        %v2197 = vpop.f32.mrf.mxu0
        %2198 = vmatprep.mubr.bf16.mxu0 %v1455
        %2199 = vmatmul.mubr.bf16.gmra.mxu0 %v1572
        %v2200 = vpop.f32.mrf.mxu0
        %v2201 = vadd.f32 %v2040, %v2200
        %v2202 = vpop.f32.mrf.mxu0
        %v2203 = vpop.f32.mrf.mxu0
        %v2204 = vadd.f32 %v2043, %v2203
        %v2205 = vpop.f32.mrf.mxu0
        %2206 = vmatprep.mubr.bf16.mxu0 %v1458
        %2207 = vmatmul.mubr.bf16.gmra.mxu0 %v1576
        %v2208 = vpop.f32.mrf.mxu0
        %v2209 = vadd.f32 %v2048, %v2208
        %v2210 = vpop.f32.mrf.mxu0
        %v2211 = vpop.f32.mrf.mxu0
        %v2212 = vadd.f32 %v2051, %v2211
        %v2213 = vpop.f32.mrf.mxu0
        %2214 = vmatprep.mubr.bf16.mxu0 %v1461
        %2215 = vmatmul.mubr.bf16.gmra.mxu0 %v1580
        %v2216 = vpop.f32.mrf.mxu0
        %v2217 = vadd.f32 %v2056, %v2216
        %v2218 = vpop.f32.mrf.mxu0
        %v2219 = vpop.f32.mrf.mxu0
        %v2220 = vadd.f32 %v2059, %v2219
        %v2221 = vpop.f32.mrf.mxu0
        %2222 = vmatprep.mubr.bf16.mxu0 %v1464
        %2223 = vmatmul.mubr.bf16.gmra.mxu0 %v1584
        %v2224 = vpop.f32.mrf.mxu0
        %v2225 = vadd.f32 %v2064, %v2224
        %v2226 = vpop.f32.mrf.mxu0
        %v2227 = vpop.f32.mrf.mxu0
        %v2228 = vadd.f32 %v2067, %v2227
        %v2229 = vpop.f32.mrf.mxu0
        %2230 = vmatprep.mubr.bf16.mxu0 %v1595
        %2231 = vmatmul.mubr.bf16.gmra.mxu0 %v1588
        %v2232 = vpop.f32.mrf.mxu0
        %v2233 = vadd.f32 %v2072, %v2232
        %v2234 = vpop.f32.mrf.mxu0
        %v2235 = vpop.f32.mrf.mxu0
        %v2236 = vadd.f32 %v2075, %v2235
        %v2237 = vpop.f32.mrf.mxu0
        %2238 = vmatprep.mubr.bf16.mxu0 %v1419
        %2239 = vmatmul.mubr.bf16.gmra.mxu0 %v1592
        %v2240 = vpop.f32.mrf.mxu0
        %v2241 = vadd.f32 %v2080, %v2240
        %v2242 = vpop.f32.mrf.mxu0
        %v2243 = vpop.f32.mrf.mxu0
        %v2244 = vadd.f32 %v2083, %v2243
        %v2245 = vpop.f32.mrf.mxu0
        %2246 = vdwg.mxu0
        %2247 = vmatprep.subr.bf16.mxu0 0
        %2248 = vmatpush1.bf16.msra.mxu0 0
        %2249 = vmatprep.subr.bf16.mxu0 0
        %2250 = vmatpush1.bf16.msra.mxu0 0
        %2251 = vmatprep.subr.bf16.mxu0 0
        %2252 = vmatpush1.bf16.msra.mxu0 0
        %2253 = vmatprep.subr.bf16.mxu0 0
        %2254 = vmatpush1.bf16.msra.mxu0 0
        %2255 = vmatprep.subr.bf16.mxu0 0
        %2256 = vmatpush1.bf16.msra.mxu0 %v1855
        %2257 = vmatprep.subr.bf16.mxu0 0
        %2258 = vmatpush1.bf16.msra.mxu0 %v1854
        %2259 = vmatprep.subr.bf16.mxu0 0
        %2260 = vmatpush1.bf16.msra.mxu0 %v1853
        %2261 = vmatprep.subr.bf16.mxu0 0
        %2262 = vmatpush1.bf16.msra.mxu0 %v1852
        %2263 = vmatprep.subr.bf16.mxu0 0
        %2264 = vmatpush2.bf16.msra.mxu0 0
        %2265 = vmatprep.subr.bf16.mxu0 0
        %2266 = vmatpush2.bf16.msra.mxu0 0
        %2267 = vmatprep.subr.bf16.mxu0 0
        %2268 = vmatpush2.bf16.msra.mxu0 0
        %2269 = vmatprep.subr.bf16.mxu0 0
        %2270 = vmatpush2.bf16.msra.mxu0 0
        %2271 = vmatprep.subr.bf16.mxu0 0
        %2272 = vmatpush2.bf16.msra.mxu0 0
        %2273 = vmatprep.subr.bf16.mxu0 0
        %2274 = vmatpush2.bf16.msra.mxu0 0
        %2275 = vmatprep.subr.bf16.mxu0 0
        %2276 = vmatpush2.bf16.msra.mxu0 0
        %2277 = vmatprep.subr.bf16.mxu0 0
        %2278 = vmatpush2.bf16.msra.mxu0 0
        %2279 = vmatprep.mubr.bf16.mxu0 0
        %2280 = vmatmul.mubr.bf16.gmra.mxu0 %v1892
        %v2281 = vpop.f32.mrf.mxu0
        %v2282 = vadd.f32 %v2121, %v2281
        %v2283 = vpop.f32.mrf.mxu0
        %v2284 = vpop.f32.mrf.mxu0
        %v2285 = vadd.f32 %v2124, %v2284
        %v2286 = vpop.f32.mrf.mxu0
        %2287 = vmatprep.mubr.bf16.mxu0 0
        %2288 = vmatmul.mubr.bf16.gmra.mxu0 %v1894
        %v2289 = vpop.f32.mrf.mxu0
        %v2290 = vadd.f32 %v2129, %v2289
        %v2291 = vpop.f32.mrf.mxu0
        %v2292 = vpop.f32.mrf.mxu0
        %v2293 = vadd.f32 %v2132, %v2292
        %v2294 = vpop.f32.mrf.mxu0
        %2295 = vmatprep.mubr.bf16.mxu0 0
        %2296 = vmatmul.mubr.bf16.gmra.mxu0 %v1896
        %v2297 = vpop.f32.mrf.mxu0
        %v2298 = vadd.f32 %v2137, %v2297
        %v2299 = vpop.f32.mrf.mxu0
        %v2300 = vpop.f32.mrf.mxu0
        %v2301 = vadd.f32 %v2140, %v2300
        %v2302 = vpop.f32.mrf.mxu0
        %2303 = vmatprep.mubr.bf16.mxu0 0
        %2304 = vmatmul.mubr.bf16.gmra.mxu0 %v1898
        %v2305 = vpop.f32.mrf.mxu0
        %v2306 = vadd.f32 %v2145, %v2305
        %v2307 = vpop.f32.mrf.mxu0
        %v2308 = vpop.f32.mrf.mxu0
        %v2309 = vadd.f32 %v2148, %v2308
        %v2310 = vpop.f32.mrf.mxu0
        %2311 = vmatprep.mubr.bf16.mxu0 0
        %2312 = vmatmul.mubr.bf16.gmra.mxu0 %v1900
        %v2313 = vpop.f32.mrf.mxu0
        %v2314 = vadd.f32 %v2153, %v2313
        %v2315 = vpop.f32.mrf.mxu0
        %v2316 = vpop.f32.mrf.mxu0
        %v2317 = vadd.f32 %v2156, %v2316
        %v2318 = vpop.f32.mrf.mxu0
        %2319 = vmatprep.mubr.bf16.mxu0 0
        %2320 = vmatmul.mubr.bf16.gmra.mxu0 %v1902
        %v2321 = vpop.f32.mrf.mxu0
        %v2322 = vadd.f32 %v2161, %v2321
        %v2323 = vpop.f32.mrf.mxu0
        %v2324 = vpop.f32.mrf.mxu0
        %v2325 = vadd.f32 %v2164, %v2324
        %v2326 = vpop.f32.mrf.mxu0
        %2327 = vmatprep.mubr.bf16.mxu0 0
        %2328 = vmatmul.mubr.bf16.gmra.mxu0 %v1904
        %v2329 = vpop.f32.mrf.mxu0
        %v2330 = vadd.f32 %v2169, %v2329
        %v2331 = vpop.f32.mrf.mxu0
        %v2332 = vpop.f32.mrf.mxu0
        %v2333 = vadd.f32 %v2172, %v2332
        %v2334 = vpop.f32.mrf.mxu0
        %2335 = vmatprep.mubr.bf16.mxu0 0
        %2336 = vmatmul.mubr.bf16.gmra.mxu0 %v1906
        %v2337 = vpop.f32.mrf.mxu0
        %v2338 = vadd.f32 %v2177, %v2337
        %v2339 = vpop.f32.mrf.mxu0
        %v2340 = vpop.f32.mrf.mxu0
        %v2341 = vadd.f32 %v2180, %v2340
        %v2342 = vpop.f32.mrf.mxu0
        %2343 = vmatprep.mubr.bf16.mxu0 0
        %2344 = vmatmul.mubr.bf16.gmra.mxu0 %v1908
        %v2345 = vpop.f32.mrf.mxu0
        %v2346 = vadd.f32 %v2185, %v2345
        %v2347 = vpop.f32.mrf.mxu0
        %v2348 = vpop.f32.mrf.mxu0
        %v2349 = vadd.f32 %v2188, %v2348
        %v2350 = vpop.f32.mrf.mxu0
        %2351 = vmatprep.mubr.bf16.mxu0 0
        %2352 = vmatmul.mubr.bf16.gmra.mxu0 %v1910
        %v2353 = vpop.f32.mrf.mxu0
        %v2354 = vadd.f32 %v2193, %v2353
        %v2355 = vpop.f32.mrf.mxu0
        %v2356 = vpop.f32.mrf.mxu0
        %v2357 = vadd.f32 %v2196, %v2356
        %v2358 = vpop.f32.mrf.mxu0
        %2359 = vmatprep.mubr.bf16.mxu0 0
        %2360 = vmatmul.mubr.bf16.gmra.mxu0 %v1912
        %v2361 = vpop.f32.mrf.mxu0
        %v2362 = vadd.f32 %v2201, %v2361
        %v2363 = vpop.f32.mrf.mxu0
        %v2364 = vpop.f32.mrf.mxu0
        %v2365 = vadd.f32 %v2204, %v2364
        %v2366 = vpop.f32.mrf.mxu0
        %2367 = vmatprep.mubr.bf16.mxu0 0
        %2368 = vmatmul.mubr.bf16.gmra.mxu0 %v1914
        %v2369 = vpop.f32.mrf.mxu0
        %v2370 = vadd.f32 %v2209, %v2369
        %v2371 = vpop.f32.mrf.mxu0
        %v2372 = vpop.f32.mrf.mxu0
        %v2373 = vadd.f32 %v2212, %v2372
        %v2374 = vpop.f32.mrf.mxu0
        %2375 = vmatprep.mubr.bf16.mxu0 0
        %2376 = vmatmul.mubr.bf16.gmra.mxu0 %v1916
        %v2377 = vpop.f32.mrf.mxu0
        %v2378 = vadd.f32 %v2217, %v2377
        %v2379 = vpop.f32.mrf.mxu0
        %v2380 = vpop.f32.mrf.mxu0
        %v2381 = vadd.f32 %v2220, %v2380
        %v2382 = vpop.f32.mrf.mxu0
        %2383 = vmatprep.mubr.bf16.mxu0 0
        %2384 = vmatmul.mubr.bf16.gmra.mxu0 %v1918
        %v2385 = vpop.f32.mrf.mxu0
        %v2386 = vadd.f32 %v2225, %v2385
        %v2387 = vpop.f32.mrf.mxu0
        %v2388 = vpop.f32.mrf.mxu0
        %v2389 = vadd.f32 %v2228, %v2388
        %v2390 = vpop.f32.mrf.mxu0
        %2391 = vmatprep.mubr.bf16.mxu0 0
        %2392 = vmatmul.mubr.bf16.gmra.mxu0 %v1921
        %v2393 = vpop.f32.mrf.mxu0
        %v2394 = vadd.f32 %v2233, %v2393
        %v2395 = vpop.f32.mrf.mxu0
        %v2396 = vpop.f32.mrf.mxu0
        %v2397 = vadd.f32 %v2236, %v2396
        %v2398 = vpop.f32.mrf.mxu0
        %2399 = vmatprep.mubr.bf16.mxu0 0
        %2400 = vmatmul.mubr.bf16.gmra.mxu0 %v1923
        %v2401 = vpop.f32.mrf.mxu0
        %v2402 = vadd.f32 %v2241, %v2401
        %v2403 = vpop.f32.mrf.mxu0
        %v2404 = vpop.f32.mrf.mxu0
        %v2405 = vadd.f32 %v2244, %v2404
        %v2406 = vpop.f32.mrf.mxu0
        %2407 = vdwg.mxu0
        %v2408 = vmax.f32 %v2282, 0.0
        %v2409 = vmax.f32 %v2285, 0.0
        %v2410 = vmax.f32 %v2290, 0.0
        %v2411 = vmax.f32 %v2293, 0.0
        %v2412 = vmax.f32 %v2298, 0.0
        %v2413 = vmax.f32 %v2301, 0.0
        %v2414 = vmax.f32 %v2306, 0.0
        %v2415 = vmax.f32 %v2309, 0.0
        %v2416 = vmax.f32 %v2314, 0.0
        %v2417 = vmax.f32 %v2317, 0.0
        %v2418 = vmax.f32 %v2322, 0.0
        %v2419 = vmax.f32 %v2325, 0.0
        %v2420 = vmax.f32 %v2330, 0.0
        %v2421 = vmax.f32 %v2333, 0.0
        %v2422 = vmax.f32 %v2338, 0.0
        %v2423 = vmax.f32 %v2341, 0.0
        %v2424 = vmax.f32 %v2346, 0.0
        %v2425 = vmax.f32 %v2349, 0.0
        %v2426 = vmax.f32 %v2354, 0.0
        %v2427 = vmax.f32 %v2357, 0.0
        %v2428 = vmax.f32 %v2362, 0.0
        %v2429 = vmax.f32 %v2365, 0.0
        %v2430 = vmax.f32 %v2370, 0.0
        %v2431 = vmax.f32 %v2373, 0.0
        %v2432 = vmax.f32 %v2378, 0.0
        %v2433 = vmax.f32 %v2381, 0.0
        %v2434 = vmax.f32 %v2386, 0.0
        %v2435 = vmax.f32 %v2389, 0.0
        %v2436 = vmax.f32 %v2394, 0.0
        %v2437 = vmax.f32 %v2397, 0.0
        %v2438 = vmax.f32 %v2402, 0.0
        %v2439 = vmax.f32 %v2405, 0.0
        %v2440 = vpack.c.bf16 %v2409, %v2408
        %v2441 = vpack.c.bf16 %v2411, %v2410
        %v2442 = vpack.c.bf16 %v2413, %v2412
        %v2443 = vpack.c.bf16 %v2415, %v2414
        %v2444 = vpack.c.bf16 %v2417, %v2416
        %v2445 = vpack.c.bf16 %v2419, %v2418
        %v2446 = vpack.c.bf16 %v2421, %v2420
        %v2447 = vpack.c.bf16 %v2423, %v2422
        %v2448 = vpack.c.bf16 %v2425, %v2424
        %v2449 = vpack.c.bf16 %v2427, %v2426
        %v2450 = vpack.c.bf16 %v2429, %v2428
        %v2451 = vpack.c.bf16 %v2431, %v2430
        %v2452 = vpack.c.bf16 %v2433, %v2432
        %v2453 = vpack.c.bf16 %v2435, %v2434
        %v2454 = vpack.c.bf16 %v2437, %v2436
        %v2455 = vpack.c.bf16 %v2439, %v2438
        %2472 = vrot.lane.b32.xlu0 %v2440, 80
        %v2473 = vpop.permute.xlu0 %2472
        %2474 = vrot.lane.b32.xlu0 %v2441, 80
        %v2475 = vpop.permute.xlu0 %2474
        %2476 = vrot.lane.b32.xlu0 %v2442, 80
        %v2477 = vpop.permute.xlu0 %2476
        %2478 = vrot.lane.b32.xlu0 %v2443, 80
        %v2479 = vpop.permute.xlu0 %2478
        %2480 = vrot.lane.b32.xlu0 %v2444, 80
        %v2481 = vpop.permute.xlu0 %2480
        %2482 = vrot.lane.b32.xlu0 %v2445, 80
        %v2483 = vpop.permute.xlu0 %2482
        %2484 = vrot.lane.b32.xlu0 %v2446, 80
        %v2485 = vpop.permute.xlu0 %2484
        %2486 = vrot.lane.b32.xlu0 %v2447, 80
        %v2487 = vpop.permute.xlu0 %2486
        %2488 = vrot.lane.b32.xlu0 %v2448, 80
        %v2489 = vpop.permute.xlu0 %2488
        %2490 = vrot.lane.b32.xlu0 %v2449, 80
        %v2491 = vpop.permute.xlu0 %2490
        %2492 = vrot.lane.b32.xlu0 %v2450, 80
        %v2493 = vpop.permute.xlu0 %2492
        %2494 = vrot.lane.b32.xlu0 %v2451, 80
        %v2495 = vpop.permute.xlu0 %2494
        %2496 = vrot.lane.b32.xlu0 %v2452, 80
        %v2497 = vpop.permute.xlu0 %2496
        %2498 = vrot.lane.b32.xlu0 %v2453, 80
        %v2499 = vpop.permute.xlu0 %2498
        %2500 = vrot.lane.b32.xlu0 %v2454, 80
        %v2501 = vpop.permute.xlu0 %2500
        %2502 = vrot.lane.b32.xlu0 %v2455, 80
        %v2503 = vpop.permute.xlu0 %2502
        %v2505 = vshrl.u32 %v2473, 16
        %v2507 = vrot.slane %v2505, 7
        %v2508 = vshll.u32 %v2473, 16
        %v2510 = vor.u32 %v2507, %v2508
        %v2512 = vshrl.u32 %v2475, 16
        %v2514 = vrot.slane %v2512, 7
        %v2515 = vshll.u32 %v2475, 16
        %v2517 = vor.u32 %v2514, %v2515
        %v2519 = vshrl.u32 %v2477, 16
        %v2521 = vrot.slane %v2519, 7
        %v2522 = vshll.u32 %v2477, 16
        %v2524 = vor.u32 %v2521, %v2522
        %v2526 = vshrl.u32 %v2479, 16
        %v2528 = vrot.slane %v2526, 7
        %v2529 = vshll.u32 %v2479, 16
        %v2531 = vor.u32 %v2528, %v2529
        %v2533 = vshrl.u32 %v2481, 16
        %v2535 = vrot.slane %v2533, 7
        %v2536 = vshll.u32 %v2481, 16
        %v2538 = vor.u32 %v2535, %v2536
        %v2540 = vshrl.u32 %v2483, 16
        %v2542 = vrot.slane %v2540, 7
        %v2543 = vshll.u32 %v2483, 16
        %v2545 = vor.u32 %v2542, %v2543
        %v2547 = vshrl.u32 %v2485, 16
        %v2549 = vrot.slane %v2547, 7
        %v2550 = vshll.u32 %v2485, 16
        %v2552 = vor.u32 %v2549, %v2550
        %v2554 = vshrl.u32 %v2487, 16
        %v2556 = vrot.slane %v2554, 7
        %v2557 = vshll.u32 %v2487, 16
        %v2559 = vor.u32 %v2556, %v2557
        %v2561 = vshrl.u32 %v2489, 16
        %v2563 = vrot.slane %v2561, 7
        %v2564 = vshll.u32 %v2489, 16
        %v2566 = vor.u32 %v2563, %v2564
        %v2568 = vshrl.u32 %v2491, 16
        %v2570 = vrot.slane %v2568, 7
        %v2571 = vshll.u32 %v2491, 16
        %v2573 = vor.u32 %v2570, %v2571
        %v2575 = vshrl.u32 %v2493, 16
        %v2577 = vrot.slane %v2575, 7
        %v2578 = vshll.u32 %v2493, 16
        %v2580 = vor.u32 %v2577, %v2578
        %v2582 = vshrl.u32 %v2495, 16
        %v2584 = vrot.slane %v2582, 7
        %v2585 = vshll.u32 %v2495, 16
        %v2587 = vor.u32 %v2584, %v2585
        %v2589 = vshrl.u32 %v2497, 16
        %v2591 = vrot.slane %v2589, 7
        %v2592 = vshll.u32 %v2497, 16
        %v2594 = vor.u32 %v2591, %v2592
        %v2596 = vshrl.u32 %v2499, 16
        %v2598 = vrot.slane %v2596, 7
        %v2599 = vshll.u32 %v2499, 16
        %v2601 = vor.u32 %v2598, %v2599
        %v2603 = vshrl.u32 %v2501, 16
        %v2605 = vrot.slane %v2603, 7
        %v2606 = vshll.u32 %v2501, 16
        %v2608 = vor.u32 %v2605, %v2606
        %v2610 = vshrl.u32 %v2503, 16
        %v2612 = vrot.slane %v2610, 7
        %v2613 = vshll.u32 %v2503, 16
        %v2615 = vor.u32 %v2612, %v2613
        %v2648 = vsel %vm993, 0, %v2510
        %v2649 = vsel %vm993, 0, %v2517
        %v2650 = vsel %vm993, 0, %v2524
        %v2651 = vsel %vm993, 0, %v2531
        %v2652 = vsel %vm993, 0, %v2538
        %v2653 = vsel %vm993, 0, %v2545
        %v2654 = vsel %vm993, 0, %v2552
        %v2655 = vsel %vm993, 0, %v2559
        %v2656 = vsel %vm993, 0, %v2566
        %v2657 = vsel %vm993, 0, %v2573
        %v2658 = vsel %vm993, 0, %v2580
        %v2659 = vsel %vm993, 0, %v2587
        %v2660 = vsel %vm993, 0, %v2594
        %v2661 = vsel %vm993, 0, %v2601
        %v2662 = vsel %vm993, 0, %v2608
        %v2663 = vsel %vm993, 0, %v2615
        %v2664 = vsel %vm993, %v2507, 0
        %v2665 = vsel %vm993, %v2514, 0
        %v2666 = vsel %vm993, %v2521, 0
        %v2667 = vsel %vm993, %v2528, 0
        %v2668 = vsel %vm993, %v2535, 0
        %v2669 = vsel %vm993, %v2542, 0
        %v2670 = vsel %vm993, %v2549, 0
        %v2671 = vsel %vm993, %v2556, 0
        %v2672 = vsel %vm993, %v2563, 0
        %v2673 = vsel %vm993, %v2570, 0
        %v2674 = vsel %vm993, %v2577, 0
        %v2675 = vsel %vm993, %v2584, 0
        %v2676 = vsel %vm993, %v2591, 0
        %v2677 = vsel %vm993, %v2598, 0
        %v2678 = vsel %vm993, %v2605, 0
        %v2679 = vsel %vm993, %v2612, 0
        %v2681 = vshrl.u32 %v2648, 16
        %v2683 = vshll.u32 %v2648, 16
        %v2685 = vrot.slane %v2683, 1
        %v2686 = vor.u32 %v2681, %v2685
        %v2688 = vshll.u32 %v2664, 16
        %v2690 = vrot.slane %v2688, 1
        %v2691 = vsel %vm1028, %v2686, %v2690
        %v2693 = vshrl.u32 %v2649, 16
        %v2695 = vshll.u32 %v2649, 16
        %v2697 = vrot.slane %v2695, 1
        %v2698 = vor.u32 %v2693, %v2697
        %v2700 = vshll.u32 %v2665, 16
        %v2702 = vrot.slane %v2700, 1
        %v2703 = vsel %vm1028, %v2698, %v2702
        %v2705 = vshrl.u32 %v2650, 16
        %v2707 = vshll.u32 %v2650, 16
        %v2709 = vrot.slane %v2707, 1
        %v2710 = vor.u32 %v2705, %v2709
        %v2712 = vshll.u32 %v2666, 16
        %v2714 = vrot.slane %v2712, 1
        %v2715 = vsel %vm1028, %v2710, %v2714
        %v2717 = vshrl.u32 %v2651, 16
        %v2719 = vshll.u32 %v2651, 16
        %v2721 = vrot.slane %v2719, 1
        %v2722 = vor.u32 %v2717, %v2721
        %v2724 = vshll.u32 %v2667, 16
        %v2726 = vrot.slane %v2724, 1
        %v2727 = vsel %vm1028, %v2722, %v2726
        %v2729 = vshrl.u32 %v2652, 16
        %v2731 = vshll.u32 %v2652, 16
        %v2733 = vrot.slane %v2731, 1
        %v2734 = vor.u32 %v2729, %v2733
        %v2736 = vshll.u32 %v2668, 16
        %v2738 = vrot.slane %v2736, 1
        %v2739 = vsel %vm1028, %v2734, %v2738
        %v2741 = vshrl.u32 %v2653, 16
        %v2743 = vshll.u32 %v2653, 16
        %v2745 = vrot.slane %v2743, 1
        %v2746 = vor.u32 %v2741, %v2745
        %v2748 = vshll.u32 %v2669, 16
        %v2750 = vrot.slane %v2748, 1
        %v2751 = vsel %vm1028, %v2746, %v2750
        %v2753 = vshrl.u32 %v2654, 16
        %v2755 = vshll.u32 %v2654, 16
        %v2757 = vrot.slane %v2755, 1
        %v2758 = vor.u32 %v2753, %v2757
        %v2760 = vshll.u32 %v2670, 16
        %v2762 = vrot.slane %v2760, 1
        %v2763 = vsel %vm1028, %v2758, %v2762
        %v2765 = vshrl.u32 %v2655, 16
        %v2767 = vshll.u32 %v2655, 16
        %v2769 = vrot.slane %v2767, 1
        %v2770 = vor.u32 %v2765, %v2769
        %v2772 = vshll.u32 %v2671, 16
        %v2774 = vrot.slane %v2772, 1
        %v2775 = vsel %vm1028, %v2770, %v2774
        %v2777 = vshrl.u32 %v2656, 16
        %v2779 = vshll.u32 %v2656, 16
        %v2781 = vrot.slane %v2779, 1
        %v2782 = vor.u32 %v2777, %v2781
        %v2784 = vshll.u32 %v2672, 16
        %v2786 = vrot.slane %v2784, 1
        %v2787 = vsel %vm1028, %v2782, %v2786
        %v2789 = vshrl.u32 %v2657, 16
        %v2791 = vshll.u32 %v2657, 16
        %v2793 = vrot.slane %v2791, 1
        %v2794 = vor.u32 %v2789, %v2793
        %v2796 = vshll.u32 %v2673, 16
        %v2798 = vrot.slane %v2796, 1
        %v2799 = vsel %vm1028, %v2794, %v2798
        %v2801 = vshrl.u32 %v2658, 16
        %v2803 = vshll.u32 %v2658, 16
        %v2805 = vrot.slane %v2803, 1
        %v2806 = vor.u32 %v2801, %v2805
        %v2808 = vshll.u32 %v2674, 16
        %v2810 = vrot.slane %v2808, 1
        %v2811 = vsel %vm1028, %v2806, %v2810
        %v2813 = vshrl.u32 %v2659, 16
        %v2815 = vshll.u32 %v2659, 16
        %v2817 = vrot.slane %v2815, 1
        %v2818 = vor.u32 %v2813, %v2817
        %v2820 = vshll.u32 %v2675, 16
        %v2822 = vrot.slane %v2820, 1
        %v2823 = vsel %vm1028, %v2818, %v2822
        %v2825 = vshrl.u32 %v2660, 16
        %v2827 = vshll.u32 %v2660, 16
        %v2829 = vrot.slane %v2827, 1
        %v2830 = vor.u32 %v2825, %v2829
        %v2832 = vshll.u32 %v2676, 16
        %v2834 = vrot.slane %v2832, 1
        %v2835 = vsel %vm1028, %v2830, %v2834
        %v2837 = vshrl.u32 %v2661, 16
        %v2839 = vshll.u32 %v2661, 16
        %v2841 = vrot.slane %v2839, 1
        %v2842 = vor.u32 %v2837, %v2841
        %v2844 = vshll.u32 %v2677, 16
        %v2846 = vrot.slane %v2844, 1
        %v2847 = vsel %vm1028, %v2842, %v2846
        %v2849 = vshrl.u32 %v2662, 16
        %v2851 = vshll.u32 %v2662, 16
        %v2853 = vrot.slane %v2851, 1
        %v2854 = vor.u32 %v2849, %v2853
        %v2856 = vshll.u32 %v2678, 16
        %v2858 = vrot.slane %v2856, 1
        %v2859 = vsel %vm1028, %v2854, %v2858
        %v2890 = vrot.slane %v2648, 1
        %v2891 = vrot.slane %v2664, 1
        %v2892 = vsel %vm1253, %v2890, %v2891
        %v2893 = vrot.slane %v2649, 1
        %v2894 = vrot.slane %v2665, 1
        %v2895 = vsel %vm1253, %v2893, %v2894
        %v2896 = vrot.slane %v2650, 1
        %v2897 = vrot.slane %v2666, 1
        %v2898 = vsel %vm1253, %v2896, %v2897
        %v2899 = vrot.slane %v2651, 1
        %v2900 = vrot.slane %v2667, 1
        %v2901 = vsel %vm1253, %v2899, %v2900
        %v2902 = vrot.slane %v2652, 1
        %v2903 = vrot.slane %v2668, 1
        %v2904 = vsel %vm1253, %v2902, %v2903
        %v2905 = vrot.slane %v2653, 1
        %v2906 = vrot.slane %v2669, 1
        %v2907 = vsel %vm1253, %v2905, %v2906
        %v2908 = vrot.slane %v2654, 1
        %v2909 = vrot.slane %v2670, 1
        %v2910 = vsel %vm1253, %v2908, %v2909
        %v2911 = vrot.slane %v2655, 1
        %v2912 = vrot.slane %v2671, 1
        %v2913 = vsel %vm1253, %v2911, %v2912
        %v2914 = vrot.slane %v2656, 1
        %v2915 = vrot.slane %v2672, 1
        %v2916 = vsel %vm1253, %v2914, %v2915
        %v2917 = vrot.slane %v2657, 1
        %v2918 = vrot.slane %v2673, 1
        %v2919 = vsel %vm1253, %v2917, %v2918
        %v2920 = vrot.slane %v2658, 1
        %v2921 = vrot.slane %v2674, 1
        %v2922 = vsel %vm1253, %v2920, %v2921
        %v2923 = vrot.slane %v2659, 1
        %v2924 = vrot.slane %v2675, 1
        %v2925 = vsel %vm1253, %v2923, %v2924
        %v2926 = vrot.slane %v2660, 1
        %v2927 = vrot.slane %v2676, 1
        %v2928 = vsel %vm1253, %v2926, %v2927
        %v2929 = vrot.slane %v2661, 1
        %v2930 = vrot.slane %v2677, 1
        %v2931 = vsel %vm1253, %v2929, %v2930
        %v2932 = vrot.slane %v2662, 1
        %v2933 = vrot.slane %v2678, 1
        %v2934 = vsel %vm1253, %v2932, %v2933
        %v2936 = vshrl.u32 %v2663, 16
        %v2938 = vshll.u32 %v2663, 16
        %v2940 = vrot.slane %v2938, 1
        %v2941 = vor.u32 %v2936, %v2940
        %v2943 = vshll.u32 %v2679, 16
        %v2945 = vrot.slane %v2943, 1
        %v2946 = vsel %vm1028, %v2941, %v2945
        %v2949 = vrot.slane %v2663, 1
        %v2950 = vrot.slane %v2679, 1
        %v2951 = vsel %vm1253, %v2949, %v2950
        %2952 = vrot.lane.b32.xlu0 %v1040, 48
        %v2953 = vpop.permute.xlu0 %2952
        %2954 = vrot.lane.b32.xlu0 %v2691, 48
        %v2955 = vpop.permute.xlu0 %2954
        %2956 = vrot.lane.b32.xlu0 %v2703, 48
        %v2957 = vpop.permute.xlu0 %2956
        %2958 = vrot.lane.b32.xlu0 %v2715, 48
        %v2959 = vpop.permute.xlu0 %2958
        %2960 = vrot.lane.b32.xlu0 %v2727, 48
        %v2961 = vpop.permute.xlu0 %2960
        %2962 = vrot.lane.b32.xlu0 %v2739, 48
        %v2963 = vpop.permute.xlu0 %2962
        %2964 = vrot.lane.b32.xlu0 %v2751, 48
        %v2965 = vpop.permute.xlu0 %2964
        %2966 = vrot.lane.b32.xlu0 %v2763, 48
        %v2967 = vpop.permute.xlu0 %2966
        %2968 = vrot.lane.b32.xlu0 %v2775, 48
        %v2969 = vpop.permute.xlu0 %2968
        %2970 = vrot.lane.b32.xlu0 %v2787, 48
        %v2971 = vpop.permute.xlu0 %2970
        %2972 = vrot.lane.b32.xlu0 %v2799, 48
        %v2973 = vpop.permute.xlu0 %2972
        %2974 = vrot.lane.b32.xlu0 %v2811, 48
        %v2975 = vpop.permute.xlu0 %2974
        %2976 = vrot.lane.b32.xlu0 %v2823, 48
        %v2977 = vpop.permute.xlu0 %2976
        %2978 = vrot.lane.b32.xlu0 %v2835, 48
        %v2979 = vpop.permute.xlu0 %2978
        %2980 = vrot.lane.b32.xlu0 %v2847, 48
        %v2981 = vpop.permute.xlu0 %2980
        %2982 = vrot.lane.b32.xlu0 %v2859, 48
        %v2983 = vpop.permute.xlu0 %2982
        %2984 = vrot.lane.b32.xlu0 %v1256, 96
        %v2985 = vpop.permute.xlu0 %2984
        %2986 = vrot.lane.b32.xlu0 %v2892, 96
        %v2987 = vpop.permute.xlu0 %2986
        %2988 = vrot.lane.b32.xlu0 %v2895, 96
        %v2989 = vpop.permute.xlu0 %2988
        %2990 = vrot.lane.b32.xlu0 %v2898, 96
        %v2991 = vpop.permute.xlu0 %2990
        %2992 = vrot.lane.b32.xlu0 %v2901, 96
        %v2993 = vpop.permute.xlu0 %2992
        %2994 = vrot.lane.b32.xlu0 %v2904, 96
        %v2995 = vpop.permute.xlu0 %2994
        %2996 = vrot.lane.b32.xlu0 %v2907, 96
        %v2997 = vpop.permute.xlu0 %2996
        %2998 = vrot.lane.b32.xlu0 %v2910, 96
        %v2999 = vpop.permute.xlu0 %2998
        %3000 = vrot.lane.b32.xlu0 %v2913, 96
        %v3001 = vpop.permute.xlu0 %3000
        %3002 = vrot.lane.b32.xlu0 %v2916, 96
        %v3003 = vpop.permute.xlu0 %3002
        %3004 = vrot.lane.b32.xlu0 %v2919, 96
        %v3005 = vpop.permute.xlu0 %3004
        %3006 = vrot.lane.b32.xlu0 %v2922, 96
        %v3007 = vpop.permute.xlu0 %3006
        %3008 = vrot.lane.b32.xlu0 %v2925, 96
        %v3009 = vpop.permute.xlu0 %3008
        %3010 = vrot.lane.b32.xlu0 %v2928, 96
        %v3011 = vpop.permute.xlu0 %3010
        %3012 = vrot.lane.b32.xlu0 %v2931, 96
        %v3013 = vpop.permute.xlu0 %3012
        %3014 = vrot.lane.b32.xlu0 %v2934, 96
        %v3015 = vpop.permute.xlu0 %3014
        %3016 = vrot.lane.b32.xlu0 %v2648, 16
        %v3017 = vpop.permute.xlu0 %3016
        %3018 = vrot.lane.b32.xlu0 %v2649, 16
        %v3019 = vpop.permute.xlu0 %3018
        %3020 = vrot.lane.b32.xlu0 %v2650, 16
        %v3021 = vpop.permute.xlu0 %3020
        %3022 = vrot.lane.b32.xlu0 %v2651, 16
        %v3023 = vpop.permute.xlu0 %3022
        %3024 = vrot.lane.b32.xlu0 %v2652, 16
        %v3025 = vpop.permute.xlu0 %3024
        %3026 = vrot.lane.b32.xlu0 %v2653, 16
        %v3027 = vpop.permute.xlu0 %3026
        %3028 = vrot.lane.b32.xlu0 %v2654, 16
        %v3029 = vpop.permute.xlu0 %3028
        %3030 = vrot.lane.b32.xlu0 %v2655, 16
        %v3031 = vpop.permute.xlu0 %3030
        %3032 = vrot.lane.b32.xlu0 %v2656, 16
        %v3033 = vpop.permute.xlu0 %3032
        %3034 = vrot.lane.b32.xlu0 %v2657, 16
        %v3035 = vpop.permute.xlu0 %3034
        %3036 = vrot.lane.b32.xlu0 %v2658, 16
        %v3037 = vpop.permute.xlu0 %3036
        %3038 = vrot.lane.b32.xlu0 %v2659, 16
        %v3039 = vpop.permute.xlu0 %3038
        %3040 = vrot.lane.b32.xlu0 %v2660, 16
        %v3041 = vpop.permute.xlu0 %3040
        %3042 = vrot.lane.b32.xlu0 %v2661, 16
        %v3043 = vpop.permute.xlu0 %3042
        %3044 = vrot.lane.b32.xlu0 %v2662, 16
        %v3045 = vpop.permute.xlu0 %3044
        %3046 = vrot.lane.b32.xlu0 %v2663, 16
        %v3047 = vpop.permute.xlu0 %3046
        %3048 = vrot.lane.b32.xlu0 %v2691, 64
        %v3049 = vpop.permute.xlu0 %3048
        %3050 = vrot.lane.b32.xlu0 %v2703, 64
        %v3051 = vpop.permute.xlu0 %3050
        %3052 = vrot.lane.b32.xlu0 %v2715, 64
        %v3053 = vpop.permute.xlu0 %3052
        %3054 = vrot.lane.b32.xlu0 %v2727, 64
        %v3055 = vpop.permute.xlu0 %3054
        %3056 = vrot.lane.b32.xlu0 %v2739, 64
        %v3057 = vpop.permute.xlu0 %3056
        %3058 = vrot.lane.b32.xlu0 %v2751, 64
        %v3059 = vpop.permute.xlu0 %3058
        %3060 = vrot.lane.b32.xlu0 %v2763, 64
        %v3061 = vpop.permute.xlu0 %3060
        %3062 = vrot.lane.b32.xlu0 %v2775, 64
        %v3063 = vpop.permute.xlu0 %3062
        %3064 = vrot.lane.b32.xlu0 %v2787, 64
        %v3065 = vpop.permute.xlu0 %3064
        %3066 = vrot.lane.b32.xlu0 %v2799, 64
        %v3067 = vpop.permute.xlu0 %3066
        %3068 = vrot.lane.b32.xlu0 %v2811, 64
        %v3069 = vpop.permute.xlu0 %3068
        %3070 = vrot.lane.b32.xlu0 %v2823, 64
        %v3071 = vpop.permute.xlu0 %3070
        %3072 = vrot.lane.b32.xlu0 %v2835, 64
        %v3073 = vpop.permute.xlu0 %3072
        %3074 = vrot.lane.b32.xlu0 %v2847, 64
        %v3075 = vpop.permute.xlu0 %3074
        %3076 = vrot.lane.b32.xlu0 %v2859, 64
        %v3077 = vpop.permute.xlu0 %3076
        %3078 = vrot.lane.b32.xlu0 %v2946, 64
        %v3079 = vpop.permute.xlu0 %3078
        %3080 = vrot.lane.b32.xlu0 %v2892, 112
        %v3081 = vpop.permute.xlu0 %3080
        %3082 = vrot.lane.b32.xlu0 %v2895, 112
        %v3083 = vpop.permute.xlu0 %3082
        %3084 = vrot.lane.b32.xlu0 %v2898, 112
        %v3085 = vpop.permute.xlu0 %3084
        %3086 = vrot.lane.b32.xlu0 %v2901, 112
        %v3087 = vpop.permute.xlu0 %3086
        %3088 = vrot.lane.b32.xlu0 %v2904, 112
        %v3089 = vpop.permute.xlu0 %3088
        %3090 = vrot.lane.b32.xlu0 %v2907, 112
        %v3091 = vpop.permute.xlu0 %3090
        %3092 = vrot.lane.b32.xlu0 %v2910, 112
        %v3093 = vpop.permute.xlu0 %3092
        %3094 = vrot.lane.b32.xlu0 %v2913, 112
        %v3095 = vpop.permute.xlu0 %3094
        %3096 = vrot.lane.b32.xlu0 %v2916, 112
        %v3097 = vpop.permute.xlu0 %3096
        %3098 = vrot.lane.b32.xlu0 %v2919, 112
        %v3099 = vpop.permute.xlu0 %3098
        %3100 = vrot.lane.b32.xlu0 %v2922, 112
        %v3101 = vpop.permute.xlu0 %3100
        %3102 = vrot.lane.b32.xlu0 %v2925, 112
        %v3103 = vpop.permute.xlu0 %3102
        %3104 = vrot.lane.b32.xlu0 %v2928, 112
        %v3105 = vpop.permute.xlu0 %3104
        %3106 = vrot.lane.b32.xlu0 %v2931, 112
        %v3107 = vpop.permute.xlu0 %3106
        %3108 = vrot.lane.b32.xlu0 %v2934, 112
        %v3109 = vpop.permute.xlu0 %3108
        %3110 = vrot.lane.b32.xlu0 %v2951, 112
        %v3111 = vpop.permute.xlu0 %3110
        %3112 = vrot.lane.b32.xlu0 %v2649, 32
        %v3113 = vpop.permute.xlu0 %3112
        %3114 = vrot.lane.b32.xlu0 %v2650, 32
        %v3115 = vpop.permute.xlu0 %3114
        %3116 = vrot.lane.b32.xlu0 %v2651, 32
        %v3117 = vpop.permute.xlu0 %3116
        %3118 = vrot.lane.b32.xlu0 %v2652, 32
        %v3119 = vpop.permute.xlu0 %3118
        %3120 = vrot.lane.b32.xlu0 %v2653, 32
        %v3121 = vpop.permute.xlu0 %3120
        %3122 = vrot.lane.b32.xlu0 %v2654, 32
        %v3123 = vpop.permute.xlu0 %3122
        %3124 = vrot.lane.b32.xlu0 %v2655, 32
        %v3125 = vpop.permute.xlu0 %3124
        %3126 = vrot.lane.b32.xlu0 %v2656, 32
        %v3127 = vpop.permute.xlu0 %3126
        %3128 = vrot.lane.b32.xlu0 %v2657, 32
        %v3129 = vpop.permute.xlu0 %3128
        %3130 = vrot.lane.b32.xlu0 %v2658, 32
        %v3131 = vpop.permute.xlu0 %3130
        %3132 = vrot.lane.b32.xlu0 %v2659, 32
        %v3133 = vpop.permute.xlu0 %3132
        %3134 = vrot.lane.b32.xlu0 %v2660, 32
        %v3135 = vpop.permute.xlu0 %3134
        %3136 = vrot.lane.b32.xlu0 %v2661, 32
        %v3137 = vpop.permute.xlu0 %3136
        %3138 = vrot.lane.b32.xlu0 %v2662, 32
        %v3139 = vpop.permute.xlu0 %3138
        %3140 = vrot.lane.b32.xlu0 %v2663, 32
        %v3141 = vpop.permute.xlu0 %3140
        %3142 = vrot.lane.b32.xlu0 %v994, 32
        %v3143 = vpop.permute.xlu0 %3142
        %3144 = vrot.lane.b32.xlu0 %v2703, 80
        %v3145 = vpop.permute.xlu0 %3144
        %3146 = vrot.lane.b32.xlu0 %v2715, 80
        %v3147 = vpop.permute.xlu0 %3146
        %3148 = vrot.lane.b32.xlu0 %v2727, 80
        %v3149 = vpop.permute.xlu0 %3148
        %3150 = vrot.lane.b32.xlu0 %v2739, 80
        %v3151 = vpop.permute.xlu0 %3150
        %3152 = vrot.lane.b32.xlu0 %v2751, 80
        %v3153 = vpop.permute.xlu0 %3152
        %3154 = vrot.lane.b32.xlu0 %v2763, 80
        %v3155 = vpop.permute.xlu0 %3154
        %3156 = vrot.lane.b32.xlu0 %v2775, 80
        %v3157 = vpop.permute.xlu0 %3156
        %3158 = vrot.lane.b32.xlu0 %v2787, 80
        %v3159 = vpop.permute.xlu0 %3158
        %3160 = vrot.lane.b32.xlu0 %v2799, 80
        %v3161 = vpop.permute.xlu0 %3160
        %3162 = vrot.lane.b32.xlu0 %v2811, 80
        %v3163 = vpop.permute.xlu0 %3162
        %3164 = vrot.lane.b32.xlu0 %v2823, 80
        %v3165 = vpop.permute.xlu0 %3164
        %3166 = vrot.lane.b32.xlu0 %v2835, 80
        %v3167 = vpop.permute.xlu0 %3166
        %3168 = vrot.lane.b32.xlu0 %v2847, 80
        %v3169 = vpop.permute.xlu0 %3168
        %3170 = vrot.lane.b32.xlu0 %v2859, 80
        %v3171 = vpop.permute.xlu0 %3170
        %3172 = vrot.lane.b32.xlu0 %v2946, 80
        %v3173 = vpop.permute.xlu0 %3172
        %3174 = vrot.lane.b32.xlu0 %v1040, 80
        %v3175 = vpop.permute.xlu0 %3174
        %vm3176 = vcmask 392192
        %v3178 = vsel %vm3176, %v994, %v2953
        %v3180 = vsel %vm3176, %v2648, %v2955
        %v3182 = vsel %vm3176, %v2649, %v2957
        %v3184 = vsel %vm3176, %v2650, %v2959
        %v3186 = vsel %vm3176, %v2651, %v2961
        %v3188 = vsel %vm3176, %v2652, %v2963
        %v3190 = vsel %vm3176, %v2653, %v2965
        %v3192 = vsel %vm3176, %v2654, %v2967
        %v3194 = vsel %vm3176, %v2655, %v2969
        %v3196 = vsel %vm3176, %v2656, %v2971
        %v3198 = vsel %vm3176, %v2657, %v2973
        %v3200 = vsel %vm3176, %v2658, %v2975
        %v3202 = vsel %vm3176, %v2659, %v2977
        %v3204 = vsel %vm3176, %v2660, %v2979
        %v3206 = vsel %vm3176, %v2661, %v2981
        %v3208 = vsel %vm3176, %v2662, %v2983
        %vm3209 = vcmask 785408
        %v3211 = vsel %vm3209, %v3178, %v2985
        %v3214 = vsel %vm3209, %v3180, %v2987
        %v3217 = vsel %vm3209, %v3182, %v2989
        %v3220 = vsel %vm3209, %v3184, %v2991
        %v3223 = vsel %vm3209, %v3186, %v2993
        %v3226 = vsel %vm3209, %v3188, %v2995
        %v3229 = vsel %vm3209, %v3190, %v2997
        %v3232 = vsel %vm3209, %v3192, %v2999
        %v3235 = vsel %vm3209, %v3194, %v3001
        %v3238 = vsel %vm3209, %v3196, %v3003
        %v3241 = vsel %vm3209, %v3198, %v3005
        %v3244 = vsel %vm3209, %v3200, %v3007
        %v3247 = vsel %vm3209, %v3202, %v3009
        %v3250 = vsel %vm3209, %v3204, %v3011
        %v3253 = vsel %vm3209, %v3206, %v3013
        %v3256 = vsel %vm3209, %v3208, %v3015
        %vm3258 = vcmask 130048
        %v3260 = vsel %vm3258, %v2985, %v3017
        %v3262 = vsel %vm3258, %v2987, %v3019
        %v3264 = vsel %vm3258, %v2989, %v3021
        %v3266 = vsel %vm3258, %v2991, %v3023
        %v3268 = vsel %vm3258, %v2993, %v3025
        %v3270 = vsel %vm3258, %v2995, %v3027
        %v3272 = vsel %vm3258, %v2997, %v3029
        %v3274 = vsel %vm3258, %v2999, %v3031
        %v3276 = vsel %vm3258, %v3001, %v3033
        %v3278 = vsel %vm3258, %v3003, %v3035
        %v3280 = vsel %vm3258, %v3005, %v3037
        %v3282 = vsel %vm3258, %v3007, %v3039
        %v3284 = vsel %vm3258, %v3009, %v3041
        %v3286 = vsel %vm3258, %v3011, %v3043
        %v3288 = vsel %vm3258, %v3013, %v3045
        %v3290 = vsel %vm3258, %v3015, %v3047
        %v3292 = vsel %vm1417, %v3260, %v3049
        %v3294 = vsel %vm1417, %v3262, %v3051
        %v3296 = vsel %vm1417, %v3264, %v3053
        %v3298 = vsel %vm1417, %v3266, %v3055
        %v3300 = vsel %vm1417, %v3268, %v3057
        %v3302 = vsel %vm1417, %v3270, %v3059
        %v3304 = vsel %vm1417, %v3272, %v3061
        %v3306 = vsel %vm1417, %v3274, %v3063
        %v3308 = vsel %vm1417, %v3276, %v3065
        %v3310 = vsel %vm1417, %v3278, %v3067
        %v3312 = vsel %vm1417, %v3280, %v3069
        %v3314 = vsel %vm1417, %v3282, %v3071
        %v3316 = vsel %vm1417, %v3284, %v3073
        %v3318 = vsel %vm1417, %v3286, %v3075
        %v3320 = vsel %vm1417, %v3288, %v3077
        %v3322 = vsel %vm1417, %v3290, %v3079
        %vm3323 = vcmask 916480
        %v3325 = vsel %vm3323, %v3292, %v3081
        %v3328 = vsel %vm3323, %v3294, %v3083
        %v3331 = vsel %vm3323, %v3296, %v3085
        %v3334 = vsel %vm3323, %v3298, %v3087
        %v3337 = vsel %vm3323, %v3300, %v3089
        %v3340 = vsel %vm3323, %v3302, %v3091
        %v3343 = vsel %vm3323, %v3304, %v3093
        %v3346 = vsel %vm3323, %v3306, %v3095
        %v3349 = vsel %vm3323, %v3308, %v3097
        %v3352 = vsel %vm3323, %v3310, %v3099
        %v3355 = vsel %vm3323, %v3312, %v3101
        %v3358 = vsel %vm3323, %v3314, %v3103
        %v3361 = vsel %vm3323, %v3316, %v3105
        %v3364 = vsel %vm3323, %v3318, %v3107
        %v3367 = vsel %vm3323, %v3320, %v3109
        %v3370 = vsel %vm3323, %v3322, %v3111
        %vm3372 = vcmask 261120
        %v3374 = vsel %vm3372, %v3081, %v3113
        %v3376 = vsel %vm3372, %v3083, %v3115
        %v3378 = vsel %vm3372, %v3085, %v3117
        %v3380 = vsel %vm3372, %v3087, %v3119
        %v3382 = vsel %vm3372, %v3089, %v3121
        %v3384 = vsel %vm3372, %v3091, %v3123
        %v3386 = vsel %vm3372, %v3093, %v3125
        %v3388 = vsel %vm3372, %v3095, %v3127
        %v3390 = vsel %vm3372, %v3097, %v3129
        %v3392 = vsel %vm3372, %v3099, %v3131
        %v3394 = vsel %vm3372, %v3101, %v3133
        %v3396 = vsel %vm3372, %v3103, %v3135
        %v3398 = vsel %vm3372, %v3105, %v3137
        %v3400 = vsel %vm3372, %v3107, %v3139
        %v3402 = vsel %vm3372, %v3109, %v3141
        %v3404 = vsel %vm3372, %v3111, %v3143
        %vm3405 = vcmask 654336
        %v3407 = vsel %vm3405, %v3374, %v3145
        %v3410 = vsel %vm3405, %v3376, %v3147
        %v3413 = vsel %vm3405, %v3378, %v3149
        %v3416 = vsel %vm3405, %v3380, %v3151
        %v3419 = vsel %vm3405, %v3382, %v3153
        %v3422 = vsel %vm3405, %v3384, %v3155
        %v3425 = vsel %vm3405, %v3386, %v3157
        %v3428 = vsel %vm3405, %v3388, %v3159
        %v3431 = vsel %vm3405, %v3390, %v3161
        %v3434 = vsel %vm3405, %v3392, %v3163
        %v3437 = vsel %vm3405, %v3394, %v3165
        %v3440 = vsel %vm3405, %v3396, %v3167
        %v3443 = vsel %vm3405, %v3398, %v3169
        %v3446 = vsel %vm3405, %v3400, %v3171
        %v3449 = vsel %vm3405, %v3402, %v3173
        %v3452 = vsel %vm3405, %v3404, %v3175
        %v3454 = vld [vmem:[%s5] sm:$0xf]
        %v3455 = vld [vmem:[%s5 + $0x4] sm:$0xf]
        %v3456 = vld [vmem:[%s5 + $0x8] sm:$0xf]
        %v3457 = vld [vmem:[%s5 + $0xc] sm:$0xf]
        %v3458 = vld [vmem:[%s5 + $0x10] sm:$0xf]
        %v3459 = vld [vmem:[%s5 + $0x14] sm:$0xf]
        %v3460 = vld [vmem:[%s5 + $0x18] sm:$0xf]
        %v3461 = vld [vmem:[%s5 + $0x1c] sm:$0xf]
        %v3462 = vld [vmem:[%s5 + $0x20] sm:$0xf]
        %v3463 = vld [vmem:[%s5 + $0x24] sm:$0xf]
        %v3464 = vld [vmem:[%s5 + $0x28] sm:$0xf]
        %v3465 = vld [vmem:[%s5 + $0x2c] sm:$0xf]
        %v3466 = vld [vmem:[%s5 + $0x30] sm:$0xf]
        %v3467 = vld [vmem:[%s5 + $0x34] sm:$0xf]
        %v3468 = vld [vmem:[%s5 + $0x38] sm:$0xf]
        %v3469 = vld [vmem:[%s5 + $0x3c] sm:$0xf]
        %v3470 = vld [vmem:[%s5 + $0x40] sm:$0xf]
        %v3471 = vld [vmem:[%s5 + $0x44] sm:$0xf]
        %v3472 = vld [vmem:[%s5 + $0x48] sm:$0xf]
        %v3473 = vld [vmem:[%s5 + $0x4c] sm:$0xf]
        %v3474 = vld [vmem:[%s5 + $0x50] sm:$0xf]
        %v3475 = vld [vmem:[%s5 + $0x54] sm:$0xf]
        %v3476 = vld [vmem:[%s5 + $0x58] sm:$0xf]
        %v3477 = vld [vmem:[%s5 + $0x5c] sm:$0xf]
        %v3478 = vld [vmem:[%s5 + $0x60] sm:$0xf]
        %v3479 = vld [vmem:[%s5 + $0x64] sm:$0xf]
        %v3480 = vld [vmem:[%s5 + $0x68] sm:$0xf]
        %v3481 = vld [vmem:[%s5 + $0x6c] sm:$0xf]
        %v3482 = vld [vmem:[%s5 + $0x70] sm:$0xf]
        %v3483 = vld [vmem:[%s5 + $0x74] sm:$0xf]
        %v3484 = vld [vmem:[%s5 + $0x78] sm:$0xf]
        %v3485 = vld [vmem:[%s5 + $0x7c] sm:$0xf]
        %v3486 = vld [vmem:[%s5 + $0x80] sm:$0xf]
        %v3487 = vld [vmem:[%s5 + $0x84] sm:$0xf]
        %v3488 = vld [vmem:[%s5 + $0x88] sm:$0xf]
        %v3489 = vld [vmem:[%s5 + $0x8c] sm:$0xf]
        %v3490 = vld [vmem:[%s5 + $0x90] sm:$0xf]
        %v3491 = vld [vmem:[%s5 + $0x94] sm:$0xf]
        %v3492 = vld [vmem:[%s5 + $0x98] sm:$0xf]
        %v3493 = vld [vmem:[%s5 + $0x9c] sm:$0xf]
        %v3494 = vld [vmem:[%s5 + $0xa0] sm:$0xf]
        %v3495 = vld [vmem:[%s5 + $0xa4] sm:$0xf]
        %v3496 = vld [vmem:[%s5 + $0xa8] sm:$0xf]
        %v3497 = vld [vmem:[%s5 + $0xac] sm:$0xf]
        %v3498 = vld [vmem:[%s5 + $0xb0] sm:$0xf]
        %v3499 = vld [vmem:[%s5 + $0xb4] sm:$0xf]
        %v3500 = vld [vmem:[%s5 + $0xb8] sm:$0xf]
        %v3501 = vld [vmem:[%s5 + $0xbc] sm:$0xf]
        %v3502 = vld [vmem:[%s5 + $0xc0] sm:$0xf]
        %v3503 = vld [vmem:[%s5 + $0xc4] sm:$0xf]
        %v3504 = vld [vmem:[%s5 + $0xc8] sm:$0xf]
        %v3505 = vld [vmem:[%s5 + $0xcc] sm:$0xf]
        %v3506 = vld [vmem:[%s5 + $0xd0] sm:$0xf]
        %v3507 = vld [vmem:[%s5 + $0xd4] sm:$0xf]
        %v3508 = vld [vmem:[%s6] sm:$0x1]
        %v3510 = vlaneseq
        %v3511 = vshrl.u32 %v3510, 7
        %v3512 = vsub.s32 0, %v3511
        %v3513 = vrot.slane %v3508, %v3512
        %v3569 = vunpack.c.l.b16 %v3454
        %v3570 = vunpack.c.l.b16 %v3455
        %v3571 = vunpack.c.l.b16 %v3456
        %v3572 = vunpack.c.l.b16 %v3457
        %v3573 = vunpack.c.l.b16 %v3458
        %v3574 = vunpack.c.l.b16 %v3459
        %v3575 = vunpack.c.l.b16 %v3460
        %v3576 = vunpack.c.l.b16 %v3461
        %v3577 = vunpack.c.l.b16 %v3462
        %v3578 = vunpack.c.l.b16 %v3463
        %v3579 = vunpack.c.l.b16 %v3464
        %v3580 = vunpack.c.l.b16 %v3465
        %v3581 = vunpack.c.l.b16 %v3466
        %v3582 = vunpack.c.l.b16 %v3467
        %v3583 = vunpack.c.l.b16 %v3468
        %v3584 = vunpack.c.l.b16 %v3469
        %v3585 = vunpack.c.l.b16 %v3470
        %v3586 = vunpack.c.l.b16 %v3471
        %v3587 = vunpack.c.l.b16 %v3472
        %v3588 = vunpack.c.l.b16 %v3473
        %v3589 = vunpack.c.l.b16 %v3474
        %v3590 = vunpack.c.l.b16 %v3475
        %v3591 = vunpack.c.l.b16 %v3476
        %v3592 = vunpack.c.l.b16 %v3477
        %v3593 = vunpack.c.l.b16 %v3478
        %v3594 = vunpack.c.l.b16 %v3479
        %v3595 = vunpack.c.l.b16 %v3480
        %v3596 = vunpack.c.l.b16 %v3481
        %v3597 = vunpack.c.l.b16 %v3482
        %v3598 = vunpack.c.l.b16 %v3483
        %v3599 = vunpack.c.l.b16 %v3484
        %v3600 = vunpack.c.l.b16 %v3485
        %v3601 = vunpack.c.l.b16 %v3486
        %v3602 = vunpack.c.l.b16 %v3487
        %v3603 = vunpack.c.l.b16 %v3488
        %v3604 = vunpack.c.l.b16 %v3489
        %v3605 = vunpack.c.l.b16 %v3490
        %v3606 = vunpack.c.l.b16 %v3491
        %v3607 = vunpack.c.l.b16 %v3492
        %v3608 = vunpack.c.l.b16 %v3493
        %v3609 = vunpack.c.l.b16 %v3494
        %v3610 = vunpack.c.l.b16 %v3495
        %v3611 = vunpack.c.l.b16 %v3496
        %v3612 = vunpack.c.l.b16 %v3497
        %v3613 = vunpack.c.l.b16 %v3498
        %v3614 = vunpack.c.l.b16 %v3499
        %v3615 = vunpack.c.l.b16 %v3500
        %v3616 = vunpack.c.l.b16 %v3501
        %v3617 = vunpack.c.l.b16 %v3502
        %v3618 = vunpack.c.l.b16 %v3503
        %v3619 = vunpack.c.l.b16 %v3504
        %v3620 = vunpack.c.l.b16 %v3505
        %v3621 = vunpack.c.l.b16 %v3506
        %v3622 = vunpack.c.l.b16 %v3507
        %v3623 = vpack.c.b16 %v3570, %v3569
        %v3624 = vpack.c.b16 %v3572, %v3571
        %v3625 = vpack.c.b16 %v3574, %v3573
        %v3626 = vpack.c.b16 %v3576, %v3575
        %v3627 = vpack.c.b16 %v3578, %v3577
        %v3628 = vpack.c.b16 %v3580, %v3579
        %v3629 = vpack.c.b16 %v3582, %v3581
        %v3630 = vpack.c.b16 %v3584, %v3583
        %v3631 = vpack.c.b16 %v3586, %v3585
        %v3632 = vpack.c.b16 %v3588, %v3587
        %v3633 = vpack.c.b16 %v3590, %v3589
        %v3634 = vpack.c.b16 %v3592, %v3591
        %v3635 = vpack.c.b16 %v3594, %v3593
        %v3636 = vpack.c.b16 %v3596, %v3595
        %v3637 = vpack.c.b16 %v3598, %v3597
        %v3638 = vpack.c.b16 %v3600, %v3599
        %v3639 = vpack.c.b16 %v3602, %v3601
        %v3640 = vpack.c.b16 %v3604, %v3603
        %v3641 = vpack.c.b16 %v3606, %v3605
        %v3642 = vpack.c.b16 %v3608, %v3607
        %v3643 = vpack.c.b16 %v3610, %v3609
        %v3644 = vpack.c.b16 %v3612, %v3611
        %v3645 = vpack.c.b16 %v3614, %v3613
        %v3646 = vpack.c.b16 %v3616, %v3615
        %v3647 = vpack.c.b16 %v3618, %v3617
        %v3648 = vpack.c.b16 %v3620, %v3619
        %v3649 = vpack.c.b16 %v3622, %v3621
        %v3678 = vsel %vm3176, %v2895, 0
        %v3681 = vsel %vm3176, %v2898, 0
        %v3684 = vsel %vm3176, %v2901, 0
        %v3687 = vsel %vm3176, %v2904, 0
        %v3690 = vsel %vm3176, %v2907, 0
        %v3693 = vsel %vm3176, %v2910, 0
        %v3696 = vsel %vm3176, %v2913, 0
        %v3699 = vsel %vm3176, %v2916, 0
        %v3702 = vsel %vm3176, %v2919, 0
        %v3705 = vsel %vm3176, %v2922, 0
        %v3708 = vsel %vm3176, %v2925, 0
        %v3711 = vsel %vm3176, %v2928, 0
        %v3714 = vsel %vm3176, %v2931, 0
        %v3717 = vsel %vm3176, %v2934, 0
        %v3720 = vsel %vm3176, %v2951, 0
        %v3722 = vsel %vm3176, %v1256, 0
        %3724 = vmatprep.subr.bf16.mxu0 0
        %3725 = vmatpush1.bf16.msra.mxu0 %v3630
        %3726 = vmatprep.subr.bf16.mxu0 0
        %3727 = vmatpush1.bf16.msra.mxu0 %v3629
        %3728 = vmatprep.subr.bf16.mxu0 0
        %3729 = vmatpush1.bf16.msra.mxu0 %v3628
        %3730 = vmatprep.subr.bf16.mxu0 0
        %3731 = vmatpush1.bf16.msra.mxu0 %v3627
        %3732 = vmatprep.subr.bf16.mxu0 0
        %3733 = vmatpush1.bf16.msra.mxu0 %v3626
        %3734 = vmatprep.subr.bf16.mxu0 0
        %3735 = vmatpush1.bf16.msra.mxu0 %v3625
        %3736 = vmatprep.subr.bf16.mxu0 0
        %3737 = vmatpush1.bf16.msra.mxu0 %v3624
        %3738 = vmatprep.subr.bf16.mxu0 0
        %3739 = vmatpush1.bf16.msra.mxu0 %v3623
        %3740 = vmatprep.subr.bf16.mxu0 0
        %3741 = vmatpush2.bf16.msra.mxu0 %v3638
        %3742 = vmatprep.subr.bf16.mxu0 0
        %3743 = vmatpush2.bf16.msra.mxu0 %v3637
        %3744 = vmatprep.subr.bf16.mxu0 0
        %3745 = vmatpush2.bf16.msra.mxu0 %v3636
        %3746 = vmatprep.subr.bf16.mxu0 0
        %3747 = vmatpush2.bf16.msra.mxu0 %v3635
        %3748 = vmatprep.subr.bf16.mxu0 0
        %3749 = vmatpush2.bf16.msra.mxu0 %v3634
        %3750 = vmatprep.subr.bf16.mxu0 0
        %3751 = vmatpush2.bf16.msra.mxu0 %v3633
        %3752 = vmatprep.subr.bf16.mxu0 0
        %3753 = vmatpush2.bf16.msra.mxu0 %v3632
        %3754 = vmatprep.subr.bf16.mxu0 0
        %3755 = vmatpush2.bf16.msra.mxu0 %v3631
        %3756 = vmatprep.mubr.bf16.mxu0 %v3325
        %3757 = vmatmul.mubr.bf16.gmra.mxu0 %v3211
        %v3758 = vpop.f32.mrf.mxu0
        %v3759 = vadd.f32 %v3513, %v3758
        %v3760 = vpop.f32.mrf.mxu0
        %v3761 = vpop.f32.mrf.mxu0
        %v3762 = vadd.f32 %v3513, %v3761
        %v3763 = vpop.f32.mrf.mxu0
        %3764 = vmatprep.mubr.bf16.mxu0 %v3328
        %3765 = vmatmul.mubr.bf16.gmra.mxu0 %v3214
        %v3766 = vpop.f32.mrf.mxu0
        %v3767 = vadd.f32 %v3513, %v3766
        %v3768 = vpop.f32.mrf.mxu0
        %v3769 = vpop.f32.mrf.mxu0
        %v3770 = vadd.f32 %v3513, %v3769
        %v3771 = vpop.f32.mrf.mxu0
        %3772 = vmatprep.mubr.bf16.mxu0 %v3331
        %3773 = vmatmul.mubr.bf16.gmra.mxu0 %v3217
        %v3774 = vpop.f32.mrf.mxu0
        %v3775 = vadd.f32 %v3513, %v3774
        %v3776 = vpop.f32.mrf.mxu0
        %v3777 = vpop.f32.mrf.mxu0
        %v3778 = vadd.f32 %v3513, %v3777
        %v3779 = vpop.f32.mrf.mxu0
        %3780 = vmatprep.mubr.bf16.mxu0 %v3334
        %3781 = vmatmul.mubr.bf16.gmra.mxu0 %v3220
        %v3782 = vpop.f32.mrf.mxu0
        %v3783 = vadd.f32 %v3513, %v3782
        %v3784 = vpop.f32.mrf.mxu0
        %v3785 = vpop.f32.mrf.mxu0
        %v3786 = vadd.f32 %v3513, %v3785
        %v3787 = vpop.f32.mrf.mxu0
        %3788 = vmatprep.mubr.bf16.mxu0 %v3337
        %3789 = vmatmul.mubr.bf16.gmra.mxu0 %v3223
        %v3790 = vpop.f32.mrf.mxu0
        %v3791 = vadd.f32 %v3513, %v3790
        %v3792 = vpop.f32.mrf.mxu0
        %v3793 = vpop.f32.mrf.mxu0
        %v3794 = vadd.f32 %v3513, %v3793
        %v3795 = vpop.f32.mrf.mxu0
        %3796 = vmatprep.mubr.bf16.mxu0 %v3340
        %3797 = vmatmul.mubr.bf16.gmra.mxu0 %v3226
        %v3798 = vpop.f32.mrf.mxu0
        %v3799 = vadd.f32 %v3513, %v3798
        %v3800 = vpop.f32.mrf.mxu0
        %v3801 = vpop.f32.mrf.mxu0
        %v3802 = vadd.f32 %v3513, %v3801
        %v3803 = vpop.f32.mrf.mxu0
        %3804 = vmatprep.mubr.bf16.mxu0 %v3343
        %3805 = vmatmul.mubr.bf16.gmra.mxu0 %v3229
        %v3806 = vpop.f32.mrf.mxu0
        %v3807 = vadd.f32 %v3513, %v3806
        %v3808 = vpop.f32.mrf.mxu0
        %v3809 = vpop.f32.mrf.mxu0
        %v3810 = vadd.f32 %v3513, %v3809
        %v3811 = vpop.f32.mrf.mxu0
        %3812 = vmatprep.mubr.bf16.mxu0 %v3346
        %3813 = vmatmul.mubr.bf16.gmra.mxu0 %v3232
        %v3814 = vpop.f32.mrf.mxu0
        %v3815 = vadd.f32 %v3513, %v3814
        %v3816 = vpop.f32.mrf.mxu0
        %v3817 = vpop.f32.mrf.mxu0
        %v3818 = vadd.f32 %v3513, %v3817
        %v3819 = vpop.f32.mrf.mxu0
        %3820 = vmatprep.mubr.bf16.mxu0 %v3349
        %3821 = vmatmul.mubr.bf16.gmra.mxu0 %v3235
        %v3822 = vpop.f32.mrf.mxu0
        %v3823 = vadd.f32 %v3513, %v3822
        %v3824 = vpop.f32.mrf.mxu0
        %v3825 = vpop.f32.mrf.mxu0
        %v3826 = vadd.f32 %v3513, %v3825
        %v3827 = vpop.f32.mrf.mxu0
        %3828 = vmatprep.mubr.bf16.mxu0 %v3352
        %3829 = vmatmul.mubr.bf16.gmra.mxu0 %v3238
        %v3830 = vpop.f32.mrf.mxu0
        %v3831 = vadd.f32 %v3513, %v3830
        %v3832 = vpop.f32.mrf.mxu0
        %v3833 = vpop.f32.mrf.mxu0
        %v3834 = vadd.f32 %v3513, %v3833
        %v3835 = vpop.f32.mrf.mxu0
        %3836 = vmatprep.mubr.bf16.mxu0 %v3355
        %3837 = vmatmul.mubr.bf16.gmra.mxu0 %v3241
        %v3838 = vpop.f32.mrf.mxu0
        %v3839 = vadd.f32 %v3513, %v3838
        %v3840 = vpop.f32.mrf.mxu0
        %v3841 = vpop.f32.mrf.mxu0
        %v3842 = vadd.f32 %v3513, %v3841
        %v3843 = vpop.f32.mrf.mxu0
        %3844 = vmatprep.mubr.bf16.mxu0 %v3358
        %3845 = vmatmul.mubr.bf16.gmra.mxu0 %v3244
        %v3846 = vpop.f32.mrf.mxu0
        %v3847 = vadd.f32 %v3513, %v3846
        %v3848 = vpop.f32.mrf.mxu0
        %v3849 = vpop.f32.mrf.mxu0
        %v3850 = vadd.f32 %v3513, %v3849
        %v3851 = vpop.f32.mrf.mxu0
        %3852 = vmatprep.mubr.bf16.mxu0 %v3361
        %3853 = vmatmul.mubr.bf16.gmra.mxu0 %v3247
        %v3854 = vpop.f32.mrf.mxu0
        %v3855 = vadd.f32 %v3513, %v3854
        %v3856 = vpop.f32.mrf.mxu0
        %v3857 = vpop.f32.mrf.mxu0
        %v3858 = vadd.f32 %v3513, %v3857
        %v3859 = vpop.f32.mrf.mxu0
        %3860 = vmatprep.mubr.bf16.mxu0 %v3364
        %3861 = vmatmul.mubr.bf16.gmra.mxu0 %v3250
        %v3862 = vpop.f32.mrf.mxu0
        %v3863 = vadd.f32 %v3513, %v3862
        %v3864 = vpop.f32.mrf.mxu0
        %v3865 = vpop.f32.mrf.mxu0
        %v3866 = vadd.f32 %v3513, %v3865
        %v3867 = vpop.f32.mrf.mxu0
        %3868 = vmatprep.mubr.bf16.mxu0 %v3367
        %3869 = vmatmul.mubr.bf16.gmra.mxu0 %v3253
        %v3870 = vpop.f32.mrf.mxu0
        %v3871 = vadd.f32 %v3513, %v3870
        %v3872 = vpop.f32.mrf.mxu0
        %v3873 = vpop.f32.mrf.mxu0
        %v3874 = vadd.f32 %v3513, %v3873
        %v3875 = vpop.f32.mrf.mxu0
        %3876 = vmatprep.mubr.bf16.mxu0 %v3370
        %3877 = vmatmul.mubr.bf16.gmra.mxu0 %v3256
        %v3878 = vpop.f32.mrf.mxu0
        %v3879 = vadd.f32 %v3513, %v3878
        %v3880 = vpop.f32.mrf.mxu0
        %v3881 = vpop.f32.mrf.mxu0
        %v3882 = vadd.f32 %v3513, %v3881
        %v3883 = vpop.f32.mrf.mxu0
        %3884 = vdwg.mxu0
        %3885 = vmatprep.subr.bf16.mxu0 0
        %3886 = vmatpush1.bf16.msra.mxu0 %v3646
        %3887 = vmatprep.subr.bf16.mxu0 0
        %3888 = vmatpush1.bf16.msra.mxu0 %v3645
        %3889 = vmatprep.subr.bf16.mxu0 0
        %3890 = vmatpush1.bf16.msra.mxu0 %v3644
        %3891 = vmatprep.subr.bf16.mxu0 0
        %3892 = vmatpush1.bf16.msra.mxu0 %v3643
        %3893 = vmatprep.subr.bf16.mxu0 0
        %3894 = vmatpush1.bf16.msra.mxu0 %v3642
        %3895 = vmatprep.subr.bf16.mxu0 0
        %3896 = vmatpush1.bf16.msra.mxu0 %v3641
        %3897 = vmatprep.subr.bf16.mxu0 0
        %3898 = vmatpush1.bf16.msra.mxu0 %v3640
        %3899 = vmatprep.subr.bf16.mxu0 0
        %3900 = vmatpush1.bf16.msra.mxu0 %v3639
        %3901 = vmatprep.subr.bf16.mxu0 0
        %3902 = vmatpush2.bf16.msra.mxu0 0
        %3903 = vmatprep.subr.bf16.mxu0 0
        %3904 = vmatpush2.bf16.msra.mxu0 0
        %3905 = vmatprep.subr.bf16.mxu0 0
        %3906 = vmatpush2.bf16.msra.mxu0 0
        %3907 = vmatprep.subr.bf16.mxu0 0
        %3908 = vmatpush2.bf16.msra.mxu0 0
        %3909 = vmatprep.subr.bf16.mxu0 0
        %3910 = vmatpush2.bf16.msra.mxu0 0
        %3911 = vmatprep.subr.bf16.mxu0 0
        %3912 = vmatpush2.bf16.msra.mxu0 %v3649
        %3913 = vmatprep.subr.bf16.mxu0 0
        %3914 = vmatpush2.bf16.msra.mxu0 %v3648
        %3915 = vmatprep.subr.bf16.mxu0 0
        %3916 = vmatpush2.bf16.msra.mxu0 %v3647
        %3917 = vmatprep.mubr.bf16.mxu0 %v3678
        %3918 = vmatmul.mubr.bf16.gmra.mxu0 %v3407
        %v3919 = vpop.f32.mrf.mxu0
        %v3920 = vadd.f32 %v3759, %v3919
        %v3921 = vpop.f32.mrf.mxu0
        %v3922 = vpop.f32.mrf.mxu0
        %v3923 = vadd.f32 %v3762, %v3922
        %v3924 = vpop.f32.mrf.mxu0
        %3925 = vmatprep.mubr.bf16.mxu0 %v3681
        %3926 = vmatmul.mubr.bf16.gmra.mxu0 %v3410
        %v3927 = vpop.f32.mrf.mxu0
        %v3928 = vadd.f32 %v3767, %v3927
        %v3929 = vpop.f32.mrf.mxu0
        %v3930 = vpop.f32.mrf.mxu0
        %v3931 = vadd.f32 %v3770, %v3930
        %v3932 = vpop.f32.mrf.mxu0
        %3933 = vmatprep.mubr.bf16.mxu0 %v3684
        %3934 = vmatmul.mubr.bf16.gmra.mxu0 %v3413
        %v3935 = vpop.f32.mrf.mxu0
        %v3936 = vadd.f32 %v3775, %v3935
        %v3937 = vpop.f32.mrf.mxu0
        %v3938 = vpop.f32.mrf.mxu0
        %v3939 = vadd.f32 %v3778, %v3938
        %v3940 = vpop.f32.mrf.mxu0
        %3941 = vmatprep.mubr.bf16.mxu0 %v3687
        %3942 = vmatmul.mubr.bf16.gmra.mxu0 %v3416
        %v3943 = vpop.f32.mrf.mxu0
        %v3944 = vadd.f32 %v3783, %v3943
        %v3945 = vpop.f32.mrf.mxu0
        %v3946 = vpop.f32.mrf.mxu0
        %v3947 = vadd.f32 %v3786, %v3946
        %v3948 = vpop.f32.mrf.mxu0
        %3949 = vmatprep.mubr.bf16.mxu0 %v3690
        %3950 = vmatmul.mubr.bf16.gmra.mxu0 %v3419
        %v3951 = vpop.f32.mrf.mxu0
        %v3952 = vadd.f32 %v3791, %v3951
        %v3953 = vpop.f32.mrf.mxu0
        %v3954 = vpop.f32.mrf.mxu0
        %v3955 = vadd.f32 %v3794, %v3954
        %v3956 = vpop.f32.mrf.mxu0
        %3957 = vmatprep.mubr.bf16.mxu0 %v3693
        %3958 = vmatmul.mubr.bf16.gmra.mxu0 %v3422
        %v3959 = vpop.f32.mrf.mxu0
        %v3960 = vadd.f32 %v3799, %v3959
        %v3961 = vpop.f32.mrf.mxu0
        %v3962 = vpop.f32.mrf.mxu0
        %v3963 = vadd.f32 %v3802, %v3962
        %v3964 = vpop.f32.mrf.mxu0
        %3965 = vmatprep.mubr.bf16.mxu0 %v3696
        %3966 = vmatmul.mubr.bf16.gmra.mxu0 %v3425
        %v3967 = vpop.f32.mrf.mxu0
        %v3968 = vadd.f32 %v3807, %v3967
        %v3969 = vpop.f32.mrf.mxu0
        %v3970 = vpop.f32.mrf.mxu0
        %v3971 = vadd.f32 %v3810, %v3970
        %v3972 = vpop.f32.mrf.mxu0
        %3973 = vmatprep.mubr.bf16.mxu0 %v3699
        %3974 = vmatmul.mubr.bf16.gmra.mxu0 %v3428
        %v3975 = vpop.f32.mrf.mxu0
        %v3976 = vadd.f32 %v3815, %v3975
        %v3977 = vpop.f32.mrf.mxu0
        %v3978 = vpop.f32.mrf.mxu0
        %v3979 = vadd.f32 %v3818, %v3978
        %v3980 = vpop.f32.mrf.mxu0
        %3981 = vmatprep.mubr.bf16.mxu0 %v3702
        %3982 = vmatmul.mubr.bf16.gmra.mxu0 %v3431
        %v3983 = vpop.f32.mrf.mxu0
        %v3984 = vadd.f32 %v3823, %v3983
        %v3985 = vpop.f32.mrf.mxu0
        %v3986 = vpop.f32.mrf.mxu0
        %v3987 = vadd.f32 %v3826, %v3986
        %v3988 = vpop.f32.mrf.mxu0
        %3989 = vmatprep.mubr.bf16.mxu0 %v3705
        %3990 = vmatmul.mubr.bf16.gmra.mxu0 %v3434
        %v3991 = vpop.f32.mrf.mxu0
        %v3992 = vadd.f32 %v3831, %v3991
        %v3993 = vpop.f32.mrf.mxu0
        %v3994 = vpop.f32.mrf.mxu0
        %v3995 = vadd.f32 %v3834, %v3994
        %v3996 = vpop.f32.mrf.mxu0
        %3997 = vmatprep.mubr.bf16.mxu0 %v3708
        %3998 = vmatmul.mubr.bf16.gmra.mxu0 %v3437
        %v3999 = vpop.f32.mrf.mxu0
        %v4000 = vadd.f32 %v3839, %v3999
        %v4001 = vpop.f32.mrf.mxu0
        %v4002 = vpop.f32.mrf.mxu0
        %v4003 = vadd.f32 %v3842, %v4002
        %v4004 = vpop.f32.mrf.mxu0
        %4005 = vmatprep.mubr.bf16.mxu0 %v3711
        %4006 = vmatmul.mubr.bf16.gmra.mxu0 %v3440
        %v4007 = vpop.f32.mrf.mxu0
        %v4008 = vadd.f32 %v3847, %v4007
        %v4009 = vpop.f32.mrf.mxu0
        %v4010 = vpop.f32.mrf.mxu0
        %v4011 = vadd.f32 %v3850, %v4010
        %v4012 = vpop.f32.mrf.mxu0
        %4013 = vmatprep.mubr.bf16.mxu0 %v3714
        %4014 = vmatmul.mubr.bf16.gmra.mxu0 %v3443
        %v4015 = vpop.f32.mrf.mxu0
        %v4016 = vadd.f32 %v3855, %v4015
        %v4017 = vpop.f32.mrf.mxu0
        %v4018 = vpop.f32.mrf.mxu0
        %v4019 = vadd.f32 %v3858, %v4018
        %v4020 = vpop.f32.mrf.mxu0
        %4021 = vmatprep.mubr.bf16.mxu0 %v3717
        %4022 = vmatmul.mubr.bf16.gmra.mxu0 %v3446
        %v4023 = vpop.f32.mrf.mxu0
        %v4024 = vadd.f32 %v3863, %v4023
        %v4025 = vpop.f32.mrf.mxu0
        %v4026 = vpop.f32.mrf.mxu0
        %v4027 = vadd.f32 %v3866, %v4026
        %v4028 = vpop.f32.mrf.mxu0
        %4029 = vmatprep.mubr.bf16.mxu0 %v3720
        %4030 = vmatmul.mubr.bf16.gmra.mxu0 %v3449
        %v4031 = vpop.f32.mrf.mxu0
        %v4032 = vadd.f32 %v3871, %v4031
        %v4033 = vpop.f32.mrf.mxu0
        %v4034 = vpop.f32.mrf.mxu0
        %v4035 = vadd.f32 %v3874, %v4034
        %v4036 = vpop.f32.mrf.mxu0
        %4037 = vmatprep.mubr.bf16.mxu0 %v3722
        %4038 = vmatmul.mubr.bf16.gmra.mxu0 %v3452
        %v4039 = vpop.f32.mrf.mxu0
        %v4040 = vadd.f32 %v3879, %v4039
        %v4041 = vpop.f32.mrf.mxu0
        %v4042 = vpop.f32.mrf.mxu0
        %v4043 = vadd.f32 %v3882, %v4042
        %v4044 = vpop.f32.mrf.mxu0
        %4045 = vdwg.mxu0
        %v4046 = vmax.f32 %v3920, 0.0
        %v4047 = vmax.f32 %v3923, 0.0
        %v4048 = vmax.f32 %v3928, 0.0
        %v4049 = vmax.f32 %v3931, 0.0
        %v4050 = vmax.f32 %v3936, 0.0
        %v4051 = vmax.f32 %v3939, 0.0
        %v4052 = vmax.f32 %v3944, 0.0
        %v4053 = vmax.f32 %v3947, 0.0
        %v4054 = vmax.f32 %v3952, 0.0
        %v4055 = vmax.f32 %v3955, 0.0
        %v4056 = vmax.f32 %v3960, 0.0
        %v4057 = vmax.f32 %v3963, 0.0
        %v4058 = vmax.f32 %v3968, 0.0
        %v4059 = vmax.f32 %v3971, 0.0
        %v4060 = vmax.f32 %v3976, 0.0
        %v4061 = vmax.f32 %v3979, 0.0
        %v4062 = vmax.f32 %v3984, 0.0
        %v4063 = vmax.f32 %v3987, 0.0
        %v4064 = vmax.f32 %v3992, 0.0
        %v4065 = vmax.f32 %v3995, 0.0
        %v4066 = vmax.f32 %v4000, 0.0
        %v4067 = vmax.f32 %v4003, 0.0
        %v4068 = vmax.f32 %v4008, 0.0
        %v4069 = vmax.f32 %v4011, 0.0
        %v4070 = vmax.f32 %v4016, 0.0
        %v4071 = vmax.f32 %v4019, 0.0
        %v4072 = vmax.f32 %v4024, 0.0
        %v4073 = vmax.f32 %v4027, 0.0
        %v4074 = vmax.f32 %v4032, 0.0
        %v4075 = vmax.f32 %v4035, 0.0
        %v4076 = vmax.f32 %v4040, 0.0
        %v4077 = vmax.f32 %v4043, 0.0
        %v4078 = vadd.f32 %v547, 0.0
        %v4079 = vadd.f32 %v551, 0.0
        %v4080 = vadd.f32 %v547, %v557
        %v4081 = vadd.f32 %v551, %v561
        %v4082 = vadd.f32 %v557, %v567
        %v4083 = vadd.f32 %v561, %v571
        %v4084 = vadd.f32 %v567, %v577
        %v4085 = vadd.f32 %v571, %v581
        %v4086 = vadd.f32 %v577, %v587
        %v4087 = vadd.f32 %v581, %v591
        %v4088 = vadd.f32 %v587, %v597
        %v4089 = vadd.f32 %v591, %v601
        %v4090 = vadd.f32 %v597, %v607
        %v4091 = vadd.f32 %v601, %v611
        %v4092 = vadd.f32 %v607, %v617
        %v4093 = vadd.f32 %v611, %v621
        %v4094 = vadd.f32 %v617, %v627
        %v4095 = vadd.f32 %v621, %v631
        %v4096 = vadd.f32 %v627, %v637
        %v4097 = vadd.f32 %v631, %v641
        %v4098 = vadd.f32 %v637, %v647
        %v4099 = vadd.f32 %v641, %v651
        %v4100 = vadd.f32 %v647, %v657
        %v4101 = vadd.f32 %v651, %v661
        %v4102 = vadd.f32 %v657, %v667
        %v4103 = vadd.f32 %v661, %v671
        %v4104 = vadd.f32 %v667, %v677
        %v4105 = vadd.f32 %v671, %v681
        %v4106 = vadd.f32 %v677, %v687
        %v4107 = vadd.f32 %v681, %v691
        %v4108 = vadd.f32 %v687, %v697
        %v4109 = vadd.f32 %v691, %v701
        %v4110 = vadd.f32 %v4078, %v557
        %v4111 = vadd.f32 %v4079, %v561
        %v4112 = vadd.f32 %v4080, %v567
        %v4113 = vadd.f32 %v4081, %v571
        %v4114 = vadd.f32 %v4082, %v577
        %v4115 = vadd.f32 %v4083, %v581
        %v4116 = vadd.f32 %v4084, %v587
        %v4117 = vadd.f32 %v4085, %v591
        %v4118 = vadd.f32 %v4086, %v597
        %v4119 = vadd.f32 %v4087, %v601
        %v4120 = vadd.f32 %v4088, %v607
        %v4121 = vadd.f32 %v4089, %v611
        %v4122 = vadd.f32 %v4090, %v617
        %v4123 = vadd.f32 %v4091, %v621
        %v4124 = vadd.f32 %v4092, %v627
        %v4125 = vadd.f32 %v4093, %v631
        %v4126 = vadd.f32 %v4094, %v637
        %v4127 = vadd.f32 %v4095, %v641
        %v4128 = vadd.f32 %v4096, %v647
        %v4129 = vadd.f32 %v4097, %v651
        %v4130 = vadd.f32 %v4098, %v657
        %v4131 = vadd.f32 %v4099, %v661
        %v4132 = vadd.f32 %v4100, %v667
        %v4133 = vadd.f32 %v4101, %v671
        %v4134 = vadd.f32 %v4102, %v677
        %v4135 = vadd.f32 %v4103, %v681
        %v4136 = vadd.f32 %v4104, %v687
        %v4137 = vadd.f32 %v4105, %v691
        %v4138 = vadd.f32 %v4106, %v697
        %v4139 = vadd.f32 %v4107, %v701
        %v4140 = vadd.f32 %v4108, 0.0
        %v4141 = vadd.f32 %v4109, 0.0
        %vm4174 = vcmask 1040384
        %v4175 = vrot.slane %v4110, 7
        %v4176 = vrot.slane %v4111, 7
        %v4177 = vsel %vm4174, %v4175, %v4176
        %v4178 = vrot.slane %v4112, 7
        %v4179 = vrot.slane %v4113, 7
        %v4180 = vsel %vm4174, %v4178, %v4179
        %v4181 = vrot.slane %v4114, 7
        %v4182 = vrot.slane %v4115, 7
        %v4183 = vsel %vm4174, %v4181, %v4182
        %v4184 = vrot.slane %v4116, 7
        %v4185 = vrot.slane %v4117, 7
        %v4186 = vsel %vm4174, %v4184, %v4185
        %v4187 = vrot.slane %v4118, 7
        %v4188 = vrot.slane %v4119, 7
        %v4189 = vsel %vm4174, %v4187, %v4188
        %v4190 = vrot.slane %v4120, 7
        %v4191 = vrot.slane %v4121, 7
        %v4192 = vsel %vm4174, %v4190, %v4191
        %v4193 = vrot.slane %v4122, 7
        %v4194 = vrot.slane %v4123, 7
        %v4195 = vsel %vm4174, %v4193, %v4194
        %v4196 = vrot.slane %v4124, 7
        %v4197 = vrot.slane %v4125, 7
        %v4198 = vsel %vm4174, %v4196, %v4197
        %v4199 = vrot.slane %v4126, 7
        %v4200 = vrot.slane %v4127, 7
        %v4201 = vsel %vm4174, %v4199, %v4200
        %v4202 = vrot.slane %v4128, 7
        %v4203 = vrot.slane %v4129, 7
        %v4204 = vsel %vm4174, %v4202, %v4203
        %v4205 = vrot.slane %v4130, 7
        %v4206 = vrot.slane %v4131, 7
        %v4207 = vsel %vm4174, %v4205, %v4206
        %v4208 = vrot.slane %v4132, 7
        %v4209 = vrot.slane %v4133, 7
        %v4210 = vsel %vm4174, %v4208, %v4209
        %v4211 = vrot.slane %v4134, 7
        %v4212 = vrot.slane %v4135, 7
        %v4213 = vsel %vm4174, %v4211, %v4212
        %v4214 = vrot.slane %v4136, 7
        %v4215 = vrot.slane %v4137, 7
        %v4216 = vsel %vm4174, %v4214, %v4215
        %v4217 = vrot.slane %v4138, 7
        %v4218 = vrot.slane %v4139, 7
        %v4219 = vsel %vm4174, %v4217, %v4218
        %v4220 = vrot.slane %v4140, 7
        %v4221 = vrot.slane %v4141, 7
        %v4222 = vsel %vm4174, %v4220, %v4221
        %v4271 = vsel %vm4174, 0.0, %v4175
        %v4272 = vsel %vm4174, 0.0, %v4178
        %v4273 = vsel %vm4174, 0.0, %v4181
        %v4274 = vsel %vm4174, 0.0, %v4184
        %v4275 = vsel %vm4174, 0.0, %v4187
        %v4276 = vsel %vm4174, 0.0, %v4190
        %v4277 = vsel %vm4174, 0.0, %v4193
        %v4278 = vsel %vm4174, 0.0, %v4196
        %v4279 = vsel %vm4174, 0.0, %v4199
        %v4280 = vsel %vm4174, 0.0, %v4202
        %v4281 = vsel %vm4174, 0.0, %v4205
        %v4282 = vsel %vm4174, 0.0, %v4208
        %v4283 = vsel %vm4174, 0.0, %v4211
        %v4284 = vsel %vm4174, 0.0, %v4214
        %v4285 = vsel %vm4174, 0.0, %v4217
        %v4286 = vsel %vm4174, 0.0, %v4220
        %v4287 = vsel %vm4174, %v4176, 0.0
        %v4288 = vsel %vm4174, %v4179, 0.0
        %v4289 = vsel %vm4174, %v4182, 0.0
        %v4290 = vsel %vm4174, %v4185, 0.0
        %v4291 = vsel %vm4174, %v4188, 0.0
        %v4292 = vsel %vm4174, %v4191, 0.0
        %v4293 = vsel %vm4174, %v4194, 0.0
        %v4294 = vsel %vm4174, %v4197, 0.0
        %v4295 = vsel %vm4174, %v4200, 0.0
        %v4296 = vsel %vm4174, %v4203, 0.0
        %v4297 = vsel %vm4174, %v4206, 0.0
        %v4298 = vsel %vm4174, %v4209, 0.0
        %v4299 = vsel %vm4174, %v4212, 0.0
        %v4300 = vsel %vm4174, %v4215, 0.0
        %v4301 = vsel %vm4174, %v4218, 0.0
        %v4302 = vsel %vm4174, %v4221, 0.0
        %vm4335 = vcmask 1046528
        %v4336 = vrot.slane %v4271, 1
        %v4337 = vrot.slane %v4177, 1
        %v4338 = vsel %vm4335, %v4336, %v4337
        %v4339 = vrot.slane %v4287, 1
        %v4340 = vsel %vm4335, %v4337, %v4339
        %v4341 = vrot.slane %v4272, 1
        %v4342 = vrot.slane %v4180, 1
        %v4343 = vsel %vm4335, %v4341, %v4342
        %v4344 = vrot.slane %v4288, 1
        %v4345 = vsel %vm4335, %v4342, %v4344
        %v4346 = vrot.slane %v4273, 1
        %v4347 = vrot.slane %v4183, 1
        %v4348 = vsel %vm4335, %v4346, %v4347
        %v4349 = vrot.slane %v4289, 1
        %v4350 = vsel %vm4335, %v4347, %v4349
        %v4351 = vrot.slane %v4274, 1
        %v4352 = vrot.slane %v4186, 1
        %v4353 = vsel %vm4335, %v4351, %v4352
        %v4354 = vrot.slane %v4290, 1
        %v4355 = vsel %vm4335, %v4352, %v4354
        %v4356 = vrot.slane %v4275, 1
        %v4357 = vrot.slane %v4189, 1
        %v4358 = vsel %vm4335, %v4356, %v4357
        %v4359 = vrot.slane %v4291, 1
        %v4360 = vsel %vm4335, %v4357, %v4359
        %v4361 = vrot.slane %v4276, 1
        %v4362 = vrot.slane %v4192, 1
        %v4363 = vsel %vm4335, %v4361, %v4362
        %v4364 = vrot.slane %v4292, 1
        %v4365 = vsel %vm4335, %v4362, %v4364
        %v4366 = vrot.slane %v4277, 1
        %v4367 = vrot.slane %v4195, 1
        %v4368 = vsel %vm4335, %v4366, %v4367
        %v4369 = vrot.slane %v4293, 1
        %v4370 = vsel %vm4335, %v4367, %v4369
        %v4371 = vrot.slane %v4278, 1
        %v4372 = vrot.slane %v4198, 1
        %v4373 = vsel %vm4335, %v4371, %v4372
        %v4374 = vrot.slane %v4294, 1
        %v4375 = vsel %vm4335, %v4372, %v4374
        %v4376 = vrot.slane %v4279, 1
        %v4377 = vrot.slane %v4201, 1
        %v4378 = vsel %vm4335, %v4376, %v4377
        %v4379 = vrot.slane %v4295, 1
        %v4380 = vsel %vm4335, %v4377, %v4379
        %v4381 = vrot.slane %v4280, 1
        %v4382 = vrot.slane %v4204, 1
        %v4383 = vsel %vm4335, %v4381, %v4382
        %v4384 = vrot.slane %v4296, 1
        %v4385 = vsel %vm4335, %v4382, %v4384
        %v4386 = vrot.slane %v4281, 1
        %v4387 = vrot.slane %v4207, 1
        %v4388 = vsel %vm4335, %v4386, %v4387
        %v4389 = vrot.slane %v4297, 1
        %v4390 = vsel %vm4335, %v4387, %v4389
        %v4391 = vrot.slane %v4282, 1
        %v4392 = vrot.slane %v4210, 1
        %v4393 = vsel %vm4335, %v4391, %v4392
        %v4394 = vrot.slane %v4298, 1
        %v4395 = vsel %vm4335, %v4392, %v4394
        %v4396 = vrot.slane %v4283, 1
        %v4397 = vrot.slane %v4213, 1
        %v4398 = vsel %vm4335, %v4396, %v4397
        %v4399 = vrot.slane %v4299, 1
        %v4400 = vsel %vm4335, %v4397, %v4399
        %v4401 = vrot.slane %v4284, 1
        %v4402 = vrot.slane %v4216, 1
        %v4403 = vsel %vm4335, %v4401, %v4402
        %v4404 = vrot.slane %v4300, 1
        %v4405 = vsel %vm4335, %v4402, %v4404
        %v4406 = vrot.slane %v4285, 1
        %v4407 = vrot.slane %v4219, 1
        %v4408 = vsel %vm4335, %v4406, %v4407
        %v4409 = vrot.slane %v4301, 1
        %v4410 = vsel %vm4335, %v4407, %v4409
        %v4411 = vrot.slane %v4286, 1
        %v4412 = vrot.slane %v4222, 1
        %v4413 = vsel %vm4335, %v4411, %v4412
        %v4414 = vrot.slane %v4302, 1
        %v4415 = vsel %vm4335, %v4412, %v4414
        %v4448 = vadd.f32 %v4271, %v4338
        %v4449 = vadd.f32 %v4177, %v4340
        %v4450 = vadd.f32 %v4272, %v4343
        %v4451 = vadd.f32 %v4180, %v4345
        %v4452 = vadd.f32 %v4273, %v4348
        %v4453 = vadd.f32 %v4183, %v4350
        %v4454 = vadd.f32 %v4274, %v4353
        %v4455 = vadd.f32 %v4186, %v4355
        %v4456 = vadd.f32 %v4275, %v4358
        %v4457 = vadd.f32 %v4189, %v4360
        %v4458 = vadd.f32 %v4276, %v4363
        %v4459 = vadd.f32 %v4192, %v4365
        %v4460 = vadd.f32 %v4277, %v4368
        %v4461 = vadd.f32 %v4195, %v4370
        %v4462 = vadd.f32 %v4278, %v4373
        %v4463 = vadd.f32 %v4198, %v4375
        %v4464 = vadd.f32 %v4279, %v4378
        %v4465 = vadd.f32 %v4201, %v4380
        %v4466 = vadd.f32 %v4280, %v4383
        %v4467 = vadd.f32 %v4204, %v4385
        %v4468 = vadd.f32 %v4281, %v4388
        %v4469 = vadd.f32 %v4207, %v4390
        %v4470 = vadd.f32 %v4282, %v4393
        %v4471 = vadd.f32 %v4210, %v4395
        %v4472 = vadd.f32 %v4283, %v4398
        %v4473 = vadd.f32 %v4213, %v4400
        %v4474 = vadd.f32 %v4284, %v4403
        %v4475 = vadd.f32 %v4216, %v4405
        %v4476 = vadd.f32 %v4285, %v4408
        %v4477 = vadd.f32 %v4219, %v4410
        %v4478 = vadd.f32 %v4286, %v4413
        %v4479 = vadd.f32 %v4222, %v4415
        %vm4480 = vcmask 1045504
        %v4481 = vrot.slane %v4271, 2
        %v4482 = vrot.slane %v4177, 2
        %v4483 = vsel %vm4480, %v4481, %v4482
        %v4484 = vrot.slane %v4287, 2
        %v4485 = vsel %vm4480, %v4482, %v4484
        %v4486 = vrot.slane %v4272, 2
        %v4487 = vrot.slane %v4180, 2
        %v4488 = vsel %vm4480, %v4486, %v4487
        %v4489 = vrot.slane %v4288, 2
        %v4490 = vsel %vm4480, %v4487, %v4489
        %v4491 = vrot.slane %v4273, 2
        %v4492 = vrot.slane %v4183, 2
        %v4493 = vsel %vm4480, %v4491, %v4492
        %v4494 = vrot.slane %v4289, 2
        %v4495 = vsel %vm4480, %v4492, %v4494
        %v4496 = vrot.slane %v4274, 2
        %v4497 = vrot.slane %v4186, 2
        %v4498 = vsel %vm4480, %v4496, %v4497
        %v4499 = vrot.slane %v4290, 2
        %v4500 = vsel %vm4480, %v4497, %v4499
        %v4501 = vrot.slane %v4275, 2
        %v4502 = vrot.slane %v4189, 2
        %v4503 = vsel %vm4480, %v4501, %v4502
        %v4504 = vrot.slane %v4291, 2
        %v4505 = vsel %vm4480, %v4502, %v4504
        %v4506 = vrot.slane %v4276, 2
        %v4507 = vrot.slane %v4192, 2
        %v4508 = vsel %vm4480, %v4506, %v4507
        %v4509 = vrot.slane %v4292, 2
        %v4510 = vsel %vm4480, %v4507, %v4509
        %v4511 = vrot.slane %v4277, 2
        %v4512 = vrot.slane %v4195, 2
        %v4513 = vsel %vm4480, %v4511, %v4512
        %v4514 = vrot.slane %v4293, 2
        %v4515 = vsel %vm4480, %v4512, %v4514
        %v4516 = vrot.slane %v4278, 2
        %v4517 = vrot.slane %v4198, 2
        %v4518 = vsel %vm4480, %v4516, %v4517
        %v4519 = vrot.slane %v4294, 2
        %v4520 = vsel %vm4480, %v4517, %v4519
        %v4521 = vrot.slane %v4279, 2
        %v4522 = vrot.slane %v4201, 2
        %v4523 = vsel %vm4480, %v4521, %v4522
        %v4524 = vrot.slane %v4295, 2
        %v4525 = vsel %vm4480, %v4522, %v4524
        %v4526 = vrot.slane %v4280, 2
        %v4527 = vrot.slane %v4204, 2
        %v4528 = vsel %vm4480, %v4526, %v4527
        %v4529 = vrot.slane %v4296, 2
        %v4530 = vsel %vm4480, %v4527, %v4529
        %v4531 = vrot.slane %v4281, 2
        %v4532 = vrot.slane %v4207, 2
        %v4533 = vsel %vm4480, %v4531, %v4532
        %v4534 = vrot.slane %v4297, 2
        %v4535 = vsel %vm4480, %v4532, %v4534
        %v4536 = vrot.slane %v4282, 2
        %v4537 = vrot.slane %v4210, 2
        %v4538 = vsel %vm4480, %v4536, %v4537
        %v4539 = vrot.slane %v4298, 2
        %v4540 = vsel %vm4480, %v4537, %v4539
        %v4541 = vrot.slane %v4283, 2
        %v4542 = vrot.slane %v4213, 2
        %v4543 = vsel %vm4480, %v4541, %v4542
        %v4544 = vrot.slane %v4299, 2
        %v4545 = vsel %vm4480, %v4542, %v4544
        %v4546 = vrot.slane %v4284, 2
        %v4547 = vrot.slane %v4216, 2
        %v4548 = vsel %vm4480, %v4546, %v4547
        %v4549 = vrot.slane %v4300, 2
        %v4550 = vsel %vm4480, %v4547, %v4549
        %v4551 = vrot.slane %v4285, 2
        %v4552 = vrot.slane %v4219, 2
        %v4553 = vsel %vm4480, %v4551, %v4552
        %v4554 = vrot.slane %v4301, 2
        %v4555 = vsel %vm4480, %v4552, %v4554
        %v4556 = vrot.slane %v4286, 2
        %v4557 = vrot.slane %v4222, 2
        %v4558 = vsel %vm4480, %v4556, %v4557
        %v4559 = vrot.slane %v4302, 2
        %v4560 = vsel %vm4480, %v4557, %v4559
        %v4593 = vadd.f32 %v4448, %v4483
        %v4594 = vadd.f32 %v4449, %v4485
        %v4595 = vadd.f32 %v4450, %v4488
        %v4596 = vadd.f32 %v4451, %v4490
        %v4597 = vadd.f32 %v4452, %v4493
        %v4598 = vadd.f32 %v4453, %v4495
        %v4599 = vadd.f32 %v4454, %v4498
        %v4600 = vadd.f32 %v4455, %v4500
        %v4601 = vadd.f32 %v4456, %v4503
        %v4602 = vadd.f32 %v4457, %v4505
        %v4603 = vadd.f32 %v4458, %v4508
        %v4604 = vadd.f32 %v4459, %v4510
        %v4605 = vadd.f32 %v4460, %v4513
        %v4606 = vadd.f32 %v4461, %v4515
        %v4607 = vadd.f32 %v4462, %v4518
        %v4608 = vadd.f32 %v4463, %v4520
        %v4609 = vadd.f32 %v4464, %v4523
        %v4610 = vadd.f32 %v4465, %v4525
        %v4611 = vadd.f32 %v4466, %v4528
        %v4612 = vadd.f32 %v4467, %v4530
        %v4613 = vadd.f32 %v4468, %v4533
        %v4614 = vadd.f32 %v4469, %v4535
        %v4615 = vadd.f32 %v4470, %v4538
        %v4616 = vadd.f32 %v4471, %v4540
        %v4617 = vadd.f32 %v4472, %v4543
        %v4618 = vadd.f32 %v4473, %v4545
        %v4619 = vadd.f32 %v4474, %v4548
        %v4620 = vadd.f32 %v4475, %v4550
        %v4621 = vadd.f32 %v4476, %v4553
        %v4622 = vadd.f32 %v4477, %v4555
        %v4623 = vadd.f32 %v4478, %v4558
        %v4624 = vadd.f32 %v4479, %v4560
        %v4625 = vld [vmem:[%s8] sm:$0xff]
        %v4626 = vld [vmem:[%s8 + $0x8] sm:$0xff]
        %v4627 = vld [vmem:[%s8 + $0x10] sm:$0xff]
        %v4628 = vld [vmem:[%s8 + $0x18] sm:$0xff]
        %v4629 = vld [vmem:[%s8 + $0x20] sm:$0xff]
        %v4630 = vld [vmem:[%s8 + $0x28] sm:$0xff]
        %v4631 = vld [vmem:[%s8 + $0x30] sm:$0xff]
        %v4632 = vld [vmem:[%s8 + $0x38] sm:$0xff]
        %v4633 = vld [vmem:[%s8 + $0x40] sm:$0xff]
        %v4634 = vld [vmem:[%s8 + $0x48] sm:$0xff]
        %v4635 = vld [vmem:[%s8 + $0x50] sm:$0xff]
        %v4636 = vld [vmem:[%s8 + $0x58] sm:$0xff]
        %v4637 = vld [vmem:[%s8 + $0x60] sm:$0xff]
        %v4638 = vld [vmem:[%s8 + $0x68] sm:$0xff]
        %v4639 = vld [vmem:[%s8 + $0x70] sm:$0xff]
        %v4640 = vld [vmem:[%s8 + $0x78] sm:$0xff]
        %v4641 = vld [vmem:[%s8 + $0x80] sm:$0xff]
        %v4642 = vld [vmem:[%s8 + $0x88] sm:$0xff]
        %v4643 = vld [vmem:[%s8 + $0x90] sm:$0xff]
        %v4644 = vld [vmem:[%s8 + $0x98] sm:$0xff]
        %v4645 = vld [vmem:[%s8 + $0xa0] sm:$0xff]
        %v4646 = vld [vmem:[%s8 + $0xa8] sm:$0xff]
        %v4647 = vld [vmem:[%s8 + $0xb0] sm:$0xff]
        %v4648 = vld [vmem:[%s8 + $0xb8] sm:$0xff]
        %v4649 = vld [vmem:[%s8 + $0xc0] sm:$0xff]
        %v4650 = vld [vmem:[%s8 + $0xc8] sm:$0xff]
        %v4651 = vld [vmem:[%s8 + $0xd0] sm:$0xff]
        %v4652 = vld [vmem:[%s8 + $0xd8] sm:$0xff]
        %v4653 = vld [vmem:[%s8 + $0xe0] sm:$0xff]
        %v4654 = vld [vmem:[%s8 + $0xe8] sm:$0xff]
        %v4655 = vld [vmem:[%s8 + $0xf0] sm:$0xff]
        %v4656 = vld [vmem:[%s8 + $0xf8] sm:$0xff]
        %4658 = vset.pattern.permute.xlu0 0
        %4659 = vperm.xlu0 %4658, %v4625
        %v4660 = vpop.permute.xlu0 %4659
        %4663 = vset.pattern.permute.xlu0 0
        %4664 = vperm.xlu0 %4663, %v4626
        %v4665 = vpop.permute.xlu0 %4664
        %4668 = vset.pattern.permute.xlu0 0
        %4669 = vperm.xlu0 %4668, %v4627
        %v4670 = vpop.permute.xlu0 %4669
        %4673 = vset.pattern.permute.xlu0 0
        %4674 = vperm.xlu0 %4673, %v4628
        %v4675 = vpop.permute.xlu0 %4674
        %4678 = vset.pattern.permute.xlu0 0
        %4679 = vperm.xlu0 %4678, %v4629
        %v4680 = vpop.permute.xlu0 %4679
        %4683 = vset.pattern.permute.xlu0 0
        %4684 = vperm.xlu0 %4683, %v4630
        %v4685 = vpop.permute.xlu0 %4684
        %4688 = vset.pattern.permute.xlu0 0
        %4689 = vperm.xlu0 %4688, %v4631
        %v4690 = vpop.permute.xlu0 %4689
        %4693 = vset.pattern.permute.xlu0 0
        %4694 = vperm.xlu0 %4693, %v4632
        %v4695 = vpop.permute.xlu0 %4694
        %4698 = vset.pattern.permute.xlu0 0
        %4699 = vperm.xlu0 %4698, %v4633
        %v4700 = vpop.permute.xlu0 %4699
        %4703 = vset.pattern.permute.xlu0 0
        %4704 = vperm.xlu0 %4703, %v4634
        %v4705 = vpop.permute.xlu0 %4704
        %4708 = vset.pattern.permute.xlu0 0
        %4709 = vperm.xlu0 %4708, %v4635
        %v4710 = vpop.permute.xlu0 %4709
        %4713 = vset.pattern.permute.xlu0 0
        %4714 = vperm.xlu0 %4713, %v4636
        %v4715 = vpop.permute.xlu0 %4714
        %4718 = vset.pattern.permute.xlu0 0
        %4719 = vperm.xlu0 %4718, %v4637
        %v4720 = vpop.permute.xlu0 %4719
        %4723 = vset.pattern.permute.xlu0 0
        %4724 = vperm.xlu0 %4723, %v4638
        %v4725 = vpop.permute.xlu0 %4724
        %4728 = vset.pattern.permute.xlu0 0
        %4729 = vperm.xlu0 %4728, %v4639
        %v4730 = vpop.permute.xlu0 %4729
        %4733 = vset.pattern.permute.xlu0 0
        %4734 = vperm.xlu0 %4733, %v4640
        %v4735 = vpop.permute.xlu0 %4734
        %4738 = vset.pattern.permute.xlu0 0
        %4739 = vperm.xlu0 %4738, %v4641
        %v4740 = vpop.permute.xlu0 %4739
        %4743 = vset.pattern.permute.xlu0 0
        %4744 = vperm.xlu0 %4743, %v4642
        %v4745 = vpop.permute.xlu0 %4744
        %4748 = vset.pattern.permute.xlu0 0
        %4749 = vperm.xlu0 %4748, %v4643
        %v4750 = vpop.permute.xlu0 %4749
        %4753 = vset.pattern.permute.xlu0 0
        %4754 = vperm.xlu0 %4753, %v4644
        %v4755 = vpop.permute.xlu0 %4754
        %4758 = vset.pattern.permute.xlu0 0
        %4759 = vperm.xlu0 %4758, %v4645
        %v4760 = vpop.permute.xlu0 %4759
        %4763 = vset.pattern.permute.xlu0 0
        %4764 = vperm.xlu0 %4763, %v4646
        %v4765 = vpop.permute.xlu0 %4764
        %4768 = vset.pattern.permute.xlu0 0
        %4769 = vperm.xlu0 %4768, %v4647
        %v4770 = vpop.permute.xlu0 %4769
        %4773 = vset.pattern.permute.xlu0 0
        %4774 = vperm.xlu0 %4773, %v4648
        %v4775 = vpop.permute.xlu0 %4774
        %4778 = vset.pattern.permute.xlu0 0
        %4779 = vperm.xlu0 %4778, %v4649
        %v4780 = vpop.permute.xlu0 %4779
        %4783 = vset.pattern.permute.xlu0 0
        %4784 = vperm.xlu0 %4783, %v4650
        %v4785 = vpop.permute.xlu0 %4784
        %4788 = vset.pattern.permute.xlu0 0
        %4789 = vperm.xlu0 %4788, %v4651
        %v4790 = vpop.permute.xlu0 %4789
        %4793 = vset.pattern.permute.xlu0 0
        %4794 = vperm.xlu0 %4793, %v4652
        %v4795 = vpop.permute.xlu0 %4794
        %4798 = vset.pattern.permute.xlu0 0
        %4799 = vperm.xlu0 %4798, %v4653
        %v4800 = vpop.permute.xlu0 %4799
        %4803 = vset.pattern.permute.xlu0 0
        %4804 = vperm.xlu0 %4803, %v4654
        %v4805 = vpop.permute.xlu0 %4804
        %4808 = vset.pattern.permute.xlu0 0
        %4809 = vperm.xlu0 %4808, %v4655
        %v4810 = vpop.permute.xlu0 %4809
        %4813 = vset.pattern.permute.xlu0 0
        %4814 = vperm.xlu0 %4813, %v4656
        %v4815 = vpop.permute.xlu0 %4814
        %v4817 = vmul.f32 %v4593, %v4660
        %v4818 = vmul.f32 %v4594, %v4665
        %v4819 = vmul.f32 %v4595, %v4670
        %v4820 = vmul.f32 %v4596, %v4675
        %v4821 = vmul.f32 %v4597, %v4680
        %v4822 = vmul.f32 %v4598, %v4685
        %v4823 = vmul.f32 %v4599, %v4690
        %v4824 = vmul.f32 %v4600, %v4695
        %v4825 = vmul.f32 %v4601, %v4700
        %v4826 = vmul.f32 %v4602, %v4705
        %v4827 = vmul.f32 %v4603, %v4710
        %v4828 = vmul.f32 %v4604, %v4715
        %v4829 = vmul.f32 %v4605, %v4720
        %v4830 = vmul.f32 %v4606, %v4725
        %v4831 = vmul.f32 %v4607, %v4730
        %v4832 = vmul.f32 %v4608, %v4735
        %v4833 = vmul.f32 %v4609, %v4740
        %v4834 = vmul.f32 %v4610, %v4745
        %v4835 = vmul.f32 %v4611, %v4750
        %v4836 = vmul.f32 %v4612, %v4755
        %v4837 = vmul.f32 %v4613, %v4760
        %v4838 = vmul.f32 %v4614, %v4765
        %v4839 = vmul.f32 %v4615, %v4770
        %v4840 = vmul.f32 %v4616, %v4775
        %v4841 = vmul.f32 %v4617, %v4780
        %v4842 = vmul.f32 %v4618, %v4785
        %v4843 = vmul.f32 %v4619, %v4790
        %v4844 = vmul.f32 %v4620, %v4795
        %v4845 = vmul.f32 %v4621, %v4800
        %v4846 = vmul.f32 %v4622, %v4805
        %v4847 = vmul.f32 %v4623, %v4810
        %v4848 = vmul.f32 %v4624, %v4815
        %v4849 = vld [vmem:[%s7] sm:$0x1]
        %v4851 = vlaneseq
        %v4852 = vshrl.u32 %v4851, 7
        %v4853 = vsub.s32 0, %v4852
        %v4854 = vrot.slane %v4849, %v4853
        %v4856 = vadd.f32 %v4817, %v4854
        %v4857 = vadd.f32 %v4818, %v4854
        %v4858 = vadd.f32 %v4819, %v4854
        %v4859 = vadd.f32 %v4820, %v4854
        %v4860 = vadd.f32 %v4821, %v4854
        %v4861 = vadd.f32 %v4822, %v4854
        %v4862 = vadd.f32 %v4823, %v4854
        %v4863 = vadd.f32 %v4824, %v4854
        %v4864 = vadd.f32 %v4825, %v4854
        %v4865 = vadd.f32 %v4826, %v4854
        %v4866 = vadd.f32 %v4827, %v4854
        %v4867 = vadd.f32 %v4828, %v4854
        %v4868 = vadd.f32 %v4829, %v4854
        %v4869 = vadd.f32 %v4830, %v4854
        %v4870 = vadd.f32 %v4831, %v4854
        %v4871 = vadd.f32 %v4832, %v4854
        %v4872 = vadd.f32 %v4833, %v4854
        %v4873 = vadd.f32 %v4834, %v4854
        %v4874 = vadd.f32 %v4835, %v4854
        %v4875 = vadd.f32 %v4836, %v4854
        %v4876 = vadd.f32 %v4837, %v4854
        %v4877 = vadd.f32 %v4838, %v4854
        %v4878 = vadd.f32 %v4839, %v4854
        %v4879 = vadd.f32 %v4840, %v4854
        %v4880 = vadd.f32 %v4841, %v4854
        %v4881 = vadd.f32 %v4842, %v4854
        %v4882 = vadd.f32 %v4843, %v4854
        %v4883 = vadd.f32 %v4844, %v4854
        %v4884 = vadd.f32 %v4845, %v4854
        %v4885 = vadd.f32 %v4846, %v4854
        %v4886 = vadd.f32 %v4847, %v4854
        %v4887 = vadd.f32 %v4848, %v4854
        %v4888 = vmax.f32 %v4856, 0.0
        %v4889 = vmax.f32 %v4857, 0.0
        %v4890 = vmax.f32 %v4858, 0.0
        %v4891 = vmax.f32 %v4859, 0.0
        %v4892 = vmax.f32 %v4860, 0.0
        %v4893 = vmax.f32 %v4861, 0.0
        %v4894 = vmax.f32 %v4862, 0.0
        %v4895 = vmax.f32 %v4863, 0.0
        %v4896 = vmax.f32 %v4864, 0.0
        %v4897 = vmax.f32 %v4865, 0.0
        %v4898 = vmax.f32 %v4866, 0.0
        %v4899 = vmax.f32 %v4867, 0.0
        %v4900 = vmax.f32 %v4868, 0.0
        %v4901 = vmax.f32 %v4869, 0.0
        %v4902 = vmax.f32 %v4870, 0.0
        %v4903 = vmax.f32 %v4871, 0.0
        %v4904 = vmax.f32 %v4872, 0.0
        %v4905 = vmax.f32 %v4873, 0.0
        %v4906 = vmax.f32 %v4874, 0.0
        %v4907 = vmax.f32 %v4875, 0.0
        %v4908 = vmax.f32 %v4876, 0.0
        %v4909 = vmax.f32 %v4877, 0.0
        %v4910 = vmax.f32 %v4878, 0.0
        %v4911 = vmax.f32 %v4879, 0.0
        %v4912 = vmax.f32 %v4880, 0.0
        %v4913 = vmax.f32 %v4881, 0.0
        %v4914 = vmax.f32 %v4882, 0.0
        %v4915 = vmax.f32 %v4883, 0.0
        %v4916 = vmax.f32 %v4884, 0.0
        %v4917 = vmax.f32 %v4885, 0.0
        %v4918 = vmax.f32 %v4886, 0.0
        %v4919 = vmax.f32 %v4887, 0.0
        %4952 = vrot.lane.b32.xlu0 %v2408, 48
        %v4953 = vpop.permute.xlu0 %4952
        %4954 = vrot.lane.b32.xlu0 %v2409, 48
        %v4955 = vpop.permute.xlu0 %4954
        %4956 = vrot.lane.b32.xlu0 %v2410, 48
        %v4957 = vpop.permute.xlu0 %4956
        %4958 = vrot.lane.b32.xlu0 %v2411, 48
        %v4959 = vpop.permute.xlu0 %4958
        %4960 = vrot.lane.b32.xlu0 %v2412, 48
        %v4961 = vpop.permute.xlu0 %4960
        %4962 = vrot.lane.b32.xlu0 %v2413, 48
        %v4963 = vpop.permute.xlu0 %4962
        %4964 = vrot.lane.b32.xlu0 %v2414, 48
        %v4965 = vpop.permute.xlu0 %4964
        %4966 = vrot.lane.b32.xlu0 %v2415, 48
        %v4967 = vpop.permute.xlu0 %4966
        %4968 = vrot.lane.b32.xlu0 %v2416, 48
        %v4969 = vpop.permute.xlu0 %4968
        %4970 = vrot.lane.b32.xlu0 %v2417, 48
        %v4971 = vpop.permute.xlu0 %4970
        %4972 = vrot.lane.b32.xlu0 %v2418, 48
        %v4973 = vpop.permute.xlu0 %4972
        %4974 = vrot.lane.b32.xlu0 %v2419, 48
        %v4975 = vpop.permute.xlu0 %4974
        %4976 = vrot.lane.b32.xlu0 %v2420, 48
        %v4977 = vpop.permute.xlu0 %4976
        %4978 = vrot.lane.b32.xlu0 %v2421, 48
        %v4979 = vpop.permute.xlu0 %4978
        %4980 = vrot.lane.b32.xlu0 %v2422, 48
        %v4981 = vpop.permute.xlu0 %4980
        %4982 = vrot.lane.b32.xlu0 %v2423, 48
        %v4983 = vpop.permute.xlu0 %4982
        %4984 = vrot.lane.b32.xlu0 %v2424, 48
        %v4985 = vpop.permute.xlu0 %4984
        %4986 = vrot.lane.b32.xlu0 %v2425, 48
        %v4987 = vpop.permute.xlu0 %4986
        %4988 = vrot.lane.b32.xlu0 %v2426, 48
        %v4989 = vpop.permute.xlu0 %4988
        %4990 = vrot.lane.b32.xlu0 %v2427, 48
        %v4991 = vpop.permute.xlu0 %4990
        %4992 = vrot.lane.b32.xlu0 %v2428, 48
        %v4993 = vpop.permute.xlu0 %4992
        %4994 = vrot.lane.b32.xlu0 %v2429, 48
        %v4995 = vpop.permute.xlu0 %4994
        %4996 = vrot.lane.b32.xlu0 %v2430, 48
        %v4997 = vpop.permute.xlu0 %4996
        %4998 = vrot.lane.b32.xlu0 %v2431, 48
        %v4999 = vpop.permute.xlu0 %4998
        %5000 = vrot.lane.b32.xlu0 %v2432, 48
        %v5001 = vpop.permute.xlu0 %5000
        %5002 = vrot.lane.b32.xlu0 %v2433, 48
        %v5003 = vpop.permute.xlu0 %5002
        %5004 = vrot.lane.b32.xlu0 %v2434, 48
        %v5005 = vpop.permute.xlu0 %5004
        %5006 = vrot.lane.b32.xlu0 %v2435, 48
        %v5007 = vpop.permute.xlu0 %5006
        %5008 = vrot.lane.b32.xlu0 %v2436, 48
        %v5009 = vpop.permute.xlu0 %5008
        %5010 = vrot.lane.b32.xlu0 %v2437, 48
        %v5011 = vpop.permute.xlu0 %5010
        %5012 = vrot.lane.b32.xlu0 %v2438, 48
        %v5013 = vpop.permute.xlu0 %5012
        %5014 = vrot.lane.b32.xlu0 %v2439, 48
        %v5015 = vpop.permute.xlu0 %5014
        %5080 = vrot.lane.b32.xlu0 %v4046, 96
        %v5081 = vpop.permute.xlu0 %5080
        %5082 = vrot.lane.b32.xlu0 %v4047, 96
        %v5083 = vpop.permute.xlu0 %5082
        %5084 = vrot.lane.b32.xlu0 %v4048, 96
        %v5085 = vpop.permute.xlu0 %5084
        %5086 = vrot.lane.b32.xlu0 %v4049, 96
        %v5087 = vpop.permute.xlu0 %5086
        %5088 = vrot.lane.b32.xlu0 %v4050, 96
        %v5089 = vpop.permute.xlu0 %5088
        %5090 = vrot.lane.b32.xlu0 %v4051, 96
        %v5091 = vpop.permute.xlu0 %5090
        %5092 = vrot.lane.b32.xlu0 %v4052, 96
        %v5093 = vpop.permute.xlu0 %5092
        %5094 = vrot.lane.b32.xlu0 %v4053, 96
        %v5095 = vpop.permute.xlu0 %5094
        %5096 = vrot.lane.b32.xlu0 %v4054, 96
        %v5097 = vpop.permute.xlu0 %5096
        %5098 = vrot.lane.b32.xlu0 %v4055, 96
        %v5099 = vpop.permute.xlu0 %5098
        %5100 = vrot.lane.b32.xlu0 %v4056, 96
        %v5101 = vpop.permute.xlu0 %5100
        %5102 = vrot.lane.b32.xlu0 %v4057, 96
        %v5103 = vpop.permute.xlu0 %5102
        %5104 = vrot.lane.b32.xlu0 %v4058, 96
        %v5105 = vpop.permute.xlu0 %5104
        %5106 = vrot.lane.b32.xlu0 %v4059, 96
        %v5107 = vpop.permute.xlu0 %5106
        %5108 = vrot.lane.b32.xlu0 %v4060, 96
        %v5109 = vpop.permute.xlu0 %5108
        %5110 = vrot.lane.b32.xlu0 %v4061, 96
        %v5111 = vpop.permute.xlu0 %5110
        %5112 = vrot.lane.b32.xlu0 %v4062, 96
        %v5113 = vpop.permute.xlu0 %5112
        %5114 = vrot.lane.b32.xlu0 %v4063, 96
        %v5115 = vpop.permute.xlu0 %5114
        %5116 = vrot.lane.b32.xlu0 %v4064, 96
        %v5117 = vpop.permute.xlu0 %5116
        %5118 = vrot.lane.b32.xlu0 %v4065, 96
        %v5119 = vpop.permute.xlu0 %5118
        %5120 = vrot.lane.b32.xlu0 %v4066, 96
        %v5121 = vpop.permute.xlu0 %5120
        %5122 = vrot.lane.b32.xlu0 %v4067, 96
        %v5123 = vpop.permute.xlu0 %5122
        %5124 = vrot.lane.b32.xlu0 %v4068, 96
        %v5125 = vpop.permute.xlu0 %5124
        %5126 = vrot.lane.b32.xlu0 %v4069, 96
        %v5127 = vpop.permute.xlu0 %5126
        %5128 = vrot.lane.b32.xlu0 %v4070, 96
        %v5129 = vpop.permute.xlu0 %5128
        %5130 = vrot.lane.b32.xlu0 %v4071, 96
        %v5131 = vpop.permute.xlu0 %5130
        %5132 = vrot.lane.b32.xlu0 %v4072, 96
        %v5133 = vpop.permute.xlu0 %5132
        %5134 = vrot.lane.b32.xlu0 %v4073, 96
        %v5135 = vpop.permute.xlu0 %5134
        %5136 = vrot.lane.b32.xlu0 %v4074, 96
        %v5137 = vpop.permute.xlu0 %5136
        %5138 = vrot.lane.b32.xlu0 %v4075, 96
        %v5139 = vpop.permute.xlu0 %5138
        %5140 = vrot.lane.b32.xlu0 %v4076, 96
        %v5141 = vpop.permute.xlu0 %5140
        %5142 = vrot.lane.b32.xlu0 %v4077, 96
        %v5143 = vpop.permute.xlu0 %5142
        %5208 = vrot.lane.b32.xlu0 %v4888, 16
        %v5209 = vpop.permute.xlu0 %5208
        %5210 = vrot.lane.b32.xlu0 %v4889, 16
        %v5211 = vpop.permute.xlu0 %5210
        %5212 = vrot.lane.b32.xlu0 %v4890, 16
        %v5213 = vpop.permute.xlu0 %5212
        %5214 = vrot.lane.b32.xlu0 %v4891, 16
        %v5215 = vpop.permute.xlu0 %5214
        %5216 = vrot.lane.b32.xlu0 %v4892, 16
        %v5217 = vpop.permute.xlu0 %5216
        %5218 = vrot.lane.b32.xlu0 %v4893, 16
        %v5219 = vpop.permute.xlu0 %5218
        %5220 = vrot.lane.b32.xlu0 %v4894, 16
        %v5221 = vpop.permute.xlu0 %5220
        %5222 = vrot.lane.b32.xlu0 %v4895, 16
        %v5223 = vpop.permute.xlu0 %5222
        %5224 = vrot.lane.b32.xlu0 %v4896, 16
        %v5225 = vpop.permute.xlu0 %5224
        %5226 = vrot.lane.b32.xlu0 %v4897, 16
        %v5227 = vpop.permute.xlu0 %5226
        %5228 = vrot.lane.b32.xlu0 %v4898, 16
        %v5229 = vpop.permute.xlu0 %5228
        %5230 = vrot.lane.b32.xlu0 %v4899, 16
        %v5231 = vpop.permute.xlu0 %5230
        %5232 = vrot.lane.b32.xlu0 %v4900, 16
        %v5233 = vpop.permute.xlu0 %5232
        %5234 = vrot.lane.b32.xlu0 %v4901, 16
        %v5235 = vpop.permute.xlu0 %5234
        %5236 = vrot.lane.b32.xlu0 %v4902, 16
        %v5237 = vpop.permute.xlu0 %5236
        %5238 = vrot.lane.b32.xlu0 %v4903, 16
        %v5239 = vpop.permute.xlu0 %5238
        %5240 = vrot.lane.b32.xlu0 %v4904, 16
        %v5241 = vpop.permute.xlu0 %5240
        %5242 = vrot.lane.b32.xlu0 %v4905, 16
        %v5243 = vpop.permute.xlu0 %5242
        %5244 = vrot.lane.b32.xlu0 %v4906, 16
        %v5245 = vpop.permute.xlu0 %5244
        %5246 = vrot.lane.b32.xlu0 %v4907, 16
        %v5247 = vpop.permute.xlu0 %5246
        %5248 = vrot.lane.b32.xlu0 %v4908, 16
        %v5249 = vpop.permute.xlu0 %5248
        %5250 = vrot.lane.b32.xlu0 %v4909, 16
        %v5251 = vpop.permute.xlu0 %5250
        %5252 = vrot.lane.b32.xlu0 %v4910, 16
        %v5253 = vpop.permute.xlu0 %5252
        %5254 = vrot.lane.b32.xlu0 %v4911, 16
        %v5255 = vpop.permute.xlu0 %5254
        %5256 = vrot.lane.b32.xlu0 %v4912, 16
        %v5257 = vpop.permute.xlu0 %5256
        %5258 = vrot.lane.b32.xlu0 %v4913, 16
        %v5259 = vpop.permute.xlu0 %5258
        %5260 = vrot.lane.b32.xlu0 %v4914, 16
        %v5261 = vpop.permute.xlu0 %5260
        %5262 = vrot.lane.b32.xlu0 %v4915, 16
        %v5263 = vpop.permute.xlu0 %5262
        %5264 = vrot.lane.b32.xlu0 %v4916, 16
        %v5265 = vpop.permute.xlu0 %5264
        %5266 = vrot.lane.b32.xlu0 %v4917, 16
        %v5267 = vpop.permute.xlu0 %5266
        %5268 = vrot.lane.b32.xlu0 %v4918, 16
        %v5269 = vpop.permute.xlu0 %5268
        %5270 = vrot.lane.b32.xlu0 %v4919, 16
        %v5271 = vpop.permute.xlu0 %5270
        %v5304 = vsel %vm3176, %v742, %v4953
        %v5305 = vsel %vm3176, %v743, %v4955
        %v5306 = vsel %vm3176, %v744, %v4957
        %v5307 = vsel %vm3176, %v745, %v4959
        %v5308 = vsel %vm3176, %v746, %v4961
        %v5309 = vsel %vm3176, %v747, %v4963
        %v5310 = vsel %vm3176, %v748, %v4965
        %v5311 = vsel %vm3176, %v749, %v4967
        %v5312 = vsel %vm3176, %v750, %v4969
        %v5313 = vsel %vm3176, %v751, %v4971
        %v5314 = vsel %vm3176, %v752, %v4973
        %v5315 = vsel %vm3176, %v753, %v4975
        %v5316 = vsel %vm3176, %v754, %v4977
        %v5317 = vsel %vm3176, %v755, %v4979
        %v5318 = vsel %vm3176, %v756, %v4981
        %v5319 = vsel %vm3176, %v757, %v4983
        %v5320 = vsel %vm3176, %v758, %v4985
        %v5321 = vsel %vm3176, %v759, %v4987
        %v5322 = vsel %vm3176, %v760, %v4989
        %v5323 = vsel %vm3176, %v761, %v4991
        %v5324 = vsel %vm3176, %v762, %v4993
        %v5325 = vsel %vm3176, %v763, %v4995
        %v5326 = vsel %vm3176, %v764, %v4997
        %v5327 = vsel %vm3176, %v765, %v4999
        %v5328 = vsel %vm3176, %v766, %v5001
        %v5329 = vsel %vm3176, %v767, %v5003
        %v5330 = vsel %vm3176, %v768, %v5005
        %v5331 = vsel %vm3176, %v769, %v5007
        %v5332 = vsel %vm3176, %v770, %v5009
        %v5333 = vsel %vm3176, %v771, %v5011
        %v5334 = vsel %vm3176, %v772, %v5013
        %v5335 = vsel %vm3176, %v773, %v5015
        %v5336 = vsel %vm3209, %v5304, %v5081
        %v5337 = vsel %vm3209, %v5305, %v5083
        %v5338 = vsel %vm3209, %v5306, %v5085
        %v5339 = vsel %vm3209, %v5307, %v5087
        %v5340 = vsel %vm3209, %v5308, %v5089
        %v5341 = vsel %vm3209, %v5309, %v5091
        %v5342 = vsel %vm3209, %v5310, %v5093
        %v5343 = vsel %vm3209, %v5311, %v5095
        %v5344 = vsel %vm3209, %v5312, %v5097
        %v5345 = vsel %vm3209, %v5313, %v5099
        %v5346 = vsel %vm3209, %v5314, %v5101
        %v5347 = vsel %vm3209, %v5315, %v5103
        %v5348 = vsel %vm3209, %v5316, %v5105
        %v5349 = vsel %vm3209, %v5317, %v5107
        %v5350 = vsel %vm3209, %v5318, %v5109
        %v5351 = vsel %vm3209, %v5319, %v5111
        %v5352 = vsel %vm3209, %v5320, %v5113
        %v5353 = vsel %vm3209, %v5321, %v5115
        %v5354 = vsel %vm3209, %v5322, %v5117
        %v5355 = vsel %vm3209, %v5323, %v5119
        %v5356 = vsel %vm3209, %v5324, %v5121
        %v5357 = vsel %vm3209, %v5325, %v5123
        %v5358 = vsel %vm3209, %v5326, %v5125
        %v5359 = vsel %vm3209, %v5327, %v5127
        %v5360 = vsel %vm3209, %v5328, %v5129
        %v5361 = vsel %vm3209, %v5329, %v5131
        %v5362 = vsel %vm3209, %v5330, %v5133
        %v5363 = vsel %vm3209, %v5331, %v5135
        %v5364 = vsel %vm3209, %v5332, %v5137
        %v5365 = vsel %vm3209, %v5333, %v5139
        %v5366 = vsel %vm3209, %v5334, %v5141
        %v5367 = vsel %vm3209, %v5335, %v5143
        %v5368 = vsel %vm3258, %v5081, %v5209
        %v5369 = vsel %vm3258, %v5083, %v5211
        %v5370 = vsel %vm3258, %v5085, %v5213
        %v5371 = vsel %vm3258, %v5087, %v5215
        %v5372 = vsel %vm3258, %v5089, %v5217
        %v5373 = vsel %vm3258, %v5091, %v5219
        %v5374 = vsel %vm3258, %v5093, %v5221
        %v5375 = vsel %vm3258, %v5095, %v5223
        %v5376 = vsel %vm3258, %v5097, %v5225
        %v5377 = vsel %vm3258, %v5099, %v5227
        %v5378 = vsel %vm3258, %v5101, %v5229
        %v5379 = vsel %vm3258, %v5103, %v5231
        %v5380 = vsel %vm3258, %v5105, %v5233
        %v5381 = vsel %vm3258, %v5107, %v5235
        %v5382 = vsel %vm3258, %v5109, %v5237
        %v5383 = vsel %vm3258, %v5111, %v5239
        %v5384 = vsel %vm3258, %v5113, %v5241
        %v5385 = vsel %vm3258, %v5115, %v5243
        %v5386 = vsel %vm3258, %v5117, %v5245
        %v5387 = vsel %vm3258, %v5119, %v5247
        %v5388 = vsel %vm3258, %v5121, %v5249
        %v5389 = vsel %vm3258, %v5123, %v5251
        %v5390 = vsel %vm3258, %v5125, %v5253
        %v5391 = vsel %vm3258, %v5127, %v5255
        %v5392 = vsel %vm3258, %v5129, %v5257
        %v5393 = vsel %vm3258, %v5131, %v5259
        %v5394 = vsel %vm3258, %v5133, %v5261
        %v5395 = vsel %vm3258, %v5135, %v5263
        %v5396 = vsel %vm3258, %v5137, %v5265
        %v5397 = vsel %vm3258, %v5139, %v5267
        %v5398 = vsel %vm3258, %v5141, %v5269
        %v5399 = vsel %vm3258, %v5143, %v5271
        %5400 = vst [vmem:[%s325] sm:$0xff] %v5336
        %5401 = vst.msk [vmem:[%s325 + $0x8] sm:$0xff] %vm1417, %v5368
        %5402 = vst [vmem:[%s325 + $0x10] sm:$0xff] %v5337
        %5403 = vst.msk [vmem:[%s325 + $0x18] sm:$0xff] %vm1417, %v5369
        %5404 = vst [vmem:[%s325 + $0x20] sm:$0xff] %v5338
        %5405 = vst.msk [vmem:[%s325 + $0x28] sm:$0xff] %vm1417, %v5370
        %5406 = vst [vmem:[%s325 + $0x30] sm:$0xff] %v5339
        %5407 = vst.msk [vmem:[%s325 + $0x38] sm:$0xff] %vm1417, %v5371
        %5408 = vst [vmem:[%s325 + $0x40] sm:$0xff] %v5340
        %5409 = vst.msk [vmem:[%s325 + $0x48] sm:$0xff] %vm1417, %v5372
        %5410 = vst [vmem:[%s325 + $0x50] sm:$0xff] %v5341
        %5411 = vst.msk [vmem:[%s325 + $0x58] sm:$0xff] %vm1417, %v5373
        %5412 = vst [vmem:[%s325 + $0x60] sm:$0xff] %v5342
        %5413 = vst.msk [vmem:[%s325 + $0x68] sm:$0xff] %vm1417, %v5374
        %5414 = vst [vmem:[%s325 + $0x70] sm:$0xff] %v5343
        %5415 = vst.msk [vmem:[%s325 + $0x78] sm:$0xff] %vm1417, %v5375
        %5416 = vst [vmem:[%s325 + $0x80] sm:$0xff] %v5344
        %5417 = vst.msk [vmem:[%s325 + $0x88] sm:$0xff] %vm1417, %v5376
        %5418 = vst [vmem:[%s325 + $0x90] sm:$0xff] %v5345
        %5419 = vst.msk [vmem:[%s325 + $0x98] sm:$0xff] %vm1417, %v5377
        %5420 = vst [vmem:[%s325 + $0xa0] sm:$0xff] %v5346
        %5421 = vst.msk [vmem:[%s325 + $0xa8] sm:$0xff] %vm1417, %v5378
        %5422 = vst [vmem:[%s325 + $0xb0] sm:$0xff] %v5347
        %5423 = vst.msk [vmem:[%s325 + $0xb8] sm:$0xff] %vm1417, %v5379
        %5424 = vst [vmem:[%s325 + $0xc0] sm:$0xff] %v5348
        %5425 = vst.msk [vmem:[%s325 + $0xc8] sm:$0xff] %vm1417, %v5380
        %5426 = vst [vmem:[%s325 + $0xd0] sm:$0xff] %v5349
        %5427 = vst.msk [vmem:[%s325 + $0xd8] sm:$0xff] %vm1417, %v5381
        %5428 = vst [vmem:[%s325 + $0xe0] sm:$0xff] %v5350
        %5429 = vst.msk [vmem:[%s325 + $0xe8] sm:$0xff] %vm1417, %v5382
        %5430 = vst [vmem:[%s325 + $0xf0] sm:$0xff] %v5351
        %5431 = vst.msk [vmem:[%s325 + $0xf8] sm:$0xff] %vm1417, %v5383
        %5432 = vst [vmem:[%s325 + $0x100] sm:$0xff] %v5352
        %5433 = vst.msk [vmem:[%s325 + $0x108] sm:$0xff] %vm1417, %v5384
        %5434 = vst [vmem:[%s325 + $0x110] sm:$0xff] %v5353
        %5435 = vst.msk [vmem:[%s325 + $0x118] sm:$0xff] %vm1417, %v5385
        %5436 = vst [vmem:[%s325 + $0x120] sm:$0xff] %v5354
        %5437 = vst.msk [vmem:[%s325 + $0x128] sm:$0xff] %vm1417, %v5386
        %5438 = vst [vmem:[%s325 + $0x130] sm:$0xff] %v5355
        %5439 = vst.msk [vmem:[%s325 + $0x138] sm:$0xff] %vm1417, %v5387
        %5440 = vst [vmem:[%s325 + $0x140] sm:$0xff] %v5356
        %5441 = vst.msk [vmem:[%s325 + $0x148] sm:$0xff] %vm1417, %v5388
        %5442 = vst [vmem:[%s325 + $0x150] sm:$0xff] %v5357
        %5443 = vst.msk [vmem:[%s325 + $0x158] sm:$0xff] %vm1417, %v5389
        %5444 = vst [vmem:[%s325 + $0x160] sm:$0xff] %v5358
        %5445 = vst.msk [vmem:[%s325 + $0x168] sm:$0xff] %vm1417, %v5390
        %5446 = vst [vmem:[%s325 + $0x170] sm:$0xff] %v5359
        %5447 = vst.msk [vmem:[%s325 + $0x178] sm:$0xff] %vm1417, %v5391
        %5448 = vst [vmem:[%s325 + $0x180] sm:$0xff] %v5360
        %5449 = vst.msk [vmem:[%s325 + $0x188] sm:$0xff] %vm1417, %v5392
        %5450 = vst [vmem:[%s325 + $0x190] sm:$0xff] %v5361
        %5451 = vst.msk [vmem:[%s325 + $0x198] sm:$0xff] %vm1417, %v5393
        %5452 = vst [vmem:[%s325 + $0x1a0] sm:$0xff] %v5362
        %5453 = vst.msk [vmem:[%s325 + $0x1a8] sm:$0xff] %vm1417, %v5394
        %5454 = vst [vmem:[%s325 + $0x1b0] sm:$0xff] %v5363
        %5455 = vst.msk [vmem:[%s325 + $0x1b8] sm:$0xff] %vm1417, %v5395
        %5456 = vst [vmem:[%s325 + $0x1c0] sm:$0xff] %v5364
        %5457 = vst.msk [vmem:[%s325 + $0x1c8] sm:$0xff] %vm1417, %v5396
        %5458 = vst [vmem:[%s325 + $0x1d0] sm:$0xff] %v5365
        %5459 = vst.msk [vmem:[%s325 + $0x1d8] sm:$0xff] %vm1417, %v5397
        %5460 = vst [vmem:[%s325 + $0x1e0] sm:$0xff] %v5366
        %5461 = vst.msk [vmem:[%s325 + $0x1e8] sm:$0xff] %vm1417, %v5398
        %5462 = vst [vmem:[%s325 + $0x1f0] sm:$0xff] %v5367
        %5463 = vst.msk [vmem:[%s325 + $0x1f8] sm:$0xff] %vm1417, %v5399
        %s5464 = sand.u32 %s225, 1
        %s5465 = scalar_lea.sflag [#allocation3], %s5464
        %s5466 = sand.u32 %s225, 1
        %s5467 = smul.addr %s5466, 512
        %s5468 = scalar_lea.vmem [#allocation2], %s5467
        // Predicated region
        $region57: #{inception_a_forward.1} parent=55 // pred_check
          %p5469 = pneg %p235
        $region58: #{inception_a_forward.1} parent=55 // pred_check_branch
          %5471 = sbr.rel (%p5469) target = $region60
        $region59: #{inception_a_forward.1} parent=55 // pred_region
          %s5473 = ssub.s32 8192, 8192
          %5474 = vsyncadd %s5465, %s5473
          %s5475 = smul.addr %s23, 64
          %s5476 = smul.addr %s5475, 128
          %s5477 = scalar_lea.hbm %s9, %s5476
          %s5478 = sshll.u32 %s5468, 4
          %s5479 = int_to_ptr.vmem [resolvable:$true] %s5478
          %5484 = dma.vmem_to_hbm [thread:$0]  %s5479, 8192, %s5477, %s5465, 256, 256, 16
        $region60: #{inception_a_forward.1} parent=55 // pred_fallthru
          _
      $region56: #{inception_a_forward.1} parent=5 // pred_fallthru
        _
      %p5485 = scmp.le.s32.totalorder 2, %s18
      // Predicated region
      $region61: #{inception_a_forward.1} parent=5 // pred_check
        %p5486 = pneg %p5485
      $region62: #{inception_a_forward.1} parent=5 // pred_check_branch
        %5488 = sbr.rel (%p5486) target = $region64
      $region63: #{inception_a_forward.1} parent=5 // pred_region
        %s5489 = ssub.s32 %s18, 2
        // Predicated region
        $region65: #{inception_a_forward.1} parent=63 // pred_check
          %p5490 = pneg %p241
        $region66: #{inception_a_forward.1} parent=63 // pred_check_branch
          %5492 = sbr.rel (%p5490) target = $region68
        $region67: #{inception_a_forward.1} parent=63 // pred_region
          %s5493 = sand.u32 %s226, 1
          %s5494 = scalar_lea.sflag [#allocation3], %s5493
          %s5495 = sand.u32 %s226, 1
          %s5496 = smul.addr %s5495, 512
          %s5497 = scalar_lea.vmem [#allocation2], %s5496
          %5498 = dma.done %s5494, 8192
        $region68: #{inception_a_forward.1} parent=63 // pred_fallthru
          _
      $region64: #{inception_a_forward.1} parent=5 // pred_fallthru
        _
    $region6: #{inception_a_forward.1} parent=1 // loop_footer
      %s22 = sadd.s32 1, %s18
    $region7: #{inception_a_forward.1} parent=1 // loop_footer_branch
      %17 = sbr.rel target = $region3
    $region8: #{inception_a_forward.1} parent=1 // loop_exit
      _
    %5499 = vsyncpa [#allocation3], 1
    %s5500 = scalar_lea.sflag [#allocation3], 1
    %5501 = vsyncpa %s5500, 1

</llo_original>
